<compile_context>
chip_gen: v6e
topology: v6e:2x2x1
jax: 0.10.0
libtpu: 0.0.40
codegen_flags: <defaults>
</compile_context>

<pallas_src>
import math
import functools

import jax
import jax.numpy as jnp
from jax.experimental import pallas as pl
from jax.experimental.pallas import tpu as pltpu


LANE_TILE = 128  # lane width of one in-register working set


def _polar_attn_kernel(qkv_ref, qe_ref, ke_ref, ve_ref, o_ref, *, groups, gp, bblk):
    """One grid step: axial (polar) attention over a batch-on-lanes slab.

    qkv_ref : (2*OP, H, Bblk)      projected q/k/v  [channel, position, batch-lane]
    qe_ref  : (gp//2, H, H, 128)   qe_ref[c, j, i, :] == q_emb[c, i, j]   (lane-broadcast)
    ke_ref  : (gp//2, H, H, 128)   ke_ref[c, j, i, :] == k_emb[c, j, i]
    ve_ref  : (gp,    H, H, 128)   ve_ref[c, j, i, :] == v_emb[c, i, j]
    o_ref   : (OP, H, Bblk)        output slab       [channel, position, batch-lane]

    Temporaries are laid out (H_j, H_i, 128): j leading, i on sublanes, batch on
    lanes.  Reductions over j are cross-vreg adds; every store is a lane-dense
    (H, 128) unmasked vst.
    """
    gph = gp // 2
    n_sub = bblk // LANE_TILE
    # NOTE: n_sub / groups / gph / gp are tiny here so the Python loops fully
    # unroll (equivalent to lax.fori_loop(..., unroll=True) for LLO visibility).
    for t in range(n_sub):
        lane = pl.ds(t * LANE_TILE, LANE_TILE)   # static, 128-aligned offset
        for g in range(groups):
            base = g * 2 * gp

            # ---- fused logits:  qk + qr + kr  ---------------------------------
            #   logits[j,i,b] = sum_c  q[c,i,b]*(k[c,j,b] + q_emb[c,i,j])
            #                        + k[c,j,b]*k_emb[c,j,i]
            logits = None
            for c in range(gph):
                q_b = qkv_ref[base + c, :, lane][None, :, :]         # (1,  H_i, 128)
                k_b = qkv_ref[base + gph + c, :, lane][:, None, :]   # (H_j, 1,  128)
                term = q_b * (k_b + qe_ref[c]) + k_b * ke_ref[c]     # (H_j, H_i, 128)
                logits = term if logits is None else logits + term

            # ---- softmax over j (leading axis), reciprocal deferred -----------
            m = jnp.max(logits, axis=0, keepdims=True)               # (1, H_i, 128)
            e = jnp.exp(logits - m)                                  # (H_j, H_i, 128)
            inv = pl.reciprocal(jnp.sum(e, axis=0), approx=True)     # (H_i, 128)

            # ---- fused weighted sum  sv + sve, per-channel lane-dense store ---
            #   out[c,i,b] = (sum_j e[j,i,b]*(v[c,j,b] + v_emb[c,i,j])) * inv[i,b]
            for c in range(gp):
                v_b = qkv_ref[base + gp + c, :, lane][:, None, :]    # (H_j, 1, 128)
                ssum = jnp.sum(e * (v_b + ve_ref[c]), axis=0)        # (H_i, 128)
                o_ref[g * gp + c, :, lane] = (ssum * inv).astype(o_ref.dtype)


def polar_attention(x_nchw, w_qkv, q_emb, k_emb, v_emb, *, groups, block_b=LANE_TILE):
    """Pallas implementation of PolarAttention.forward (width=False, stride=1)."""
    N, C, H, W = x_nchw.shape
    OP2 = w_qkv.shape[0]
    OP = OP2 // 2
    gp = OP // groups
    gph = gp // 2

    assert block_b % LANE_TILE == 0, "batch tile must be a multiple of 128 lanes"
    Bblk = block_b

    # Pad x along W *before* the projection (half the channel count of qkv) so
    # that N*W_pad is a multiple of the batch tile.  Padded columns produce a
    # uniform softmax (finite) and are sliced off below.
    step = Bblk // math.gcd(N, Bblk)
    W_pad = ((W + step - 1) // step) * step
    if W_pad != W:
        x_nchw = jnp.pad(x_nchw, ((0, 0), (0, 0), (0, 0), (0, W_pad - W)))
    B_pad = N * W_pad
    n_blk = B_pad // Bblk

    # 1x1 qkv conv hoisted to XLA: one (2*OP, C) @ (C, H*B) GEMM, produced
    # directly in the kernel's batch-on-lanes layout (2*OP, H, B) with
    # b = n*W_pad + w matching x.permute(0,3,1,2).view(N*W, C, H).
    qkv = jnp.einsum('oc,nchw->ohnw', w_qkv, x_nchw,
                     preferred_element_type=jnp.float32)
    qkv = qkv.reshape(OP2, H, B_pad)

    # Grid-invariant relative embeddings, pre-laid-out once on the XLA side in
    # the exact (j-leading, i-sublane, lane-broadcast) form the kernel consumes.
    qe_b = jnp.broadcast_to(jnp.transpose(q_emb, (0, 2, 1))[..., None],
                            (gph, H, H, LANE_TILE)).astype(jnp.float32)
    ke_b = jnp.broadcast_to(k_emb[..., None],
                            (gph, H, H, LANE_TILE)).astype(jnp.float32)
    ve_b = jnp.broadcast_to(jnp.transpose(v_emb, (0, 2, 1))[..., None],
                            (gp, H, H, LANE_TILE)).astype(jnp.float32)

    kernel = functools.partial(_polar_attn_kernel, groups=groups, gp=gp, bblk=Bblk)

    out = pl.pallas_call(
        kernel,
        out_shape=jax.ShapeDtypeStruct((OP, H, B_pad), jnp.float32),
        grid_spec=pltpu.PrefetchScalarGridSpec(
            num_scalar_prefetch=0,
            grid=(n_blk,),
            in_specs=[
                pl.BlockSpec((OP2, H, Bblk), lambda i: (0, 0, i)),
                pl.BlockSpec((gph, H, H, LANE_TILE), lambda i: (0, 0, 0, 0)),
                pl.BlockSpec((gph, H, H, LANE_TILE), lambda i: (0, 0, 0, 0)),
                pl.BlockSpec((gp, H, H, LANE_TILE), lambda i: (0, 0, 0, 0)),
            ],
            out_specs=pl.BlockSpec((OP, H, Bblk), lambda i: (0, 0, i)),
        ),
        compiler_params=pltpu.CompilerParams(
            dimension_semantics=("parallel",),
            # generous for these tiles on every generation (v7x: 64 MiB physical)
            vmem_limit_bytes=32 * 1024 * 1024),
    )(qkv, qe_b, ke_b, ve_b)

    # (OP, H, B_pad) -> (N, OP, H, W)   (b = n*W_pad + w)
    out = out.reshape(OP, H, N, W_pad)[:, :, :, :W]
    return jnp.transpose(out, (2, 0, 1, 3))


def polar_attention_ref(x_nchw, w_qkv, q_emb, k_emb, v_emb, *, groups):
    """Pure-JAX reference mirroring the PyTorch forward (width=False, stride=1)."""
    N, C, H, W = x_nchw.shape
    OP = w_qkv.shape[0] // 2
    gp = OP // groups
    xb = jnp.transpose(x_nchw, (0, 3, 1, 2)).reshape(N * W, C, H)
    qkv = jnp.einsum('oc,bch->boh', w_qkv, xb)
    qkv = qkv.reshape(N * W, groups, 2 * gp, H)
    q, k, v = qkv[:, :, :gp // 2], qkv[:, :, gp // 2:gp], qkv[:, :, gp:]
    qr = jnp.einsum('bgci,cij->bgij', q, q_emb)
    kr = jnp.einsum('bgci,cij->bgij', k, k_emb).transpose(0, 1, 3, 2)
    qk = jnp.einsum('bgci,bgcj->bgij', q, k)
    sim = jax.nn.softmax(qk + qr + kr, axis=3)
    sv = jnp.einsum('bgij,bgcj->bgci', sim, v)
    sve = jnp.einsum('bgij,cij->bgci', sim, v_emb)
    out = (sv + sve).reshape(N, W, OP, H)
    return jnp.transpose(out, (0, 2, 3, 1))


if __name__ == "__main__":
    # Small deterministic config consistent with the module's constraints.
    # B = N*W = 512 -> 4 "parallel" grid steps at the 128-lane block (>=2/TC on v7x).
    N, in_planes, out_planes, groups = 2, 8, 8, 2
    kernel_size = 16          # attention length H (must equal spatial H)
    H, W = kernel_size, 256
    gp = out_planes // groups  # group_planes

    key = jax.random.PRNGKey(0)
    kx, kw, kr = jax.random.split(key, 3)

    x = jax.random.normal(kx, (N, in_planes, H, W), jnp.float32)

    # qkv_transform: Conv1d(in_planes, out_planes*2, 1, bias=False), w ~ N(0, 1/in_planes)
    w_qkv = jax.random.normal(kw, (2 * out_planes, in_planes), jnp.float32) \
        * math.sqrt(1.0 / in_planes)

    # relative ~ N(0, 1/group_planes), shape (2*group_planes, 2*kernel_size - 1)
    relative = jax.random.normal(kr, (2 * gp, 2 * kernel_size - 1), jnp.float32) \
        * math.sqrt(1.0 / gp)

    # flatten_index / index_select -> all_embeddings (2*gp, H, H), then split.
    query_index = jnp.arange(kernel_size)[None, :]
    key_index = jnp.arange(kernel_size)[:, None]
    relative_index = (key_index - query_index + kernel_size - 1).reshape(-1)
    all_emb = relative[:, relative_index].reshape(2 * gp, kernel_size, kernel_size)
    q_emb = all_emb[: gp // 2]
    k_emb = all_emb[gp // 2: gp]
    v_emb = all_emb[gp:]

    out = polar_attention(x, w_qkv, q_emb, k_emb, v_emb, groups=groups,
                          block_b=128)
    out = jax.block_until_ready(out)

    ref = polar_attention_ref(x, w_qkv, q_emb, k_emb, v_emb, groups=groups)
    assert out.shape == (N, out_planes, H, W), out.shape
    # tolerance relaxed from 1e-4: softmax uses the EUP approx reciprocal.
    assert jnp.allclose(out, ref, atol=5e-3, rtol=5e-3), \
        float(jnp.max(jnp.abs(out - ref)))

    print("KERNEL_OK")
</pallas_src>

<mosaic_0001>
module attributes {stable_mosaic.version = 11 : i64} {
  func.func @_polar_attn_kernel(%arg0: i32, %arg1: memref<16x16x128xf32, #tpu.memory_space<vmem>>, %arg2: memref<2x16x16x128xf32, #tpu.memory_space<vmem>>, %arg3: memref<2x16x16x128xf32, #tpu.memory_space<vmem>>, %arg4: memref<4x16x16x128xf32, #tpu.memory_space<vmem>>, %arg5: memref<8x16x128xf32, #tpu.memory_space<vmem>>) attributes {dimension_semantics = [#tpu.dimension_semantics<parallel>], iteration_bounds = array<i64: 4>, scalar_prefetch = 0 : i64, scratch_operands = 0 : i64, tpu.core_type = #tpu.core_type<tc>, window_params = [{transform_indices = @transform_0, window_bounds = array<i64: 16, 16, 128>}, {pipeline_mode = #tpu.pipeline_mode<synchronous>, transform_indices = @transform_1, window_bounds = array<i64: 2, 16, 16, 128>}, {pipeline_mode = #tpu.pipeline_mode<synchronous>, transform_indices = @transform_2, window_bounds = array<i64: 2, 16, 16, 128>}, {pipeline_mode = #tpu.pipeline_mode<synchronous>, transform_indices = @transform_3, window_bounds = array<i64: 4, 16, 16, 128>}, {transform_indices = @transform_4, window_bounds = array<i64: 8, 16, 128>}]} {
    %c0 = arith.constant 0 : index
    %c0_0 = arith.constant 0 : index
    %c0_1 = arith.constant 0 : index
    %0 = vector.load %arg1[%c0, %c0_0, %c0_1] : memref<16x16x128xf32, #tpu.memory_space<vmem>>, vector<1x16x128xf32>
    %1 = vector.shape_cast %0 : vector<1x16x128xf32> to vector<16x128xf32>
    %2 = vector.shape_cast %1 : vector<16x128xf32> to vector<1x16x128xf32>
    %c2 = arith.constant 2 : index
    %c0_2 = arith.constant 0 : index
    %c0_3 = arith.constant 0 : index
    %3 = vector.load %arg1[%c2, %c0_2, %c0_3] : memref<16x16x128xf32, #tpu.memory_space<vmem>>, vector<1x16x128xf32>
    %4 = vector.shape_cast %3 : vector<1x16x128xf32> to vector<16x128xf32>
    %5 = vector.shape_cast %4 : vector<16x128xf32> to vector<16x1x128xf32>
    %c0_4 = arith.constant 0 : index
    %c0_5 = arith.constant 0 : index
    %c0_6 = arith.constant 0 : index
    %c0_7 = arith.constant 0 : index
    %6 = vector.load %arg2[%c0_4, %c0_5, %c0_6, %c0_7] : memref<2x16x16x128xf32, #tpu.memory_space<vmem>>, vector<1x16x16x128xf32>
    %7 = vector.shape_cast %6 : vector<1x16x16x128xf32> to vector<16x16x128xf32>
    %8 = vector.broadcast %5 : vector<16x1x128xf32> to vector<16x16x128xf32>
    %9 = arith.addf %8, %7 : vector<16x16x128xf32>
    %10 = vector.broadcast %2 : vector<1x16x128xf32> to vector<16x16x128xf32>
    %11 = arith.mulf %10, %9 : vector<16x16x128xf32>
    %c0_8 = arith.constant 0 : index
    %c0_9 = arith.constant 0 : index
    %c0_10 = arith.constant 0 : index
    %c0_11 = arith.constant 0 : index
    %12 = vector.load %arg3[%c0_8, %c0_9, %c0_10, %c0_11] : memref<2x16x16x128xf32, #tpu.memory_space<vmem>>, vector<1x16x16x128xf32>
    %13 = vector.shape_cast %12 : vector<1x16x16x128xf32> to vector<16x16x128xf32>
    %14 = vector.broadcast %5 : vector<16x1x128xf32> to vector<16x16x128xf32>
    %15 = arith.mulf %14, %13 : vector<16x16x128xf32>
    %16 = arith.addf %11, %15 : vector<16x16x128xf32>
    %c1 = arith.constant 1 : index
    %c0_12 = arith.constant 0 : index
    %c0_13 = arith.constant 0 : index
    %17 = vector.load %arg1[%c1, %c0_12, %c0_13] : memref<16x16x128xf32, #tpu.memory_space<vmem>>, vector<1x16x128xf32>
    %18 = vector.shape_cast %17 : vector<1x16x128xf32> to vector<16x128xf32>
    %19 = vector.shape_cast %18 : vector<16x128xf32> to vector<1x16x128xf32>
    %c3 = arith.constant 3 : index
    %c0_14 = arith.constant 0 : index
    %c0_15 = arith.constant 0 : index
    %20 = vector.load %arg1[%c3, %c0_14, %c0_15] : memref<16x16x128xf32, #tpu.memory_space<vmem>>, vector<1x16x128xf32>
    %21 = vector.shape_cast %20 : vector<1x16x128xf32> to vector<16x128xf32>
    %22 = vector.shape_cast %21 : vector<16x128xf32> to vector<16x1x128xf32>
    %c1_16 = arith.constant 1 : index
    %c0_17 = arith.constant 0 : index
    %c0_18 = arith.constant 0 : index
    %c0_19 = arith.constant 0 : index
    %23 = vector.load %arg2[%c1_16, %c0_17, %c0_18, %c0_19] : memref<2x16x16x128xf32, #tpu.memory_space<vmem>>, vector<1x16x16x128xf32>
    %24 = vector.shape_cast %23 : vector<1x16x16x128xf32> to vector<16x16x128xf32>
    %25 = vector.broadcast %22 : vector<16x1x128xf32> to vector<16x16x128xf32>
    %26 = arith.addf %25, %24 : vector<16x16x128xf32>
    %27 = vector.broadcast %19 : vector<1x16x128xf32> to vector<16x16x128xf32>
    %28 = arith.mulf %27, %26 : vector<16x16x128xf32>
    %c1_20 = arith.constant 1 : index
    %c0_21 = arith.constant 0 : index
    %c0_22 = arith.constant 0 : index
    %c0_23 = arith.constant 0 : index
    %29 = vector.load %arg3[%c1_20, %c0_21, %c0_22, %c0_23] : memref<2x16x16x128xf32, #tpu.memory_space<vmem>>, vector<1x16x16x128xf32>
    %30 = vector.shape_cast %29 : vector<1x16x16x128xf32> to vector<16x16x128xf32>
    %31 = vector.broadcast %22 : vector<16x1x128xf32> to vector<16x16x128xf32>
    %32 = arith.mulf %31, %30 : vector<16x16x128xf32>
    %33 = arith.addf %28, %32 : vector<16x16x128xf32>
    %34 = arith.addf %16, %33 : vector<16x16x128xf32>
    %cst = arith.constant dense<0xFF800000> : vector<16x128xf32>
    %35 = vector.multi_reduction <maximumf>, %34, %cst [0] : vector<16x16x128xf32> to vector<16x128xf32>
    %36 = vector.shape_cast %35 : vector<16x128xf32> to vector<1x16x128xf32>
    %37 = vector.broadcast %36 : vector<1x16x128xf32> to vector<16x16x128xf32>
    %38 = arith.subf %34, %37 : vector<16x16x128xf32>
    %39 = math.exp %38 : vector<16x16x128xf32>
    %cst_24 = arith.constant dense<0.000000e+00> : vector<16x128xf32>
    %40 = vector.multi_reduction <add>, %39, %cst_24 [0] : vector<16x16x128xf32> to vector<16x128xf32>
    %41 = tpu.reciprocal %40 {approx = true} : vector<16x128xf32> -> vector<16x128xf32>
    %c4 = arith.constant 4 : index
    %c0_25 = arith.constant 0 : index
    %c0_26 = arith.constant 0 : index
    %42 = vector.load %arg1[%c4, %c0_25, %c0_26] : memref<16x16x128xf32, #tpu.memory_space<vmem>>, vector<1x16x128xf32>
    %43 = vector.shape_cast %42 : vector<1x16x128xf32> to vector<16x128xf32>
    %44 = vector.shape_cast %43 : vector<16x128xf32> to vector<16x1x128xf32>
    %c0_27 = arith.constant 0 : index
    %c0_28 = arith.constant 0 : index
    %c0_29 = arith.constant 0 : index
    %c0_30 = arith.constant 0 : index
    %45 = vector.load %arg4[%c0_27, %c0_28, %c0_29, %c0_30] : memref<4x16x16x128xf32, #tpu.memory_space<vmem>>, vector<1x16x16x128xf32>
    %46 = vector.shape_cast %45 : vector<1x16x16x128xf32> to vector<16x16x128xf32>
    %47 = vector.broadcast %44 : vector<16x1x128xf32> to vector<16x16x128xf32>
    %48 = arith.addf %47, %46 : vector<16x16x128xf32>
    %49 = arith.mulf %39, %48 : vector<16x16x128xf32>
    %cst_31 = arith.constant dense<0.000000e+00> : vector<16x128xf32>
    %50 = vector.multi_reduction <add>, %49, %cst_31 [0] : vector<16x16x128xf32> to vector<16x128xf32>
    %51 = arith.mulf %50, %41 : vector<16x128xf32>
    %c0_32 = arith.constant 0 : index
    %c0_33 = arith.constant 0 : index
    %c0_34 = arith.constant 0 : index
    %52 = vector.load %arg5[%c0_32, %c0_33, %c0_34] : memref<8x16x128xf32, #tpu.memory_space<vmem>>, vector<1x16x128xf32>
    %53 = vector.shape_cast %52 : vector<1x16x128xf32> to vector<16x128xf32>
    %54 = vector.shape_cast %51 : vector<16x128xf32> to vector<1x16x128xf32>
    tpu.vector_store %arg5[%c0_32, %c0_33, %c0_34], %54 {strides = array<i32>} : memref<8x16x128xf32, #tpu.memory_space<vmem>>, vector<1x16x128xf32>,
    %c5 = arith.constant 5 : index
    %c0_35 = arith.constant 0 : index
    %c0_36 = arith.constant 0 : index
    %55 = vector.load %arg1[%c5, %c0_35, %c0_36] : memref<16x16x128xf32, #tpu.memory_space<vmem>>, vector<1x16x128xf32>
    %56 = vector.shape_cast %55 : vector<1x16x128xf32> to vector<16x128xf32>
    %57 = vector.shape_cast %56 : vector<16x128xf32> to vector<16x1x128xf32>
    %c1_37 = arith.constant 1 : index
    %c0_38 = arith.constant 0 : index
    %c0_39 = arith.constant 0 : index
    %c0_40 = arith.constant 0 : index
    %58 = vector.load %arg4[%c1_37, %c0_38, %c0_39, %c0_40] : memref<4x16x16x128xf32, #tpu.memory_space<vmem>>, vector<1x16x16x128xf32>
    %59 = vector.shape_cast %58 : vector<1x16x16x128xf32> to vector<16x16x128xf32>
    %60 = vector.broadcast %57 : vector<16x1x128xf32> to vector<16x16x128xf32>
    %61 = arith.addf %60, %59 : vector<16x16x128xf32>
    %62 = arith.mulf %39, %61 : vector<16x16x128xf32>
    %cst_41 = arith.constant dense<0.000000e+00> : vector<16x128xf32>
    %63 = vector.multi_reduction <add>, %62, %cst_41 [0] : vector<16x16x128xf32> to vector<16x128xf32>
    %64 = arith.mulf %63, %41 : vector<16x128xf32>
    %c1_42 = arith.constant 1 : index
    %c0_43 = arith.constant 0 : index
    %c0_44 = arith.constant 0 : index
    %65 = vector.load %arg5[%c1_42, %c0_43, %c0_44] : memref<8x16x128xf32, #tpu.memory_space<vmem>>, vector<1x16x128xf32>
    %66 = vector.shape_cast %65 : vector<1x16x128xf32> to vector<16x128xf32>
    %67 = vector.shape_cast %64 : vector<16x128xf32> to vector<1x16x128xf32>
    tpu.vector_store %arg5[%c1_42, %c0_43, %c0_44], %67 {strides = array<i32>} : memref<8x16x128xf32, #tpu.memory_space<vmem>>, vector<1x16x128xf32>,
    %c6 = arith.constant 6 : index
    %c0_45 = arith.constant 0 : index
    %c0_46 = arith.constant 0 : index
    %68 = vector.load %arg1[%c6, %c0_45, %c0_46] : memref<16x16x128xf32, #tpu.memory_space<vmem>>, vector<1x16x128xf32>
    %69 = vector.shape_cast %68 : vector<1x16x128xf32> to vector<16x128xf32>
    %70 = vector.shape_cast %69 : vector<16x128xf32> to vector<16x1x128xf32>
    %c2_47 = arith.constant 2 : index
    %c0_48 = arith.constant 0 : index
    %c0_49 = arith.constant 0 : index
    %c0_50 = arith.constant 0 : index
    %71 = vector.load %arg4[%c2_47, %c0_48, %c0_49, %c0_50] : memref<4x16x16x128xf32, #tpu.memory_space<vmem>>, vector<1x16x16x128xf32>
    %72 = vector.shape_cast %71 : vector<1x16x16x128xf32> to vector<16x16x128xf32>
    %73 = vector.broadcast %70 : vector<16x1x128xf32> to vector<16x16x128xf32>
    %74 = arith.addf %73, %72 : vector<16x16x128xf32>
    %75 = arith.mulf %39, %74 : vector<16x16x128xf32>
    %cst_51 = arith.constant dense<0.000000e+00> : vector<16x128xf32>
    %76 = vector.multi_reduction <add>, %75, %cst_51 [0] : vector<16x16x128xf32> to vector<16x128xf32>
    %77 = arith.mulf %76, %41 : vector<16x128xf32>
    %c2_52 = arith.constant 2 : index
    %c0_53 = arith.constant 0 : index
    %c0_54 = arith.constant 0 : index
    %78 = vector.load %arg5[%c2_52, %c0_53, %c0_54] : memref<8x16x128xf32, #tpu.memory_space<vmem>>, vector<1x16x128xf32>
    %79 = vector.shape_cast %78 : vector<1x16x128xf32> to vector<16x128xf32>
    %80 = vector.shape_cast %77 : vector<16x128xf32> to vector<1x16x128xf32>
    tpu.vector_store %arg5[%c2_52, %c0_53, %c0_54], %80 {strides = array<i32>} : memref<8x16x128xf32, #tpu.memory_space<vmem>>, vector<1x16x128xf32>,
    %c7 = arith.constant 7 : index
    %c0_55 = arith.constant 0 : index
    %c0_56 = arith.constant 0 : index
    %81 = vector.load %arg1[%c7, %c0_55, %c0_56] : memref<16x16x128xf32, #tpu.memory_space<vmem>>, vector<1x16x128xf32>
    %82 = vector.shape_cast %81 : vector<1x16x128xf32> to vector<16x128xf32>
    %83 = vector.shape_cast %82 : vector<16x128xf32> to vector<16x1x128xf32>
    %c3_57 = arith.constant 3 : index
    %c0_58 = arith.constant 0 : index
    %c0_59 = arith.constant 0 : index
    %c0_60 = arith.constant 0 : index
    %84 = vector.load %arg4[%c3_57, %c0_58, %c0_59, %c0_60] : memref<4x16x16x128xf32, #tpu.memory_space<vmem>>, vector<1x16x16x128xf32>
    %85 = vector.shape_cast %84 : vector<1x16x16x128xf32> to vector<16x16x128xf32>
    %86 = vector.broadcast %83 : vector<16x1x128xf32> to vector<16x16x128xf32>
    %87 = arith.addf %86, %85 : vector<16x16x128xf32>
    %88 = arith.mulf %39, %87 : vector<16x16x128xf32>
    %cst_61 = arith.constant dense<0.000000e+00> : vector<16x128xf32>
    %89 = vector.multi_reduction <add>, %88, %cst_61 [0] : vector<16x16x128xf32> to vector<16x128xf32>
    %90 = arith.mulf %89, %41 : vector<16x128xf32>
    %c3_62 = arith.constant 3 : index
    %c0_63 = arith.constant 0 : index
    %c0_64 = arith.constant 0 : index
    %91 = vector.load %arg5[%c3_62, %c0_63, %c0_64] : memref<8x16x128xf32, #tpu.memory_space<vmem>>, vector<1x16x128xf32>
    %92 = vector.shape_cast %91 : vector<1x16x128xf32> to vector<16x128xf32>
    %93 = vector.shape_cast %90 : vector<16x128xf32> to vector<1x16x128xf32>
    tpu.vector_store %arg5[%c3_62, %c0_63, %c0_64], %93 {strides = array<i32>} : memref<8x16x128xf32, #tpu.memory_space<vmem>>, vector<1x16x128xf32>,
    %c8 = arith.constant 8 : index
    %c0_65 = arith.constant 0 : index
    %c0_66 = arith.constant 0 : index
    %94 = vector.load %arg1[%c8, %c0_65, %c0_66] : memref<16x16x128xf32, #tpu.memory_space<vmem>>, vector<1x16x128xf32>
    %95 = vector.shape_cast %94 : vector<1x16x128xf32> to vector<16x128xf32>
    %96 = vector.shape_cast %95 : vector<16x128xf32> to vector<1x16x128xf32>
    %c10 = arith.constant 10 : index
    %c0_67 = arith.constant 0 : index
    %c0_68 = arith.constant 0 : index
    %97 = vector.load %arg1[%c10, %c0_67, %c0_68] : memref<16x16x128xf32, #tpu.memory_space<vmem>>, vector<1x16x128xf32>
    %98 = vector.shape_cast %97 : vector<1x16x128xf32> to vector<16x128xf32>
    %99 = vector.shape_cast %98 : vector<16x128xf32> to vector<16x1x128xf32>
    %c0_69 = arith.constant 0 : index
    %c0_70 = arith.constant 0 : index
    %c0_71 = arith.constant 0 : index
    %c0_72 = arith.constant 0 : index
    %100 = vector.load %arg2[%c0_69, %c0_70, %c0_71, %c0_72] : memref<2x16x16x128xf32, #tpu.memory_space<vmem>>, vector<1x16x16x128xf32>
    %101 = vector.shape_cast %100 : vector<1x16x16x128xf32> to vector<16x16x128xf32>
    %102 = vector.broadcast %99 : vector<16x1x128xf32> to vector<16x16x128xf32>
    %103 = arith.addf %102, %101 : vector<16x16x128xf32>
    %104 = vector.broadcast %96 : vector<1x16x128xf32> to vector<16x16x128xf32>
    %105 = arith.mulf %104, %103 : vector<16x16x128xf32>
    %c0_73 = arith.constant 0 : index
    %c0_74 = arith.constant 0 : index
    %c0_75 = arith.constant 0 : index
    %c0_76 = arith.constant 0 : index
    %106 = vector.load %arg3[%c0_73, %c0_74, %c0_75, %c0_76] : memref<2x16x16x128xf32, #tpu.memory_space<vmem>>, vector<1x16x16x128xf32>
    %107 = vector.shape_cast %106 : vector<1x16x16x128xf32> to vector<16x16x128xf32>
    %108 = vector.broadcast %99 : vector<16x1x128xf32> to vector<16x16x128xf32>
    %109 = arith.mulf %108, %107 : vector<16x16x128xf32>
    %110 = arith.addf %105, %109 : vector<16x16x128xf32>
    %c9 = arith.constant 9 : index
    %c0_77 = arith.constant 0 : index
    %c0_78 = arith.constant 0 : index
    %111 = vector.load %arg1[%c9, %c0_77, %c0_78] : memref<16x16x128xf32, #tpu.memory_space<vmem>>, vector<1x16x128xf32>
    %112 = vector.shape_cast %111 : vector<1x16x128xf32> to vector<16x128xf32>
    %113 = vector.shape_cast %112 : vector<16x128xf32> to vector<1x16x128xf32>
    %c11 = arith.constant 11 : index
    %c0_79 = arith.constant 0 : index
    %c0_80 = arith.constant 0 : index
    %114 = vector.load %arg1[%c11, %c0_79, %c0_80] : memref<16x16x128xf32, #tpu.memory_space<vmem>>, vector<1x16x128xf32>
    %115 = vector.shape_cast %114 : vector<1x16x128xf32> to vector<16x128xf32>
    %116 = vector.shape_cast %115 : vector<16x128xf32> to vector<16x1x128xf32>
    %c1_81 = arith.constant 1 : index
    %c0_82 = arith.constant 0 : index
    %c0_83 = arith.constant 0 : index
    %c0_84 = arith.constant 0 : index
    %117 = vector.load %arg2[%c1_81, %c0_82, %c0_83, %c0_84] : memref<2x16x16x128xf32, #tpu.memory_space<vmem>>, vector<1x16x16x128xf32>
    %118 = vector.shape_cast %117 : vector<1x16x16x128xf32> to vector<16x16x128xf32>
    %119 = vector.broadcast %116 : vector<16x1x128xf32> to vector<16x16x128xf32>
    %120 = arith.addf %119, %118 : vector<16x16x128xf32>
    %121 = vector.broadcast %113 : vector<1x16x128xf32> to vector<16x16x128xf32>
    %122 = arith.mulf %121, %120 : vector<16x16x128xf32>
    %c1_85 = arith.constant 1 : index
    %c0_86 = arith.constant 0 : index
    %c0_87 = arith.constant 0 : index
    %c0_88 = arith.constant 0 : index
    %123 = vector.load %arg3[%c1_85, %c0_86, %c0_87, %c0_88] : memref<2x16x16x128xf32, #tpu.memory_space<vmem>>, vector<1x16x16x128xf32>
    %124 = vector.shape_cast %123 : vector<1x16x16x128xf32> to vector<16x16x128xf32>
    %125 = vector.broadcast %116 : vector<16x1x128xf32> to vector<16x16x128xf32>
    %126 = arith.mulf %125, %124 : vector<16x16x128xf32>
    %127 = arith.addf %122, %126 : vector<16x16x128xf32>
    %128 = arith.addf %110, %127 : vector<16x16x128xf32>
    %cst_89 = arith.constant dense<0xFF800000> : vector<16x128xf32>
    %129 = vector.multi_reduction <maximumf>, %128, %cst_89 [0] : vector<16x16x128xf32> to vector<16x128xf32>
    %130 = vector.shape_cast %129 : vector<16x128xf32> to vector<1x16x128xf32>
    %131 = vector.broadcast %130 : vector<1x16x128xf32> to vector<16x16x128xf32>
    %132 = arith.subf %128, %131 : vector<16x16x128xf32>
    %133 = math.exp %132 : vector<16x16x128xf32>
    %cst_90 = arith.constant dense<0.000000e+00> : vector<16x128xf32>
    %134 = vector.multi_reduction <add>, %133, %cst_90 [0] : vector<16x16x128xf32> to vector<16x128xf32>
    %135 = tpu.reciprocal %134 {approx = true} : vector<16x128xf32> -> vector<16x128xf32>
    %c12 = arith.constant 12 : index
    %c0_91 = arith.constant 0 : index
    %c0_92 = arith.constant 0 : index
    %136 = vector.load %arg1[%c12, %c0_91, %c0_92] : memref<16x16x128xf32, #tpu.memory_space<vmem>>, vector<1x16x128xf32>
    %137 = vector.shape_cast %136 : vector<1x16x128xf32> to vector<16x128xf32>
    %138 = vector.shape_cast %137 : vector<16x128xf32> to vector<16x1x128xf32>
    %c0_93 = arith.constant 0 : index
    %c0_94 = arith.constant 0 : index
    %c0_95 = arith.constant 0 : index
    %c0_96 = arith.constant 0 : index
    %139 = vector.load %arg4[%c0_93, %c0_94, %c0_95, %c0_96] : memref<4x16x16x128xf32, #tpu.memory_space<vmem>>, vector<1x16x16x128xf32>
    %140 = vector.shape_cast %139 : vector<1x16x16x128xf32> to vector<16x16x128xf32>
    %141 = vector.broadcast %138 : vector<16x1x128xf32> to vector<16x16x128xf32>
    %142 = arith.addf %141, %140 : vector<16x16x128xf32>
    %143 = arith.mulf %133, %142 : vector<16x16x128xf32>
    %cst_97 = arith.constant dense<0.000000e+00> : vector<16x128xf32>
    %144 = vector.multi_reduction <add>, %143, %cst_97 [0] : vector<16x16x128xf32> to vector<16x128xf32>
    %145 = arith.mulf %144, %135 : vector<16x128xf32>
    %c4_98 = arith.constant 4 : index
    %c0_99 = arith.constant 0 : index
    %c0_100 = arith.constant 0 : index
    %146 = vector.load %arg5[%c4_98, %c0_99, %c0_100] : memref<8x16x128xf32, #tpu.memory_space<vmem>>, vector<1x16x128xf32>
    %147 = vector.shape_cast %146 : vector<1x16x128xf32> to vector<16x128xf32>
    %148 = vector.shape_cast %145 : vector<16x128xf32> to vector<1x16x128xf32>
    tpu.vector_store %arg5[%c4_98, %c0_99, %c0_100], %148 {strides = array<i32>} : memref<8x16x128xf32, #tpu.memory_space<vmem>>, vector<1x16x128xf32>,
    %c13 = arith.constant 13 : index
    %c0_101 = arith.constant 0 : index
    %c0_102 = arith.constant 0 : index
    %149 = vector.load %arg1[%c13, %c0_101, %c0_102] : memref<16x16x128xf32, #tpu.memory_space<vmem>>, vector<1x16x128xf32>
    %150 = vector.shape_cast %149 : vector<1x16x128xf32> to vector<16x128xf32>
    %151 = vector.shape_cast %150 : vector<16x128xf32> to vector<16x1x128xf32>
    %c1_103 = arith.constant 1 : index
    %c0_104 = arith.constant 0 : index
    %c0_105 = arith.constant 0 : index
    %c0_106 = arith.constant 0 : index
    %152 = vector.load %arg4[%c1_103, %c0_104, %c0_105, %c0_106] : memref<4x16x16x128xf32, #tpu.memory_space<vmem>>, vector<1x16x16x128xf32>
    %153 = vector.shape_cast %152 : vector<1x16x16x128xf32> to vector<16x16x128xf32>
    %154 = vector.broadcast %151 : vector<16x1x128xf32> to vector<16x16x128xf32>
    %155 = arith.addf %154, %153 : vector<16x16x128xf32>
    %156 = arith.mulf %133, %155 : vector<16x16x128xf32>
    %cst_107 = arith.constant dense<0.000000e+00> : vector<16x128xf32>
    %157 = vector.multi_reduction <add>, %156, %cst_107 [0] : vector<16x16x128xf32> to vector<16x128xf32>
    %158 = arith.mulf %157, %135 : vector<16x128xf32>
    %c5_108 = arith.constant 5 : index
    %c0_109 = arith.constant 0 : index
    %c0_110 = arith.constant 0 : index
    %159 = vector.load %arg5[%c5_108, %c0_109, %c0_110] : memref<8x16x128xf32, #tpu.memory_space<vmem>>, vector<1x16x128xf32>
    %160 = vector.shape_cast %159 : vector<1x16x128xf32> to vector<16x128xf32>
    %161 = vector.shape_cast %158 : vector<16x128xf32> to vector<1x16x128xf32>
    tpu.vector_store %arg5[%c5_108, %c0_109, %c0_110], %161 {strides = array<i32>} : memref<8x16x128xf32, #tpu.memory_space<vmem>>, vector<1x16x128xf32>,
    %c14 = arith.constant 14 : index
    %c0_111 = arith.constant 0 : index
    %c0_112 = arith.constant 0 : index
    %162 = vector.load %arg1[%c14, %c0_111, %c0_112] : memref<16x16x128xf32, #tpu.memory_space<vmem>>, vector<1x16x128xf32>
    %163 = vector.shape_cast %162 : vector<1x16x128xf32> to vector<16x128xf32>
    %164 = vector.shape_cast %163 : vector<16x128xf32> to vector<16x1x128xf32>
    %c2_113 = arith.constant 2 : index
    %c0_114 = arith.constant 0 : index
    %c0_115 = arith.constant 0 : index
    %c0_116 = arith.constant 0 : index
    %165 = vector.load %arg4[%c2_113, %c0_114, %c0_115, %c0_116] : memref<4x16x16x128xf32, #tpu.memory_space<vmem>>, vector<1x16x16x128xf32>
    %166 = vector.shape_cast %165 : vector<1x16x16x128xf32> to vector<16x16x128xf32>
    %167 = vector.broadcast %164 : vector<16x1x128xf32> to vector<16x16x128xf32>
    %168 = arith.addf %167, %166 : vector<16x16x128xf32>
    %169 = arith.mulf %133, %168 : vector<16x16x128xf32>
    %cst_117 = arith.constant dense<0.000000e+00> : vector<16x128xf32>
    %170 = vector.multi_reduction <add>, %169, %cst_117 [0] : vector<16x16x128xf32> to vector<16x128xf32>
    %171 = arith.mulf %170, %135 : vector<16x128xf32>
    %c6_118 = arith.constant 6 : index
    %c0_119 = arith.constant 0 : index
    %c0_120 = arith.constant 0 : index
    %172 = vector.load %arg5[%c6_118, %c0_119, %c0_120] : memref<8x16x128xf32, #tpu.memory_space<vmem>>, vector<1x16x128xf32>
    %173 = vector.shape_cast %172 : vector<1x16x128xf32> to vector<16x128xf32>
    %174 = vector.shape_cast %171 : vector<16x128xf32> to vector<1x16x128xf32>
    tpu.vector_store %arg5[%c6_118, %c0_119, %c0_120], %174 {strides = array<i32>} : memref<8x16x128xf32, #tpu.memory_space<vmem>>, vector<1x16x128xf32>,
    %c15 = arith.constant 15 : index
    %c0_121 = arith.constant 0 : index
    %c0_122 = arith.constant 0 : index
    %175 = vector.load %arg1[%c15, %c0_121, %c0_122] : memref<16x16x128xf32, #tpu.memory_space<vmem>>, vector<1x16x128xf32>
    %176 = vector.shape_cast %175 : vector<1x16x128xf32> to vector<16x128xf32>
    %177 = vector.shape_cast %176 : vector<16x128xf32> to vector<16x1x128xf32>
    %c3_123 = arith.constant 3 : index
    %c0_124 = arith.constant 0 : index
    %c0_125 = arith.constant 0 : index
    %c0_126 = arith.constant 0 : index
    %178 = vector.load %arg4[%c3_123, %c0_124, %c0_125, %c0_126] : memref<4x16x16x128xf32, #tpu.memory_space<vmem>>, vector<1x16x16x128xf32>
    %179 = vector.shape_cast %178 : vector<1x16x16x128xf32> to vector<16x16x128xf32>
    %180 = vector.broadcast %177 : vector<16x1x128xf32> to vector<16x16x128xf32>
    %181 = arith.addf %180, %179 : vector<16x16x128xf32>
    %182 = arith.mulf %133, %181 : vector<16x16x128xf32>
    %cst_127 = arith.constant dense<0.000000e+00> : vector<16x128xf32>
    %183 = vector.multi_reduction <add>, %182, %cst_127 [0] : vector<16x16x128xf32> to vector<16x128xf32>
    %184 = arith.mulf %183, %135 : vector<16x128xf32>
    %c7_128 = arith.constant 7 : index
    %c0_129 = arith.constant 0 : index
    %c0_130 = arith.constant 0 : index
    %185 = vector.load %arg5[%c7_128, %c0_129, %c0_130] : memref<8x16x128xf32, #tpu.memory_space<vmem>>, vector<1x16x128xf32>
    %186 = vector.shape_cast %185 : vector<1x16x128xf32> to vector<16x128xf32>
    %187 = vector.shape_cast %184 : vector<16x128xf32> to vector<1x16x128xf32>
    tpu.vector_store %arg5[%c7_128, %c0_129, %c0_130], %187 {strides = array<i32>} : memref<8x16x128xf32, #tpu.memory_space<vmem>>, vector<1x16x128xf32>,
    return
  }
  func.func @transform_0(%arg0: i32) -> (i32, i32, i32) {
    %c0_i32 = arith.constant 0 : i32
    %c0_i32_0 = arith.constant 0 : i32
    %c0_i32_1 = arith.constant 0 : i32
    return %c0_i32, %c0_i32_0, %arg0 : i32, i32, i32
  }
  func.func @transform_1(%arg0: i32) -> (i32, i32, i32, i32) {
    %c0_i32 = arith.constant 0 : i32
    %c0_i32_0 = arith.constant 0 : i32
    %c0_i32_1 = arith.constant 0 : i32
    %c0_i32_2 = arith.constant 0 : i32
    %c0_i32_3 = arith.constant 0 : i32
    return %c0_i32, %c0_i32_0, %c0_i32_1, %c0_i32_2 : i32, i32, i32, i32
  }
  func.func @transform_2(%arg0: i32) -> (i32, i32, i32, i32) {
    %c0_i32 = arith.constant 0 : i32
    %c0_i32_0 = arith.constant 0 : i32
    %c0_i32_1 = arith.constant 0 : i32
    %c0_i32_2 = arith.constant 0 : i32
    %c0_i32_3 = arith.constant 0 : i32
    return %c0_i32, %c0_i32_0, %c0_i32_1, %c0_i32_2 : i32, i32, i32, i32
  }
  func.func @transform_3(%arg0: i32) -> (i32, i32, i32, i32) {
    %c0_i32 = arith.constant 0 : i32
    %c0_i32_0 = arith.constant 0 : i32
    %c0_i32_1 = arith.constant 0 : i32
    %c0_i32_2 = arith.constant 0 : i32
    %c0_i32_3 = arith.constant 0 : i32
    return %c0_i32, %c0_i32_0, %c0_i32_1, %c0_i32_2 : i32, i32, i32, i32
  }
  func.func @transform_4(%arg0: i32) -> (i32, i32, i32) {
    %c0_i32 = arith.constant 0 : i32
    %c0_i32_0 = arith.constant 0 : i32
    %c0_i32_1 = arith.constant 0 : i32
    return %c0_i32, %c0_i32_0, %arg0 : i32, i32, i32
  }
}

</mosaic_0001>

<llo_original>
// kernel: tpu_custom_call.1
$region0: #{tpu_custom_call.1}
  #allocation0 [shape = 'u32[]', space=smem, size = 0x4, offset = 0x4, fixed_abs, tag = 'smem constant byte address 0x4 - core index']
  #allocation1 [shape = 'u32[144,128]{1,0:T(1,128)}', space=vmem, size = 0x12000, scoped, tag = 'internal scratch']
  %s0 = inlined_call_operand.hbm [shape: f32[16,16,512], index: 0, kind: input, shape index: {}]
  %s1 = inlined_call_operand.hbm [shape: f32[2,16,16,128], index: 1, kind: input, shape index: {}]
  %s2 = inlined_call_operand.hbm [shape: f32[2,16,16,128], index: 2, kind: input, shape index: {}]
  %s3 = inlined_call_operand.hbm [shape: f32[4,16,16,128], index: 3, kind: input, shape index: {}]
  %s4 = inlined_call_operand.hbm [shape: f32[8,16,512], index: 4, kind: output, shape index: {}]
  %s5 = sld [smem:[#allocation0]]
  $region65: #{tpu_custom_call.1} parent=0
    _
  %s7 = ssub.s32 1, %s5
  %s8 = scalar_select 0, %s7, %s5
  $region1: #{tpu_custom_call.1} parent=0
    #allocation2 [shape = 'u8[262144]{0}', space=vmem, size = 0x40000, scoped, tag = 'input window, operand 0']
    #allocation3 [shape = 's32[2]{0}', space=sflag, size = 0x8, scoped, tag = 'scoped memory for tpu_custom_call.1']
    #allocation4 [shape = 's32[2]{0}', space=sflag, size = 0x8, scoped, tag = 'scoped memory for tpu_custom_call.1']
    #allocation5 [shape = 'u8[262144]{0}', space=vmem, size = 0x40000, scoped, tag = 'input window, operand 1, single buffered']
    #allocation6 [shape = 's32[1]{0}', space=sflag, size = 0x4, scoped, tag = 'scoped memory for tpu_custom_call.1']
    #allocation7 [shape = 'u8[262144]{0}', space=vmem, size = 0x40000, scoped, tag = 'input window, operand 2, single buffered']
    #allocation8 [shape = 'u8[524288]{0}', space=vmem, size = 0x80000, scoped, tag = 'input window, operand 3, single buffered']
    #allocation9 [shape = 's32[1]{0}', space=sflag, size = 0x4, scoped, tag = 'scoped memory for tpu_custom_call.1']
    #allocation10 [shape = 'u8[131072]{0}', space=vmem, size = 0x20000, scoped, tag = 'output window, operand 0']
    %9 = vsyncpa [#allocation3], 0
    %s10 = scalar_lea.sflag [#allocation3], 1
    %11 = vsyncpa %s10, 0
    %12 = vsyncpa [#allocation6], 0
    %13 = vsyncpa [#allocation9], 0
    %14 = vsyncpa [#allocation4], 0
    %s15 = scalar_lea.sflag [#allocation4], 1
    %16 = vsyncpa %s15, 0
    loop: start=0, step=1, limit=6
    $region2: #{tpu_custom_call.1} parent=1 // loop_pre_header
      _
    $region3: #{tpu_custom_call.1} parent=1 // loop_header
      %s18 = sphi 0, %s22
      %p19 = scmp.ge.s32.totalorder %s18, 6
      %s28 = sphi 0, %s30
      %s31 = sphi 0, %s28
      %s32 = sphi 0, %s31
      %s48 = sphi 0, %s32
      %s52 = sphi 0, %s52
      %s54 = sphi 0, %s52
      %s55 = sphi 0, %s54
      %s69 = sphi 0, %s55
      %s73 = sphi 0, %s73
      %s75 = sphi 0, %s73
      %s76 = sphi 0, %s75
      %s90 = sphi 0, %s76
      %s94 = sphi 0, %s94
      %s96 = sphi 0, %s94
      %s97 = sphi 0, %s96
      %s111 = sphi 0, %s97
      %s117 = sphi 0, %s119
      %s120 = sphi 0, %s117
      %s121 = sphi 0, %s120
      %s137 = sphi 0, %s121
    $region4: #{tpu_custom_call.1} parent=1 // loop_header_branch
      %21 = sbr.rel (%p19) target = $region8
    $region5: #{tpu_custom_call.1} parent=1 // loop_body
      %s23 = ssub.s32 %s18, 1
      %s24 = ssub.s32 %s18, 2
      %s25 = sadd.s32 %s18, 1
      %s26 = ssub.s32 %s18, %s25
      %p27 = scmp.eq.s32.totalorder %s26, 0
      %s29 = sadd.s32 %s28, 1
      %s30 = scalar_select %p27, %s28, %s29
      %p33 = pneg %p27
      %p34 = scmp.eq.s32.totalorder %s18, 3
      %p35 = por %p33, %p34
      %p36 = scmp.ne.s32.totalorder %s28, %s31
      %p37 = scmp.eq.s32.totalorder %s18, 0
      %p38 = por %p36, %p37
      %p39 = scmp.ne.s32.totalorder %s28, %s31
      %p40 = scmp.eq.s32.totalorder %s23, 3
      %p41 = por %p39, %p40
      %p42 = scmp.ne.s32.totalorder %s31, %s32
      %p43 = scmp.eq.s32.totalorder %s23, 0
      %p44 = por %p42, %p43
      %p45 = scmp.ne.s32.totalorder %s31, %s32
      %p46 = scmp.eq.s32.totalorder %s24, 3
      %p47 = por %p45, %p46
      %p49 = scmp.ne.s32.totalorder %s32, %s48
      %p50 = scmp.eq.s32.totalorder %s24, 0
      %p51 = por %p49, %p50
      %s53 = sadd.s32 %s52, 1
      %p56 = scmp.eq.s32.totalorder %s18, 3
      %p57 = scmp.ne.s32.totalorder %s52, %s54
      %p58 = scmp.eq.s32.totalorder %s18, 0
      %p59 = por %p57, %p58
      %p60 = scmp.ne.s32.totalorder %s52, %s54
      %p61 = scmp.eq.s32.totalorder %s23, 3
      %p62 = por %p60, %p61
      %p63 = scmp.ne.s32.totalorder %s54, %s55
      %p64 = scmp.eq.s32.totalorder %s23, 0
      %p65 = por %p63, %p64
      %p66 = scmp.ne.s32.totalorder %s54, %s55
      %p67 = scmp.eq.s32.totalorder %s24, 3
      %p68 = por %p66, %p67
      %p70 = scmp.ne.s32.totalorder %s55, %s69
      %p71 = scmp.eq.s32.totalorder %s24, 0
      %p72 = por %p70, %p71
      %s74 = sadd.s32 %s73, 1
      %p77 = scmp.eq.s32.totalorder %s18, 3
      %p78 = scmp.ne.s32.totalorder %s73, %s75
      %p79 = scmp.eq.s32.totalorder %s18, 0
      %p80 = por %p78, %p79
      %p81 = scmp.ne.s32.totalorder %s73, %s75
      %p82 = scmp.eq.s32.totalorder %s23, 3
      %p83 = por %p81, %p82
      %p84 = scmp.ne.s32.totalorder %s75, %s76
      %p85 = scmp.eq.s32.totalorder %s23, 0
      %p86 = por %p84, %p85
      %p87 = scmp.ne.s32.totalorder %s75, %s76
      %p88 = scmp.eq.s32.totalorder %s24, 3
      %p89 = por %p87, %p88
      %p91 = scmp.ne.s32.totalorder %s76, %s90
      %p92 = scmp.eq.s32.totalorder %s24, 0
      %p93 = por %p91, %p92
      %s95 = sadd.s32 %s94, 1
      %p98 = scmp.eq.s32.totalorder %s18, 3
      %p99 = scmp.ne.s32.totalorder %s94, %s96
      %p100 = scmp.eq.s32.totalorder %s18, 0
      %p101 = por %p99, %p100
      %p102 = scmp.ne.s32.totalorder %s94, %s96
      %p103 = scmp.eq.s32.totalorder %s23, 3
      %p104 = por %p102, %p103
      %p105 = scmp.ne.s32.totalorder %s96, %s97
      %p106 = scmp.eq.s32.totalorder %s23, 0
      %p107 = por %p105, %p106
      %p108 = scmp.ne.s32.totalorder %s96, %s97
      %p109 = scmp.eq.s32.totalorder %s24, 3
      %p110 = por %p108, %p109
      %p112 = scmp.ne.s32.totalorder %s97, %s111
      %p113 = scmp.eq.s32.totalorder %s24, 0
      %p114 = por %p112, %p113
      %s115 = ssub.s32 %s18, %s25
      %p116 = scmp.eq.s32.totalorder %s115, 0
      %s118 = sadd.s32 %s117, 1
      %s119 = scalar_select %p116, %s117, %s118
      %p122 = pneg %p116
      %p123 = scmp.eq.s32.totalorder %s18, 3
      %p124 = por %p122, %p123
      %p125 = scmp.ne.s32.totalorder %s117, %s120
      %p126 = scmp.eq.s32.totalorder %s18, 0
      %p127 = por %p125, %p126
      %p128 = scmp.ne.s32.totalorder %s117, %s120
      %p129 = scmp.eq.s32.totalorder %s23, 3
      %p130 = por %p128, %p129
      %p131 = scmp.ne.s32.totalorder %s120, %s121
      %p132 = scmp.eq.s32.totalorder %s23, 0
      %p133 = por %p131, %p132
      %p134 = scmp.ne.s32.totalorder %s120, %s121
      %p135 = scmp.eq.s32.totalorder %s24, 3
      %p136 = por %p134, %p135
      %p138 = scmp.ne.s32.totalorder %s121, %s137
      %p139 = scmp.eq.s32.totalorder %s24, 0
      %p140 = por %p138, %p139
      %p141 = scmp.le.s32.totalorder 1, %s18
      %p142 = scmp.lt.s32.totalorder %s18, 5
      %p143 = pnand %p141, %p142
      %p144 = pneg %p143
      // Predicated region
      $region9: #{tpu_custom_call.1} parent=5 // pred_check
        _
      $region10: #{tpu_custom_call.1} parent=5 // pred_check_branch
        %146 = sbr.rel (%p143) target = $region12
      $region11: #{tpu_custom_call.1} parent=5 // pred_region
        %s147 = ssub.s32 %s18, 1
        // Predicated region
        $region13: #{tpu_custom_call.1} parent=11 // pred_check
          %p148 = pneg %p65
        $region14: #{tpu_custom_call.1} parent=11 // pred_check_branch
          %150 = sbr.rel (%p148) target = $region16
        $region15: #{tpu_custom_call.1} parent=11 // pred_region
          %s152 = ssub.s32 8192, 8192
          %153 = vsyncadd [#allocation6], %s152
          %s154 = sshll.u32 [#allocation5], 4
          %s155 = int_to_ptr.vmem [resolvable:$true] %s154
          %160 = dma.hbm_to_vmem [thread:$0]  %s1, 8192, %s155, [#allocation6], 128, 128, 8
        $region16: #{tpu_custom_call.1} parent=11 // pred_fallthru
          _
        // Predicated region
        $region17: #{tpu_custom_call.1} parent=11 // pred_check
          %p161 = pneg %p86
        $region18: #{tpu_custom_call.1} parent=11 // pred_check_branch
          %163 = sbr.rel (%p161) target = $region20
        $region19: #{tpu_custom_call.1} parent=11 // pred_region
          %s165 = ssub.s32 8192, 8192
          %166 = vsyncadd [#allocation6], %s165
          %s167 = sshll.u32 [#allocation7], 4
          %s168 = int_to_ptr.vmem [resolvable:$true] %s167
          %173 = dma.hbm_to_vmem [thread:$0]  %s2, 8192, %s168, [#allocation6], 128, 128, 8
        $region20: #{tpu_custom_call.1} parent=11 // pred_fallthru
          _
        // Predicated region
        $region21: #{tpu_custom_call.1} parent=11 // pred_check
          %p174 = pneg %p107
        $region22: #{tpu_custom_call.1} parent=11 // pred_check_branch
          %176 = sbr.rel (%p174) target = $region24
        $region23: #{tpu_custom_call.1} parent=11 // pred_region
          %s178 = ssub.s32 16384, 16384
          %179 = vsyncadd [#allocation9], %s178
          %s180 = sshll.u32 [#allocation8], 4
          %s181 = int_to_ptr.vmem [resolvable:$true] %s180
          %186 = dma.hbm_to_vmem [thread:$0]  %s3, 16384, %s181, [#allocation9], 128, 128, 8
        $region24: #{tpu_custom_call.1} parent=11 // pred_fallthru
          _
      $region12: #{tpu_custom_call.1} parent=5 // pred_fallthru
        _
      %p187 = scmp.lt.s32.totalorder %s18, 4
      // Predicated region
      $region25: #{tpu_custom_call.1} parent=5 // pred_check
        %p188 = pneg %p187
      $region26: #{tpu_custom_call.1} parent=5 // pred_check_branch
        %190 = sbr.rel (%p188) target = $region28
      $region27: #{tpu_custom_call.1} parent=5 // pred_region
        // Predicated region
        $region29: #{tpu_custom_call.1} parent=27 // pred_check
          %p191 = pneg %p38
        $region30: #{tpu_custom_call.1} parent=27 // pred_check_branch
          %193 = sbr.rel (%p191) target = $region32
        $region31: #{tpu_custom_call.1} parent=27 // pred_region
          %s194 = sand.u32 %s28, 1
          %s195 = scalar_lea.sflag [#allocation3], %s194
          %s196 = sand.u32 %s28, 1
          %s197 = smul.addr %s196, 256
          %s198 = scalar_lea.vmem [#allocation2], %s197
          %s200 = ssub.s32 4096, 4096
          %201 = vsyncadd %s195, %s200
          %s202 = smul.addr %s18, 128
          %s203 = scalar_lea.hbm %s0, %s202
          %s204 = sshll.u32 %s198, 4
          %s205 = int_to_ptr.vmem [resolvable:$true] %s204
          %210 = dma.hbm_to_vmem [thread:$0]  %s203, 4096, %s205, %s195, 512, 128, 8
        $region32: #{tpu_custom_call.1} parent=27 // pred_fallthru
          _
      $region28: #{tpu_custom_call.1} parent=5 // pred_fallthru
        _
      %p211 = scmp.le.s32.totalorder 1, %s18
      %p212 = scmp.lt.s32.totalorder %s18, 5
      %p213 = pnand %p211, %p212
      %p214 = pneg %p213
      // Predicated region
      $region33: #{tpu_custom_call.1} parent=5 // pred_check
        _
      $region34: #{tpu_custom_call.1} parent=5 // pred_check_branch
        %216 = sbr.rel (%p213) target = $region36
      $region35: #{tpu_custom_call.1} parent=5 // pred_region
        %s217 = ssub.s32 %s18, 1
        %s218 = sand.u32 %s31, 1
        %s219 = scalar_lea.sflag [#allocation3], %s218
        %s220 = sand.u32 %s31, 1
        %s221 = smul.addr %s220, 256
        %s222 = scalar_lea.vmem [#allocation2], %s221
        // Predicated region
        $region37: #{tpu_custom_call.1} parent=35 // pred_check
          %p223 = pneg %p44
        $region38: #{tpu_custom_call.1} parent=35 // pred_check_branch
          %225 = sbr.rel (%p223) target = $region40
        $region39: #{tpu_custom_call.1} parent=35 // pred_region
          %226 = dma.done %s219, 4096
        $region40: #{tpu_custom_call.1} parent=35 // pred_fallthru
          _
        // Predicated region
        $region41: #{tpu_custom_call.1} parent=35 // pred_check
          %p227 = pneg %p65
        $region42: #{tpu_custom_call.1} parent=35 // pred_check_branch
          %229 = sbr.rel (%p227) target = $region44
        $region43: #{tpu_custom_call.1} parent=35 // pred_region
          %230 = dma.done [#allocation6], 8192
        $region44: #{tpu_custom_call.1} parent=35 // pred_fallthru
          _
        // Predicated region
        $region45: #{tpu_custom_call.1} parent=35 // pred_check
          %p231 = pneg %p86
        $region46: #{tpu_custom_call.1} parent=35 // pred_check_branch
          %233 = sbr.rel (%p231) target = $region48
        $region47: #{tpu_custom_call.1} parent=35 // pred_region
          %234 = dma.done [#allocation6], 8192
        $region48: #{tpu_custom_call.1} parent=35 // pred_fallthru
          _
        // Predicated region
        $region49: #{tpu_custom_call.1} parent=35 // pred_check
          %p235 = pneg %p107
        $region50: #{tpu_custom_call.1} parent=35 // pred_check_branch
          %237 = sbr.rel (%p235) target = $region52
        $region51: #{tpu_custom_call.1} parent=35 // pred_region
          %238 = dma.done [#allocation9], 16384
        $region52: #{tpu_custom_call.1} parent=35 // pred_fallthru
          _
        %s239 = sand.u32 %s31, 1
        %s240 = scalar_lea.sflag [#allocation3], %s239
        %s241 = sand.u32 %s31, 1
        %s242 = smul.addr %s241, 256
        %s243 = scalar_lea.vmem [#allocation2], %s242
        %p244 = pneg %p44
        %p245 = pneg %p41
        %p246 = pneg %p65
        %p247 = pneg %p62
        %p248 = pneg %p86
        %p249 = pneg %p83
        %p250 = pneg %p107
        %p251 = pneg %p104
        %p252 = pneg %p133
        %p253 = pneg %p130
        %s254 = sand.u32 %s120, 1
        %s255 = scalar_lea.sflag [#allocation4], %s254
        %s256 = sand.u32 %s120, 1
        %s257 = smul.addr %s256, 128
        %s258 = scalar_lea.vmem [#allocation10], %s257
        %v259 = vld [vmem:[%s222] sm:$0xff]
        %v260 = vld [vmem:[%s222 + $0x8] sm:$0xff]
        %s261 = scalar_lea.vmem %s222, 32 [#allocation2]
        %v262 = vld [vmem:[%s261] sm:$0xff]
        %v263 = vld [vmem:[%s261 + $0x8] sm:$0xff]
        %v266 = vcombine.high %v262, %v262
        %v268 = vunpack.c.l.s4 1966171168
        %v269 = vunpack.c.0.s8 %v268
        %v270 = vlaneseq
        %v271 = vshrl.u32 %v270, 7
        %v272 = vsub.s32 %v269, %v271
        %v273 = vrot.slane %v262, %v272
        %v275 = vunpack.c.l.s4 1966171168
        %v276 = vunpack.c.0.s8 %v275
        %v277 = vlaneseq
        %v278 = vshrl.u32 %v277, 7
        %v279 = vsub.s32 %v276, %v278
        %v280 = vrot.slane %v266, %v279
        %v281 = vcombine.high %v273, %v273
        %v282 = vcombine.high %v280, %v280
        %v284 = vunpack.c.l.s4 1966171168
        %v285 = vunpack.c.0.s8 %v284
        %v286 = vlaneseq
        %v287 = vshrl.u32 %v286, 7
        %v288 = vsub.s32 %v285, %v287
        %v289 = vrot.slane %v273, %v288
        %v291 = vunpack.c.l.s4 1966171168
        %v292 = vunpack.c.0.s8 %v291
        %v293 = vlaneseq
        %v294 = vshrl.u32 %v293, 7
        %v295 = vsub.s32 %v292, %v294
        %v296 = vrot.slane %v280, %v295
        %v298 = vunpack.c.l.s4 1966171168
        %v299 = vunpack.c.0.s8 %v298
        %v300 = vlaneseq
        %v301 = vshrl.u32 %v300, 7
        %v302 = vsub.s32 %v299, %v301
        %v303 = vrot.slane %v281, %v302
        %v305 = vunpack.c.l.s4 1966171168
        %v306 = vunpack.c.0.s8 %v305
        %v307 = vlaneseq
        %v308 = vshrl.u32 %v307, 7
        %v309 = vsub.s32 %v306, %v308
        %v310 = vrot.slane %v282, %v309
        %v311 = vcombine.high %v289, %v289
        %v312 = vcombine.high %v296, %v296
        %v313 = vcombine.high %v303, %v303
        %v314 = vcombine.high %v310, %v310
        %v315 = vcombine.high %v263, %v263
        %v317 = vunpack.c.l.s4 1966171168
        %v318 = vunpack.c.0.s8 %v317
        %v319 = vlaneseq
        %v320 = vshrl.u32 %v319, 7
        %v321 = vsub.s32 %v318, %v320
        %v322 = vrot.slane %v263, %v321
        %v324 = vunpack.c.l.s4 1966171168
        %v325 = vunpack.c.0.s8 %v324
        %v326 = vlaneseq
        %v327 = vshrl.u32 %v326, 7
        %v328 = vsub.s32 %v325, %v327
        %v329 = vrot.slane %v315, %v328
        %v330 = vcombine.high %v322, %v322
        %v331 = vcombine.high %v329, %v329
        %v333 = vunpack.c.l.s4 1966171168
        %v334 = vunpack.c.0.s8 %v333
        %v335 = vlaneseq
        %v336 = vshrl.u32 %v335, 7
        %v337 = vsub.s32 %v334, %v336
        %v338 = vrot.slane %v322, %v337
        %v340 = vunpack.c.l.s4 1966171168
        %v341 = vunpack.c.0.s8 %v340
        %v342 = vlaneseq
        %v343 = vshrl.u32 %v342, 7
        %v344 = vsub.s32 %v341, %v343
        %v345 = vrot.slane %v329, %v344
        %v347 = vunpack.c.l.s4 1966171168
        %v348 = vunpack.c.0.s8 %v347
        %v349 = vlaneseq
        %v350 = vshrl.u32 %v349, 7
        %v351 = vsub.s32 %v348, %v350
        %v352 = vrot.slane %v330, %v351
        %v354 = vunpack.c.l.s4 1966171168
        %v355 = vunpack.c.0.s8 %v354
        %v356 = vlaneseq
        %v357 = vshrl.u32 %v356, 7
        %v358 = vsub.s32 %v355, %v357
        %v359 = vrot.slane %v331, %v358
        %v360 = vcombine.high %v338, %v338
        %v361 = vcombine.high %v345, %v345
        %v362 = vcombine.high %v352, %v352
        %v363 = vcombine.high %v359, %v359
        %v364 = vld [vmem:[#allocation5] sm:$0xff]
        %v365 = vld [vmem:[#allocation5 + $0x8] sm:$0xff]
        %v366 = vld [vmem:[#allocation5 + $0x10] sm:$0xff]
        %v367 = vld [vmem:[#allocation5 + $0x18] sm:$0xff]
        %v368 = vld [vmem:[#allocation5 + $0x20] sm:$0xff]
        %v369 = vld [vmem:[#allocation5 + $0x28] sm:$0xff]
        %v370 = vld [vmem:[#allocation5 + $0x30] sm:$0xff]
        %v371 = vld [vmem:[#allocation5 + $0x38] sm:$0xff]
        %v372 = vld [vmem:[#allocation5 + $0x40] sm:$0xff]
        %v373 = vld [vmem:[#allocation5 + $0x48] sm:$0xff]
        %v374 = vld [vmem:[#allocation5 + $0x50] sm:$0xff]
        %v375 = vld [vmem:[#allocation5 + $0x58] sm:$0xff]
        %v376 = vld [vmem:[#allocation5 + $0x60] sm:$0xff]
        %v377 = vld [vmem:[#allocation5 + $0x68] sm:$0xff]
        %v378 = vld [vmem:[#allocation5 + $0x70] sm:$0xff]
        %v379 = vld [vmem:[#allocation5 + $0x78] sm:$0xff]
        %v380 = vld [vmem:[#allocation5 + $0x80] sm:$0xff]
        %v381 = vld [vmem:[#allocation5 + $0x88] sm:$0xff]
        %v382 = vld [vmem:[#allocation5 + $0x90] sm:$0xff]
        %v383 = vld [vmem:[#allocation5 + $0x98] sm:$0xff]
        %v384 = vld [vmem:[#allocation5 + $0xa0] sm:$0xff]
        %v385 = vld [vmem:[#allocation5 + $0xa8] sm:$0xff]
        %v386 = vld [vmem:[#allocation5 + $0xb0] sm:$0xff]
        %v387 = vld [vmem:[#allocation5 + $0xb8] sm:$0xff]
        %v388 = vld [vmem:[#allocation5 + $0xc0] sm:$0xff]
        %v389 = vld [vmem:[#allocation5 + $0xc8] sm:$0xff]
        %v390 = vld [vmem:[#allocation5 + $0xd0] sm:$0xff]
        %v391 = vld [vmem:[#allocation5 + $0xd8] sm:$0xff]
        %v392 = vld [vmem:[#allocation5 + $0xe0] sm:$0xff]
        %v393 = vld [vmem:[#allocation5 + $0xe8] sm:$0xff]
        %v394 = vld [vmem:[#allocation5 + $0xf0] sm:$0xff]
        %v395 = vld [vmem:[#allocation5 + $0xf8] sm:$0xff]
        %v396 = vlaneseq
        %v397 = vshrl.u32 %v396, 7
        %v398 = vsub.s32 0, %v397
        %v399 = vrot.slane %v289, %v398
        %v400 = vlaneseq
        %v401 = vshrl.u32 %v400, 7
        %v402 = vsub.s32 0, %v401
        %v403 = vrot.slane %v303, %v402
        %v404 = vlaneseq
        %v405 = vshrl.u32 %v404, 7
        %v406 = vsub.s32 0, %v405
        %v407 = vrot.slane %v311, %v406
        %v408 = vlaneseq
        %v409 = vshrl.u32 %v408, 7
        %v410 = vsub.s32 0, %v409
        %v411 = vrot.slane %v313, %v410
        %v412 = vlaneseq
        %v413 = vshrl.u32 %v412, 7
        %v414 = vsub.s32 0, %v413
        %v415 = vrot.slane %v296, %v414
        %v416 = vlaneseq
        %v417 = vshrl.u32 %v416, 7
        %v418 = vsub.s32 0, %v417
        %v419 = vrot.slane %v310, %v418
        %v420 = vlaneseq
        %v421 = vshrl.u32 %v420, 7
        %v422 = vsub.s32 0, %v421
        %v423 = vrot.slane %v312, %v422
        %v424 = vlaneseq
        %v425 = vshrl.u32 %v424, 7
        %v426 = vsub.s32 0, %v425
        %v427 = vrot.slane %v314, %v426
        %v428 = vlaneseq
        %v429 = vshrl.u32 %v428, 7
        %v430 = vsub.s32 0, %v429
        %v431 = vrot.slane %v338, %v430
        %v432 = vlaneseq
        %v433 = vshrl.u32 %v432, 7
        %v434 = vsub.s32 0, %v433
        %v435 = vrot.slane %v352, %v434
        %v436 = vlaneseq
        %v437 = vshrl.u32 %v436, 7
        %v438 = vsub.s32 0, %v437
        %v439 = vrot.slane %v360, %v438
        %v440 = vlaneseq
        %v441 = vshrl.u32 %v440, 7
        %v442 = vsub.s32 0, %v441
        %v443 = vrot.slane %v362, %v442
        %v444 = vlaneseq
        %v445 = vshrl.u32 %v444, 7
        %v446 = vsub.s32 0, %v445
        %v447 = vrot.slane %v345, %v446
        %v448 = vlaneseq
        %v449 = vshrl.u32 %v448, 7
        %v450 = vsub.s32 0, %v449
        %v451 = vrot.slane %v359, %v450
        %v452 = vlaneseq
        %v453 = vshrl.u32 %v452, 7
        %v454 = vsub.s32 0, %v453
        %v455 = vrot.slane %v361, %v454
        %v456 = vlaneseq
        %v457 = vshrl.u32 %v456, 7
        %v458 = vsub.s32 0, %v457
        %v459 = vrot.slane %v363, %v458
        %v476 = vadd.f32 %v399, %v364
        %v477 = vadd.f32 %v399, %v365
        %v478 = vadd.f32 %v403, %v366
        %v479 = vadd.f32 %v403, %v367
        %v480 = vadd.f32 %v407, %v368
        %v481 = vadd.f32 %v407, %v369
        %v482 = vadd.f32 %v411, %v370
        %v483 = vadd.f32 %v411, %v371
        %v484 = vadd.f32 %v415, %v372
        %v485 = vadd.f32 %v415, %v373
        %v486 = vadd.f32 %v419, %v374
        %v487 = vadd.f32 %v419, %v375
        %v488 = vadd.f32 %v423, %v376
        %v489 = vadd.f32 %v423, %v377
        %v490 = vadd.f32 %v427, %v378
        %v491 = vadd.f32 %v427, %v379
        %v492 = vadd.f32 %v431, %v380
        %v493 = vadd.f32 %v431, %v381
        %v494 = vadd.f32 %v435, %v382
        %v495 = vadd.f32 %v435, %v383
        %v496 = vadd.f32 %v439, %v384
        %v497 = vadd.f32 %v439, %v385
        %v498 = vadd.f32 %v443, %v386
        %v499 = vadd.f32 %v443, %v387
        %v500 = vadd.f32 %v447, %v388
        %v501 = vadd.f32 %v447, %v389
        %v502 = vadd.f32 %v451, %v390
        %v503 = vadd.f32 %v451, %v391
        %v504 = vadd.f32 %v455, %v392
        %v505 = vadd.f32 %v455, %v393
        %v506 = vadd.f32 %v459, %v394
        %v507 = vadd.f32 %v459, %v395
        %v508 = vmul.f32 %v259, %v476
        %v509 = vmul.f32 %v260, %v477
        %v510 = vmul.f32 %v259, %v478
        %v511 = vmul.f32 %v260, %v479
        %v512 = vmul.f32 %v259, %v480
        %v513 = vmul.f32 %v260, %v481
        %v514 = vmul.f32 %v259, %v482
        %v515 = vmul.f32 %v260, %v483
        %v516 = vmul.f32 %v259, %v484
        %v517 = vmul.f32 %v260, %v485
        %v518 = vmul.f32 %v259, %v486
        %v519 = vmul.f32 %v260, %v487
        %v520 = vmul.f32 %v259, %v488
        %v521 = vmul.f32 %v260, %v489
        %v522 = vmul.f32 %v259, %v490
        %v523 = vmul.f32 %v260, %v491
        %v524 = vmul.f32 %v259, %v492
        %v525 = vmul.f32 %v260, %v493
        %v526 = vmul.f32 %v259, %v494
        %v527 = vmul.f32 %v260, %v495
        %v528 = vmul.f32 %v259, %v496
        %v529 = vmul.f32 %v260, %v497
        %v530 = vmul.f32 %v259, %v498
        %v531 = vmul.f32 %v260, %v499
        %v532 = vmul.f32 %v259, %v500
        %v533 = vmul.f32 %v260, %v501
        %v534 = vmul.f32 %v259, %v502
        %v535 = vmul.f32 %v260, %v503
        %v536 = vmul.f32 %v259, %v504
        %v537 = vmul.f32 %v260, %v505
        %v538 = vmul.f32 %v259, %v506
        %v539 = vmul.f32 %v260, %v507
        %v540 = vld [vmem:[#allocation7] sm:$0xff]
        %v541 = vld [vmem:[#allocation7 + $0x8] sm:$0xff]
        %v542 = vld [vmem:[#allocation7 + $0x10] sm:$0xff]
        %v543 = vld [vmem:[#allocation7 + $0x18] sm:$0xff]
        %v544 = vld [vmem:[#allocation7 + $0x20] sm:$0xff]
        %v545 = vld [vmem:[#allocation7 + $0x28] sm:$0xff]
        %v546 = vld [vmem:[#allocation7 + $0x30] sm:$0xff]
        %v547 = vld [vmem:[#allocation7 + $0x38] sm:$0xff]
        %v548 = vld [vmem:[#allocation7 + $0x40] sm:$0xff]
        %v549 = vld [vmem:[#allocation7 + $0x48] sm:$0xff]
        %v550 = vld [vmem:[#allocation7 + $0x50] sm:$0xff]
        %v551 = vld [vmem:[#allocation7 + $0x58] sm:$0xff]
        %v552 = vld [vmem:[#allocation7 + $0x60] sm:$0xff]
        %v553 = vld [vmem:[#allocation7 + $0x68] sm:$0xff]
        %v554 = vld [vmem:[#allocation7 + $0x70] sm:$0xff]
        %v555 = vld [vmem:[#allocation7 + $0x78] sm:$0xff]
        %v556 = vld [vmem:[#allocation7 + $0x80] sm:$0xff]
        %v557 = vld [vmem:[#allocation7 + $0x88] sm:$0xff]
        %v558 = vld [vmem:[#allocation7 + $0x90] sm:$0xff]
        %v559 = vld [vmem:[#allocation7 + $0x98] sm:$0xff]
        %v560 = vld [vmem:[#allocation7 + $0xa0] sm:$0xff]
        %v561 = vld [vmem:[#allocation7 + $0xa8] sm:$0xff]
        %v562 = vld [vmem:[#allocation7 + $0xb0] sm:$0xff]
        %v563 = vld [vmem:[#allocation7 + $0xb8] sm:$0xff]
        %v564 = vld [vmem:[#allocation7 + $0xc0] sm:$0xff]
        %v565 = vld [vmem:[#allocation7 + $0xc8] sm:$0xff]
        %v566 = vld [vmem:[#allocation7 + $0xd0] sm:$0xff]
        %v567 = vld [vmem:[#allocation7 + $0xd8] sm:$0xff]
        %v568 = vld [vmem:[#allocation7 + $0xe0] sm:$0xff]
        %v569 = vld [vmem:[#allocation7 + $0xe8] sm:$0xff]
        %v570 = vld [vmem:[#allocation7 + $0xf0] sm:$0xff]
        %v571 = vld [vmem:[#allocation7 + $0xf8] sm:$0xff]
        %v572 = vmul.f32 %v399, %v540
        %v573 = vmul.f32 %v399, %v541
        %v574 = vmul.f32 %v403, %v542
        %v575 = vmul.f32 %v403, %v543
        %v576 = vmul.f32 %v407, %v544
        %v577 = vmul.f32 %v407, %v545
        %v578 = vmul.f32 %v411, %v546
        %v579 = vmul.f32 %v411, %v547
        %v580 = vmul.f32 %v415, %v548
        %v581 = vmul.f32 %v415, %v549
        %v582 = vmul.f32 %v419, %v550
        %v583 = vmul.f32 %v419, %v551
        %v584 = vmul.f32 %v423, %v552
        %v585 = vmul.f32 %v423, %v553
        %v586 = vmul.f32 %v427, %v554
        %v587 = vmul.f32 %v427, %v555
        %v588 = vmul.f32 %v431, %v556
        %v589 = vmul.f32 %v431, %v557
        %v590 = vmul.f32 %v435, %v558
        %v591 = vmul.f32 %v435, %v559
        %v592 = vmul.f32 %v439, %v560
        %v593 = vmul.f32 %v439, %v561
        %v594 = vmul.f32 %v443, %v562
        %v595 = vmul.f32 %v443, %v563
        %v596 = vmul.f32 %v447, %v564
        %v597 = vmul.f32 %v447, %v565
        %v598 = vmul.f32 %v451, %v566
        %v599 = vmul.f32 %v451, %v567
        %v600 = vmul.f32 %v455, %v568
        %v601 = vmul.f32 %v455, %v569
        %v602 = vmul.f32 %v459, %v570
        %v603 = vmul.f32 %v459, %v571
        %v604 = vadd.f32 %v508, %v572
        %v605 = vadd.f32 %v509, %v573
        %v606 = vadd.f32 %v510, %v574
        %v607 = vadd.f32 %v511, %v575
        %v608 = vadd.f32 %v512, %v576
        %v609 = vadd.f32 %v513, %v577
        %v610 = vadd.f32 %v514, %v578
        %v611 = vadd.f32 %v515, %v579
        %v612 = vadd.f32 %v516, %v580
        %v613 = vadd.f32 %v517, %v581
        %v614 = vadd.f32 %v518, %v582
        %v615 = vadd.f32 %v519, %v583
        %v616 = vadd.f32 %v520, %v584
        %v617 = vadd.f32 %v521, %v585
        %v618 = vadd.f32 %v522, %v586
        %v619 = vadd.f32 %v523, %v587
        %v620 = vadd.f32 %v524, %v588
        %v621 = vadd.f32 %v525, %v589
        %v622 = vadd.f32 %v526, %v590
        %v623 = vadd.f32 %v527, %v591
        %v624 = vadd.f32 %v528, %v592
        %v625 = vadd.f32 %v529, %v593
        %v626 = vadd.f32 %v530, %v594
        %v627 = vadd.f32 %v531, %v595
        %v628 = vadd.f32 %v532, %v596
        %v629 = vadd.f32 %v533, %v597
        %v630 = vadd.f32 %v534, %v598
        %v631 = vadd.f32 %v535, %v599
        %v632 = vadd.f32 %v536, %v600
        %v633 = vadd.f32 %v537, %v601
        %v634 = vadd.f32 %v538, %v602
        %v635 = vadd.f32 %v539, %v603
        %s636 = scalar_lea.vmem %s222, 16 [#allocation2]
        %v637 = vld [vmem:[%s636] sm:$0xff]
        %v638 = vld [vmem:[%s636 + $0x8] sm:$0xff]
        %s639 = scalar_lea.vmem %s222, 48 [#allocation2]
        %v640 = vld [vmem:[%s639] sm:$0xff]
        %v641 = vld [vmem:[%s639 + $0x8] sm:$0xff]
        %v644 = vcombine.high %v640, %v640
        %v646 = vunpack.c.l.s4 1966171168
        %v647 = vunpack.c.0.s8 %v646
        %v648 = vlaneseq
        %v649 = vshrl.u32 %v648, 7
        %v650 = vsub.s32 %v647, %v649
        %v651 = vrot.slane %v640, %v650
        %v653 = vunpack.c.l.s4 1966171168
        %v654 = vunpack.c.0.s8 %v653
        %v655 = vlaneseq
        %v656 = vshrl.u32 %v655, 7
        %v657 = vsub.s32 %v654, %v656
        %v658 = vrot.slane %v644, %v657
        %v659 = vcombine.high %v651, %v651
        %v660 = vcombine.high %v658, %v658
        %v662 = vunpack.c.l.s4 1966171168
        %v663 = vunpack.c.0.s8 %v662
        %v664 = vlaneseq
        %v665 = vshrl.u32 %v664, 7
        %v666 = vsub.s32 %v663, %v665
        %v667 = vrot.slane %v651, %v666
        %v669 = vunpack.c.l.s4 1966171168
        %v670 = vunpack.c.0.s8 %v669
        %v671 = vlaneseq
        %v672 = vshrl.u32 %v671, 7
        %v673 = vsub.s32 %v670, %v672
        %v674 = vrot.slane %v658, %v673
        %v676 = vunpack.c.l.s4 1966171168
        %v677 = vunpack.c.0.s8 %v676
        %v678 = vlaneseq
        %v679 = vshrl.u32 %v678, 7
        %v680 = vsub.s32 %v677, %v679
        %v681 = vrot.slane %v659, %v680
        %v683 = vunpack.c.l.s4 1966171168
        %v684 = vunpack.c.0.s8 %v683
        %v685 = vlaneseq
        %v686 = vshrl.u32 %v685, 7
        %v687 = vsub.s32 %v684, %v686
        %v688 = vrot.slane %v660, %v687
        %v689 = vcombine.high %v667, %v667
        %v690 = vcombine.high %v674, %v674
        %v691 = vcombine.high %v681, %v681
        %v692 = vcombine.high %v688, %v688
        %v693 = vcombine.high %v641, %v641
        %v695 = vunpack.c.l.s4 1966171168
        %v696 = vunpack.c.0.s8 %v695
        %v697 = vlaneseq
        %v698 = vshrl.u32 %v697, 7
        %v699 = vsub.s32 %v696, %v698
        %v700 = vrot.slane %v641, %v699
        %v702 = vunpack.c.l.s4 1966171168
        %v703 = vunpack.c.0.s8 %v702
        %v704 = vlaneseq
        %v705 = vshrl.u32 %v704, 7
        %v706 = vsub.s32 %v703, %v705
        %v707 = vrot.slane %v693, %v706
        %v708 = vcombine.high %v700, %v700
        %v709 = vcombine.high %v707, %v707
        %v711 = vunpack.c.l.s4 1966171168
        %v712 = vunpack.c.0.s8 %v711
        %v713 = vlaneseq
        %v714 = vshrl.u32 %v713, 7
        %v715 = vsub.s32 %v712, %v714
        %v716 = vrot.slane %v700, %v715
        %v718 = vunpack.c.l.s4 1966171168
        %v719 = vunpack.c.0.s8 %v718
        %v720 = vlaneseq
        %v721 = vshrl.u32 %v720, 7
        %v722 = vsub.s32 %v719, %v721
        %v723 = vrot.slane %v707, %v722
        %v725 = vunpack.c.l.s4 1966171168
        %v726 = vunpack.c.0.s8 %v725
        %v727 = vlaneseq
        %v728 = vshrl.u32 %v727, 7
        %v729 = vsub.s32 %v726, %v728
        %v730 = vrot.slane %v708, %v729
        %v732 = vunpack.c.l.s4 1966171168
        %v733 = vunpack.c.0.s8 %v732
        %v734 = vlaneseq
        %v735 = vshrl.u32 %v734, 7
        %v736 = vsub.s32 %v733, %v735
        %v737 = vrot.slane %v709, %v736
        %v738 = vcombine.high %v716, %v716
        %v739 = vcombine.high %v723, %v723
        %v740 = vcombine.high %v730, %v730
        %v741 = vcombine.high %v737, %v737
        %s742 = scalar_lea.vmem [#allocation5], 256
        %v743 = vld [vmem:[%s742] sm:$0xff]
        %v744 = vld [vmem:[%s742 + $0x8] sm:$0xff]
        %v745 = vld [vmem:[%s742 + $0x10] sm:$0xff]
        %v746 = vld [vmem:[%s742 + $0x18] sm:$0xff]
        %v747 = vld [vmem:[%s742 + $0x20] sm:$0xff]
        %v748 = vld [vmem:[%s742 + $0x28] sm:$0xff]
        %v749 = vld [vmem:[%s742 + $0x30] sm:$0xff]
        %v750 = vld [vmem:[%s742 + $0x38] sm:$0xff]
        %v751 = vld [vmem:[%s742 + $0x40] sm:$0xff]
        %v752 = vld [vmem:[%s742 + $0x48] sm:$0xff]
        %v753 = vld [vmem:[%s742 + $0x50] sm:$0xff]
        %v754 = vld [vmem:[%s742 + $0x58] sm:$0xff]
        %v755 = vld [vmem:[%s742 + $0x60] sm:$0xff]
        %v756 = vld [vmem:[%s742 + $0x68] sm:$0xff]
        %v757 = vld [vmem:[%s742 + $0x70] sm:$0xff]
        %v758 = vld [vmem:[%s742 + $0x78] sm:$0xff]
        %v759 = vld [vmem:[%s742 + $0x80] sm:$0xff]
        %v760 = vld [vmem:[%s742 + $0x88] sm:$0xff]
        %v761 = vld [vmem:[%s742 + $0x90] sm:$0xff]
        %v762 = vld [vmem:[%s742 + $0x98] sm:$0xff]
        %v763 = vld [vmem:[%s742 + $0xa0] sm:$0xff]
        %v764 = vld [vmem:[%s742 + $0xa8] sm:$0xff]
        %v765 = vld [vmem:[%s742 + $0xb0] sm:$0xff]
        %v766 = vld [vmem:[%s742 + $0xb8] sm:$0xff]
        %v767 = vld [vmem:[%s742 + $0xc0] sm:$0xff]
        %v768 = vld [vmem:[%s742 + $0xc8] sm:$0xff]
        %v769 = vld [vmem:[%s742 + $0xd0] sm:$0xff]
        %v770 = vld [vmem:[%s742 + $0xd8] sm:$0xff]
        %v771 = vld [vmem:[%s742 + $0xe0] sm:$0xff]
        %v772 = vld [vmem:[%s742 + $0xe8] sm:$0xff]
        %v773 = vld [vmem:[%s742 + $0xf0] sm:$0xff]
        %v774 = vld [vmem:[%s742 + $0xf8] sm:$0xff]
        %v775 = vlaneseq
        %v776 = vshrl.u32 %v775, 7
        %v777 = vsub.s32 0, %v776
        %v778 = vrot.slane %v667, %v777
        %v779 = vlaneseq
        %v780 = vshrl.u32 %v779, 7
        %v781 = vsub.s32 0, %v780
        %v782 = vrot.slane %v681, %v781
        %v783 = vlaneseq
        %v784 = vshrl.u32 %v783, 7
        %v785 = vsub.s32 0, %v784
        %v786 = vrot.slane %v689, %v785
        %v787 = vlaneseq
        %v788 = vshrl.u32 %v787, 7
        %v789 = vsub.s32 0, %v788
        %v790 = vrot.slane %v691, %v789
        %v791 = vlaneseq
        %v792 = vshrl.u32 %v791, 7
        %v793 = vsub.s32 0, %v792
        %v794 = vrot.slane %v674, %v793
        %v795 = vlaneseq
        %v796 = vshrl.u32 %v795, 7
        %v797 = vsub.s32 0, %v796
        %v798 = vrot.slane %v688, %v797
        %v799 = vlaneseq
        %v800 = vshrl.u32 %v799, 7
        %v801 = vsub.s32 0, %v800
        %v802 = vrot.slane %v690, %v801
        %v803 = vlaneseq
        %v804 = vshrl.u32 %v803, 7
        %v805 = vsub.s32 0, %v804
        %v806 = vrot.slane %v692, %v805
        %v807 = vlaneseq
        %v808 = vshrl.u32 %v807, 7
        %v809 = vsub.s32 0, %v808
        %v810 = vrot.slane %v716, %v809
        %v811 = vlaneseq
        %v812 = vshrl.u32 %v811, 7
        %v813 = vsub.s32 0, %v812
        %v814 = vrot.slane %v730, %v813
        %v815 = vlaneseq
        %v816 = vshrl.u32 %v815, 7
        %v817 = vsub.s32 0, %v816
        %v818 = vrot.slane %v738, %v817
        %v819 = vlaneseq
        %v820 = vshrl.u32 %v819, 7
        %v821 = vsub.s32 0, %v820
        %v822 = vrot.slane %v740, %v821
        %v823 = vlaneseq
        %v824 = vshrl.u32 %v823, 7
        %v825 = vsub.s32 0, %v824
        %v826 = vrot.slane %v723, %v825
        %v827 = vlaneseq
        %v828 = vshrl.u32 %v827, 7
        %v829 = vsub.s32 0, %v828
        %v830 = vrot.slane %v737, %v829
        %v831 = vlaneseq
        %v832 = vshrl.u32 %v831, 7
        %v833 = vsub.s32 0, %v832
        %v834 = vrot.slane %v739, %v833
        %v835 = vlaneseq
        %v836 = vshrl.u32 %v835, 7
        %v837 = vsub.s32 0, %v836
        %v838 = vrot.slane %v741, %v837
        %v855 = vadd.f32 %v778, %v743
        %v856 = vadd.f32 %v778, %v744
        %v857 = vadd.f32 %v782, %v745
        %v858 = vadd.f32 %v782, %v746
        %v859 = vadd.f32 %v786, %v747
        %v860 = vadd.f32 %v786, %v748
        %v861 = vadd.f32 %v790, %v749
        %v862 = vadd.f32 %v790, %v750
        %v863 = vadd.f32 %v794, %v751
        %v864 = vadd.f32 %v794, %v752
        %v865 = vadd.f32 %v798, %v753
        %v866 = vadd.f32 %v798, %v754
        %v867 = vadd.f32 %v802, %v755
        %v868 = vadd.f32 %v802, %v756
        %v869 = vadd.f32 %v806, %v757
        %v870 = vadd.f32 %v806, %v758
        %v871 = vadd.f32 %v810, %v759
        %v872 = vadd.f32 %v810, %v760
        %v873 = vadd.f32 %v814, %v761
        %v874 = vadd.f32 %v814, %v762
        %v875 = vadd.f32 %v818, %v763
        %v876 = vadd.f32 %v818, %v764
        %v877 = vadd.f32 %v822, %v765
        %v878 = vadd.f32 %v822, %v766
        %v879 = vadd.f32 %v826, %v767
        %v880 = vadd.f32 %v826, %v768
        %v881 = vadd.f32 %v830, %v769
        %v882 = vadd.f32 %v830, %v770
        %v883 = vadd.f32 %v834, %v771
        %v884 = vadd.f32 %v834, %v772
        %v885 = vadd.f32 %v838, %v773
        %v886 = vadd.f32 %v838, %v774
        %v887 = vmul.f32 %v637, %v855
        %v888 = vmul.f32 %v638, %v856
        %v889 = vmul.f32 %v637, %v857
        %v890 = vmul.f32 %v638, %v858
        %v891 = vmul.f32 %v637, %v859
        %v892 = vmul.f32 %v638, %v860
        %v893 = vmul.f32 %v637, %v861
        %v894 = vmul.f32 %v638, %v862
        %v895 = vmul.f32 %v637, %v863
        %v896 = vmul.f32 %v638, %v864
        %v897 = vmul.f32 %v637, %v865
        %v898 = vmul.f32 %v638, %v866
        %v899 = vmul.f32 %v637, %v867
        %v900 = vmul.f32 %v638, %v868
        %v901 = vmul.f32 %v637, %v869
        %v902 = vmul.f32 %v638, %v870
        %v903 = vmul.f32 %v637, %v871
        %v904 = vmul.f32 %v638, %v872
        %v905 = vmul.f32 %v637, %v873
        %v906 = vmul.f32 %v638, %v874
        %v907 = vmul.f32 %v637, %v875
        %v908 = vmul.f32 %v638, %v876
        %v909 = vmul.f32 %v637, %v877
        %v910 = vmul.f32 %v638, %v878
        %v911 = vmul.f32 %v637, %v879
        %v912 = vmul.f32 %v638, %v880
        %v913 = vmul.f32 %v637, %v881
        %v914 = vmul.f32 %v638, %v882
        %v915 = vmul.f32 %v637, %v883
        %v916 = vmul.f32 %v638, %v884
        %v917 = vmul.f32 %v637, %v885
        %v918 = vmul.f32 %v638, %v886
        %s919 = scalar_lea.vmem [#allocation7], 256
        %v920 = vld [vmem:[%s919] sm:$0xff]
        %v921 = vld [vmem:[%s919 + $0x8] sm:$0xff]
        %v922 = vld [vmem:[%s919 + $0x10] sm:$0xff]
        %v923 = vld [vmem:[%s919 + $0x18] sm:$0xff]
        %v924 = vld [vmem:[%s919 + $0x20] sm:$0xff]
        %v925 = vld [vmem:[%s919 + $0x28] sm:$0xff]
        %v926 = vld [vmem:[%s919 + $0x30] sm:$0xff]
        %v927 = vld [vmem:[%s919 + $0x38] sm:$0xff]
        %v928 = vld [vmem:[%s919 + $0x40] sm:$0xff]
        %v929 = vld [vmem:[%s919 + $0x48] sm:$0xff]
        %v930 = vld [vmem:[%s919 + $0x50] sm:$0xff]
        %v931 = vld [vmem:[%s919 + $0x58] sm:$0xff]
        %v932 = vld [vmem:[%s919 + $0x60] sm:$0xff]
        %v933 = vld [vmem:[%s919 + $0x68] sm:$0xff]
        %v934 = vld [vmem:[%s919 + $0x70] sm:$0xff]
        %v935 = vld [vmem:[%s919 + $0x78] sm:$0xff]
        %v936 = vld [vmem:[%s919 + $0x80] sm:$0xff]
        %v937 = vld [vmem:[%s919 + $0x88] sm:$0xff]
        %v938 = vld [vmem:[%s919 + $0x90] sm:$0xff]
        %v939 = vld [vmem:[%s919 + $0x98] sm:$0xff]
        %v940 = vld [vmem:[%s919 + $0xa0] sm:$0xff]
        %v941 = vld [vmem:[%s919 + $0xa8] sm:$0xff]
        %v942 = vld [vmem:[%s919 + $0xb0] sm:$0xff]
        %v943 = vld [vmem:[%s919 + $0xb8] sm:$0xff]
        %v944 = vld [vmem:[%s919 + $0xc0] sm:$0xff]
        %v945 = vld [vmem:[%s919 + $0xc8] sm:$0xff]
        %v946 = vld [vmem:[%s919 + $0xd0] sm:$0xff]
        %v947 = vld [vmem:[%s919 + $0xd8] sm:$0xff]
        %v948 = vld [vmem:[%s919 + $0xe0] sm:$0xff]
        %v949 = vld [vmem:[%s919 + $0xe8] sm:$0xff]
        %v950 = vld [vmem:[%s919 + $0xf0] sm:$0xff]
        %v951 = vld [vmem:[%s919 + $0xf8] sm:$0xff]
        %v952 = vmul.f32 %v778, %v920
        %v953 = vmul.f32 %v778, %v921
        %v954 = vmul.f32 %v782, %v922
        %v955 = vmul.f32 %v782, %v923
        %v956 = vmul.f32 %v786, %v924
        %v957 = vmul.f32 %v786, %v925
        %v958 = vmul.f32 %v790, %v926
        %v959 = vmul.f32 %v790, %v927
        %v960 = vmul.f32 %v794, %v928
        %v961 = vmul.f32 %v794, %v929
        %v962 = vmul.f32 %v798, %v930
        %v963 = vmul.f32 %v798, %v931
        %v964 = vmul.f32 %v802, %v932
        %v965 = vmul.f32 %v802, %v933
        %v966 = vmul.f32 %v806, %v934
        %v967 = vmul.f32 %v806, %v935
        %v968 = vmul.f32 %v810, %v936
        %v969 = vmul.f32 %v810, %v937
        %v970 = vmul.f32 %v814, %v938
        %v971 = vmul.f32 %v814, %v939
        %v972 = vmul.f32 %v818, %v940
        %v973 = vmul.f32 %v818, %v941
        %v974 = vmul.f32 %v822, %v942
        %v975 = vmul.f32 %v822, %v943
        %v976 = vmul.f32 %v826, %v944
        %v977 = vmul.f32 %v826, %v945
        %v978 = vmul.f32 %v830, %v946
        %v979 = vmul.f32 %v830, %v947
        %v980 = vmul.f32 %v834, %v948
        %v981 = vmul.f32 %v834, %v949
        %v982 = vmul.f32 %v838, %v950
        %v983 = vmul.f32 %v838, %v951
        %v984 = vadd.f32 %v887, %v952
        %v985 = vadd.f32 %v888, %v953
        %v986 = vadd.f32 %v889, %v954
        %v987 = vadd.f32 %v890, %v955
        %v988 = vadd.f32 %v891, %v956
        %v989 = vadd.f32 %v892, %v957
        %v990 = vadd.f32 %v893, %v958
        %v991 = vadd.f32 %v894, %v959
        %v992 = vadd.f32 %v895, %v960
        %v993 = vadd.f32 %v896, %v961
        %v994 = vadd.f32 %v897, %v962
        %v995 = vadd.f32 %v898, %v963
        %v996 = vadd.f32 %v899, %v964
        %v997 = vadd.f32 %v900, %v965
        %v998 = vadd.f32 %v901, %v966
        %v999 = vadd.f32 %v902, %v967
        %v1000 = vadd.f32 %v903, %v968
        %v1001 = vadd.f32 %v904, %v969
        %v1002 = vadd.f32 %v905, %v970
        %v1003 = vadd.f32 %v906, %v971
        %v1004 = vadd.f32 %v907, %v972
        %v1005 = vadd.f32 %v908, %v973
        %v1006 = vadd.f32 %v909, %v974
        %v1007 = vadd.f32 %v910, %v975
        %v1008 = vadd.f32 %v911, %v976
        %v1009 = vadd.f32 %v912, %v977
        %v1010 = vadd.f32 %v913, %v978
        %v1011 = vadd.f32 %v914, %v979
        %v1012 = vadd.f32 %v915, %v980
        %v1013 = vadd.f32 %v916, %v981
        %v1014 = vadd.f32 %v917, %v982
        %v1015 = vadd.f32 %v918, %v983
        %v1016 = vadd.f32 %v604, %v984
        %v1017 = vadd.f32 %v605, %v985
        %v1018 = vadd.f32 %v606, %v986
        %v1019 = vadd.f32 %v607, %v987
        %v1020 = vadd.f32 %v608, %v988
        %v1021 = vadd.f32 %v609, %v989
        %v1022 = vadd.f32 %v610, %v990
        %v1023 = vadd.f32 %v611, %v991
        %v1024 = vadd.f32 %v612, %v992
        %v1025 = vadd.f32 %v613, %v993
        %v1026 = vadd.f32 %v614, %v994
        %v1027 = vadd.f32 %v615, %v995
        %v1028 = vadd.f32 %v616, %v996
        %v1029 = vadd.f32 %v617, %v997
        %v1030 = vadd.f32 %v618, %v998
        %v1031 = vadd.f32 %v619, %v999
        %v1032 = vadd.f32 %v620, %v1000
        %v1033 = vadd.f32 %v621, %v1001
        %v1034 = vadd.f32 %v622, %v1002
        %v1035 = vadd.f32 %v623, %v1003
        %v1036 = vadd.f32 %v624, %v1004
        %v1037 = vadd.f32 %v625, %v1005
        %v1038 = vadd.f32 %v626, %v1006
        %v1039 = vadd.f32 %v627, %v1007
        %v1040 = vadd.f32 %v628, %v1008
        %v1041 = vadd.f32 %v629, %v1009
        %v1042 = vadd.f32 %v630, %v1010
        %v1043 = vadd.f32 %v631, %v1011
        %v1044 = vadd.f32 %v632, %v1012
        %v1045 = vadd.f32 %v633, %v1013
        %v1046 = vadd.f32 %v634, %v1014
        %v1047 = vadd.f32 %v635, %v1015
        %v1048 = vmax.f32 %v1016, %v1020
        %v1049 = vmax.f32 %v1018, %v1022
        %v1050 = vmax.f32 %v1048, %v1024
        %v1051 = vmax.f32 %v1049, %v1026
        %v1052 = vmax.f32 %v1050, %v1028
        %v1053 = vmax.f32 %v1051, %v1030
        %v1054 = vmax.f32 %v1052, %v1032
        %v1055 = vmax.f32 %v1053, %v1034
        %v1056 = vmax.f32 %v1054, %v1036
        %v1057 = vmax.f32 %v1055, %v1038
        %v1058 = vmax.f32 %v1056, %v1040
        %v1059 = vmax.f32 %v1057, %v1042
        %v1060 = vmax.f32 %v1058, %v1044
        %v1061 = vmax.f32 %v1059, %v1046
        %v1062 = vmax.f32 %v1060, %v1061
        %v1063 = vmax.f32 %v1017, %v1021
        %v1064 = vmax.f32 %v1019, %v1023
        %v1065 = vmax.f32 %v1063, %v1025
        %v1066 = vmax.f32 %v1064, %v1027
        %v1067 = vmax.f32 %v1065, %v1029
        %v1068 = vmax.f32 %v1066, %v1031
        %v1069 = vmax.f32 %v1067, %v1033
        %v1070 = vmax.f32 %v1068, %v1035
        %v1071 = vmax.f32 %v1069, %v1037
        %v1072 = vmax.f32 %v1070, %v1039
        %v1073 = vmax.f32 %v1071, %v1041
        %v1074 = vmax.f32 %v1072, %v1043
        %v1075 = vmax.f32 %v1073, %v1045
        %v1076 = vmax.f32 %v1074, %v1047
        %v1077 = vmax.f32 %v1075, %v1076
        %v1078 = vsub.f32 %v1016, %v1062
        %v1079 = vsub.f32 %v1017, %v1077
        %v1080 = vsub.f32 %v1018, %v1062
        %v1081 = vsub.f32 %v1019, %v1077
        %v1082 = vsub.f32 %v1020, %v1062
        %v1083 = vsub.f32 %v1021, %v1077
        %v1084 = vsub.f32 %v1022, %v1062
        %v1085 = vsub.f32 %v1023, %v1077
        %v1086 = vsub.f32 %v1024, %v1062
        %v1087 = vsub.f32 %v1025, %v1077
        %v1088 = vsub.f32 %v1026, %v1062
        %v1089 = vsub.f32 %v1027, %v1077
        %v1090 = vsub.f32 %v1028, %v1062
        %v1091 = vsub.f32 %v1029, %v1077
        %v1092 = vsub.f32 %v1030, %v1062
        %v1093 = vsub.f32 %v1031, %v1077
        %v1094 = vsub.f32 %v1032, %v1062
        %v1095 = vsub.f32 %v1033, %v1077
        %v1096 = vsub.f32 %v1034, %v1062
        %v1097 = vsub.f32 %v1035, %v1077
        %v1098 = vsub.f32 %v1036, %v1062
        %v1099 = vsub.f32 %v1037, %v1077
        %v1100 = vsub.f32 %v1038, %v1062
        %v1101 = vsub.f32 %v1039, %v1077
        %v1102 = vsub.f32 %v1040, %v1062
        %v1103 = vsub.f32 %v1041, %v1077
        %v1104 = vsub.f32 %v1042, %v1062
        %v1105 = vsub.f32 %v1043, %v1077
        %v1106 = vsub.f32 %v1044, %v1062
        %v1107 = vsub.f32 %v1045, %v1077
        %v1108 = vsub.f32 %v1046, %v1062
        %v1109 = vsub.f32 %v1047, %v1077
        %v1110 = vmul.f32 %v1078, 1.442695
        %v1111 = vpow.pop %v1110
        %v1112 = vmul.f32 %v1079, 1.442695
        %v1113 = vpow.pop %v1112
        %v1114 = vmul.f32 %v1080, 1.442695
        %v1115 = vpow.pop %v1114
        %v1116 = vmul.f32 %v1081, 1.442695
        %v1117 = vpow.pop %v1116
        %v1118 = vmul.f32 %v1082, 1.442695
        %v1119 = vpow.pop %v1118
        %v1120 = vmul.f32 %v1083, 1.442695
        %v1121 = vpow.pop %v1120
        %v1122 = vmul.f32 %v1084, 1.442695
        %v1123 = vpow.pop %v1122
        %v1124 = vmul.f32 %v1085, 1.442695
        %v1125 = vpow.pop %v1124
        %v1126 = vmul.f32 %v1086, 1.442695
        %v1127 = vpow.pop %v1126
        %v1128 = vmul.f32 %v1087, 1.442695
        %v1129 = vpow.pop %v1128
        %v1130 = vmul.f32 %v1088, 1.442695
        %v1131 = vpow.pop %v1130
        %v1132 = vmul.f32 %v1089, 1.442695
        %v1133 = vpow.pop %v1132
        %v1134 = vmul.f32 %v1090, 1.442695
        %v1135 = vpow.pop %v1134
        %v1136 = vmul.f32 %v1091, 1.442695
        %v1137 = vpow.pop %v1136
        %v1138 = vmul.f32 %v1092, 1.442695
        %v1139 = vpow.pop %v1138
        %v1140 = vmul.f32 %v1093, 1.442695
        %v1141 = vpow.pop %v1140
        %v1142 = vmul.f32 %v1094, 1.442695
        %v1143 = vpow.pop %v1142
        %v1144 = vmul.f32 %v1095, 1.442695
        %v1145 = vpow.pop %v1144
        %v1146 = vmul.f32 %v1096, 1.442695
        %v1147 = vpow.pop %v1146
        %v1148 = vmul.f32 %v1097, 1.442695
        %v1149 = vpow.pop %v1148
        %v1150 = vmul.f32 %v1098, 1.442695
        %v1151 = vpow.pop %v1150
        %v1152 = vmul.f32 %v1099, 1.442695
        %v1153 = vpow.pop %v1152
        %v1154 = vmul.f32 %v1100, 1.442695
        %v1155 = vpow.pop %v1154
        %v1156 = vmul.f32 %v1101, 1.442695
        %v1157 = vpow.pop %v1156
        %v1158 = vmul.f32 %v1102, 1.442695
        %v1159 = vpow.pop %v1158
        %v1160 = vmul.f32 %v1103, 1.442695
        %v1161 = vpow.pop %v1160
        %v1162 = vmul.f32 %v1104, 1.442695
        %v1163 = vpow.pop %v1162
        %v1164 = vmul.f32 %v1105, 1.442695
        %v1165 = vpow.pop %v1164
        %v1166 = vmul.f32 %v1106, 1.442695
        %v1167 = vpow.pop %v1166
        %v1168 = vmul.f32 %v1107, 1.442695
        %v1169 = vpow.pop %v1168
        %v1170 = vmul.f32 %v1108, 1.442695
        %v1171 = vpow.pop %v1170
        %v1172 = vmul.f32 %v1109, 1.442695
        %v1173 = vpow.pop %v1172
        %v1174 = vadd.f32 %v1111, %v1115
        %v1175 = vadd.f32 %v1174, %v1119
        %v1176 = vadd.f32 %v1175, %v1123
        %v1177 = vadd.f32 %v1176, %v1127
        %v1178 = vadd.f32 %v1177, %v1131
        %v1179 = vadd.f32 %v1178, %v1135
        %v1180 = vadd.f32 %v1179, %v1139
        %v1181 = vadd.f32 %v1180, %v1143
        %v1182 = vadd.f32 %v1181, %v1147
        %v1183 = vadd.f32 %v1182, %v1151
        %v1184 = vadd.f32 %v1183, %v1155
        %v1185 = vadd.f32 %v1184, %v1159
        %v1186 = vadd.f32 %v1185, %v1163
        %v1187 = vadd.f32 %v1186, %v1167
        %v1188 = vadd.f32 %v1187, %v1171
        %v1189 = vadd.f32 %v1113, %v1117
        %v1190 = vadd.f32 %v1189, %v1121
        %v1191 = vadd.f32 %v1190, %v1125
        %v1192 = vadd.f32 %v1191, %v1129
        %v1193 = vadd.f32 %v1192, %v1133
        %v1194 = vadd.f32 %v1193, %v1137
        %v1195 = vadd.f32 %v1194, %v1141
        %v1196 = vadd.f32 %v1195, %v1145
        %v1197 = vadd.f32 %v1196, %v1149
        %v1198 = vadd.f32 %v1197, %v1153
        %v1199 = vadd.f32 %v1198, %v1157
        %v1200 = vadd.f32 %v1199, %v1161
        %v1201 = vadd.f32 %v1200, %v1165
        %v1202 = vadd.f32 %v1201, %v1169
        %v1203 = vadd.f32 %v1202, %v1173
        %v1204 = vrcp.pop %v1188
        %v1205 = vrcp.pop %v1203
        %s1206 = scalar_lea.vmem %s222, 64 [#allocation2]
        %v1207 = vld [vmem:[%s1206] sm:$0xff]
        %v1208 = vld [vmem:[%s1206 + $0x8] sm:$0xff]
        %v1211 = vcombine.high %v1207, %v1207
        %v1213 = vunpack.c.l.s4 1966171168
        %v1214 = vunpack.c.0.s8 %v1213
        %v1215 = vlaneseq
        %v1216 = vshrl.u32 %v1215, 7
        %v1217 = vsub.s32 %v1214, %v1216
        %v1218 = vrot.slane %v1207, %v1217
        %v1220 = vunpack.c.l.s4 1966171168
        %v1221 = vunpack.c.0.s8 %v1220
        %v1222 = vlaneseq
        %v1223 = vshrl.u32 %v1222, 7
        %v1224 = vsub.s32 %v1221, %v1223
        %v1225 = vrot.slane %v1211, %v1224
        %v1226 = vcombine.high %v1218, %v1218
        %v1227 = vcombine.high %v1225, %v1225
        %v1229 = vunpack.c.l.s4 1966171168
        %v1230 = vunpack.c.0.s8 %v1229
        %v1231 = vlaneseq
        %v1232 = vshrl.u32 %v1231, 7
        %v1233 = vsub.s32 %v1230, %v1232
        %v1234 = vrot.slane %v1218, %v1233
        %v1236 = vunpack.c.l.s4 1966171168
        %v1237 = vunpack.c.0.s8 %v1236
        %v1238 = vlaneseq
        %v1239 = vshrl.u32 %v1238, 7
        %v1240 = vsub.s32 %v1237, %v1239
        %v1241 = vrot.slane %v1225, %v1240
        %v1243 = vunpack.c.l.s4 1966171168
        %v1244 = vunpack.c.0.s8 %v1243
        %v1245 = vlaneseq
        %v1246 = vshrl.u32 %v1245, 7
        %v1247 = vsub.s32 %v1244, %v1246
        %v1248 = vrot.slane %v1226, %v1247
        %v1250 = vunpack.c.l.s4 1966171168
        %v1251 = vunpack.c.0.s8 %v1250
        %v1252 = vlaneseq
        %v1253 = vshrl.u32 %v1252, 7
        %v1254 = vsub.s32 %v1251, %v1253
        %v1255 = vrot.slane %v1227, %v1254
        %v1256 = vcombine.high %v1234, %v1234
        %v1257 = vcombine.high %v1241, %v1241
        %v1258 = vcombine.high %v1248, %v1248
        %v1259 = vcombine.high %v1255, %v1255
        %v1260 = vcombine.high %v1208, %v1208
        %v1262 = vunpack.c.l.s4 1966171168
        %v1263 = vunpack.c.0.s8 %v1262
        %v1264 = vlaneseq
        %v1265 = vshrl.u32 %v1264, 7
        %v1266 = vsub.s32 %v1263, %v1265
        %v1267 = vrot.slane %v1208, %v1266
        %v1269 = vunpack.c.l.s4 1966171168
        %v1270 = vunpack.c.0.s8 %v1269
        %v1271 = vlaneseq
        %v1272 = vshrl.u32 %v1271, 7
        %v1273 = vsub.s32 %v1270, %v1272
        %v1274 = vrot.slane %v1260, %v1273
        %v1275 = vcombine.high %v1267, %v1267
        %v1276 = vcombine.high %v1274, %v1274
        %v1278 = vunpack.c.l.s4 1966171168
        %v1279 = vunpack.c.0.s8 %v1278
        %v1280 = vlaneseq
        %v1281 = vshrl.u32 %v1280, 7
        %v1282 = vsub.s32 %v1279, %v1281
        %v1283 = vrot.slane %v1267, %v1282
        %v1285 = vunpack.c.l.s4 1966171168
        %v1286 = vunpack.c.0.s8 %v1285
        %v1287 = vlaneseq
        %v1288 = vshrl.u32 %v1287, 7
        %v1289 = vsub.s32 %v1286, %v1288
        %v1290 = vrot.slane %v1274, %v1289
        %v1292 = vunpack.c.l.s4 1966171168
        %v1293 = vunpack.c.0.s8 %v1292
        %v1294 = vlaneseq
        %v1295 = vshrl.u32 %v1294, 7
        %v1296 = vsub.s32 %v1293, %v1295
        %v1297 = vrot.slane %v1275, %v1296
        %v1299 = vunpack.c.l.s4 1966171168
        %v1300 = vunpack.c.0.s8 %v1299
        %v1301 = vlaneseq
        %v1302 = vshrl.u32 %v1301, 7
        %v1303 = vsub.s32 %v1300, %v1302
        %v1304 = vrot.slane %v1276, %v1303
        %v1305 = vcombine.high %v1283, %v1283
        %v1306 = vcombine.high %v1290, %v1290
        %v1307 = vcombine.high %v1297, %v1297
        %v1308 = vcombine.high %v1304, %v1304
        %v1309 = vld [vmem:[#allocation8] sm:$0xff]
        %v1310 = vld [vmem:[#allocation8 + $0x8] sm:$0xff]
        %v1311 = vld [vmem:[#allocation8 + $0x10] sm:$0xff]
        %v1312 = vld [vmem:[#allocation8 + $0x18] sm:$0xff]
        %v1313 = vld [vmem:[#allocation8 + $0x20] sm:$0xff]
        %v1314 = vld [vmem:[#allocation8 + $0x28] sm:$0xff]
        %v1315 = vld [vmem:[#allocation8 + $0x30] sm:$0xff]
        %v1316 = vld [vmem:[#allocation8 + $0x38] sm:$0xff]
        %v1317 = vld [vmem:[#allocation8 + $0x40] sm:$0xff]
        %v1318 = vld [vmem:[#allocation8 + $0x48] sm:$0xff]
        %v1319 = vld [vmem:[#allocation8 + $0x50] sm:$0xff]
        %v1320 = vld [vmem:[#allocation8 + $0x58] sm:$0xff]
        %v1321 = vld [vmem:[#allocation8 + $0x60] sm:$0xff]
        %v1322 = vld [vmem:[#allocation8 + $0x68] sm:$0xff]
        %v1323 = vld [vmem:[#allocation8 + $0x70] sm:$0xff]
        %v1324 = vld [vmem:[#allocation8 + $0x78] sm:$0xff]
        %v1325 = vld [vmem:[#allocation8 + $0x80] sm:$0xff]
        %v1326 = vld [vmem:[#allocation8 + $0x88] sm:$0xff]
        %v1327 = vld [vmem:[#allocation8 + $0x90] sm:$0xff]
        %v1328 = vld [vmem:[#allocation8 + $0x98] sm:$0xff]
        %v1329 = vld [vmem:[#allocation8 + $0xa0] sm:$0xff]
        %v1330 = vld [vmem:[#allocation8 + $0xa8] sm:$0xff]
        %v1331 = vld [vmem:[#allocation8 + $0xb0] sm:$0xff]
        %v1332 = vld [vmem:[#allocation8 + $0xb8] sm:$0xff]
        %v1333 = vld [vmem:[#allocation8 + $0xc0] sm:$0xff]
        %v1334 = vld [vmem:[#allocation8 + $0xc8] sm:$0xff]
        %v1335 = vld [vmem:[#allocation8 + $0xd0] sm:$0xff]
        %v1336 = vld [vmem:[#allocation8 + $0xd8] sm:$0xff]
        %v1337 = vld [vmem:[#allocation8 + $0xe0] sm:$0xff]
        %v1338 = vld [vmem:[#allocation8 + $0xe8] sm:$0xff]
        %v1339 = vld [vmem:[#allocation8 + $0xf0] sm:$0xff]
        %v1340 = vld [vmem:[#allocation8 + $0xf8] sm:$0xff]
        %v1341 = vlaneseq
        %v1342 = vshrl.u32 %v1341, 7
        %v1343 = vsub.s32 0, %v1342
        %v1344 = vrot.slane %v1234, %v1343
        %v1345 = vlaneseq
        %v1346 = vshrl.u32 %v1345, 7
        %v1347 = vsub.s32 0, %v1346
        %v1348 = vrot.slane %v1248, %v1347
        %v1349 = vlaneseq
        %v1350 = vshrl.u32 %v1349, 7
        %v1351 = vsub.s32 0, %v1350
        %v1352 = vrot.slane %v1256, %v1351
        %v1353 = vlaneseq
        %v1354 = vshrl.u32 %v1353, 7
        %v1355 = vsub.s32 0, %v1354
        %v1356 = vrot.slane %v1258, %v1355
        %v1357 = vlaneseq
        %v1358 = vshrl.u32 %v1357, 7
        %v1359 = vsub.s32 0, %v1358
        %v1360 = vrot.slane %v1241, %v1359
        %v1361 = vlaneseq
        %v1362 = vshrl.u32 %v1361, 7
        %v1363 = vsub.s32 0, %v1362
        %v1364 = vrot.slane %v1255, %v1363
        %v1365 = vlaneseq
        %v1366 = vshrl.u32 %v1365, 7
        %v1367 = vsub.s32 0, %v1366
        %v1368 = vrot.slane %v1257, %v1367
        %v1369 = vlaneseq
        %v1370 = vshrl.u32 %v1369, 7
        %v1371 = vsub.s32 0, %v1370
        %v1372 = vrot.slane %v1259, %v1371
        %v1373 = vlaneseq
        %v1374 = vshrl.u32 %v1373, 7
        %v1375 = vsub.s32 0, %v1374
        %v1376 = vrot.slane %v1283, %v1375
        %v1377 = vlaneseq
        %v1378 = vshrl.u32 %v1377, 7
        %v1379 = vsub.s32 0, %v1378
        %v1380 = vrot.slane %v1297, %v1379
        %v1381 = vlaneseq
        %v1382 = vshrl.u32 %v1381, 7
        %v1383 = vsub.s32 0, %v1382
        %v1384 = vrot.slane %v1305, %v1383
        %v1385 = vlaneseq
        %v1386 = vshrl.u32 %v1385, 7
        %v1387 = vsub.s32 0, %v1386
        %v1388 = vrot.slane %v1307, %v1387
        %v1389 = vlaneseq
        %v1390 = vshrl.u32 %v1389, 7
        %v1391 = vsub.s32 0, %v1390
        %v1392 = vrot.slane %v1290, %v1391
        %v1393 = vlaneseq
        %v1394 = vshrl.u32 %v1393, 7
        %v1395 = vsub.s32 0, %v1394
        %v1396 = vrot.slane %v1304, %v1395
        %v1397 = vlaneseq
        %v1398 = vshrl.u32 %v1397, 7
        %v1399 = vsub.s32 0, %v1398
        %v1400 = vrot.slane %v1306, %v1399
        %v1401 = vlaneseq
        %v1402 = vshrl.u32 %v1401, 7
        %v1403 = vsub.s32 0, %v1402
        %v1404 = vrot.slane %v1308, %v1403
        %v1421 = vadd.f32 %v1344, %v1309
        %v1422 = vadd.f32 %v1344, %v1310
        %v1423 = vadd.f32 %v1348, %v1311
        %v1424 = vadd.f32 %v1348, %v1312
        %v1425 = vadd.f32 %v1352, %v1313
        %v1426 = vadd.f32 %v1352, %v1314
        %v1427 = vadd.f32 %v1356, %v1315
        %v1428 = vadd.f32 %v1356, %v1316
        %v1429 = vadd.f32 %v1360, %v1317
        %v1430 = vadd.f32 %v1360, %v1318
        %v1431 = vadd.f32 %v1364, %v1319
        %v1432 = vadd.f32 %v1364, %v1320
        %v1433 = vadd.f32 %v1368, %v1321
        %v1434 = vadd.f32 %v1368, %v1322
        %v1435 = vadd.f32 %v1372, %v1323
        %v1436 = vadd.f32 %v1372, %v1324
        %v1437 = vadd.f32 %v1376, %v1325
        %v1438 = vadd.f32 %v1376, %v1326
        %v1439 = vadd.f32 %v1380, %v1327
        %v1440 = vadd.f32 %v1380, %v1328
        %v1441 = vadd.f32 %v1384, %v1329
        %v1442 = vadd.f32 %v1384, %v1330
        %v1443 = vadd.f32 %v1388, %v1331
        %v1444 = vadd.f32 %v1388, %v1332
        %v1445 = vadd.f32 %v1392, %v1333
        %v1446 = vadd.f32 %v1392, %v1334
        %v1447 = vadd.f32 %v1396, %v1335
        %v1448 = vadd.f32 %v1396, %v1336
        %v1449 = vadd.f32 %v1400, %v1337
        %v1450 = vadd.f32 %v1400, %v1338
        %v1451 = vadd.f32 %v1404, %v1339
        %v1452 = vadd.f32 %v1404, %v1340
        %v1453 = vmul.f32 %v1111, %v1421
        %v1454 = vmul.f32 %v1113, %v1422
        %v1455 = vmul.f32 %v1115, %v1423
        %v1456 = vmul.f32 %v1117, %v1424
        %v1457 = vmul.f32 %v1119, %v1425
        %v1458 = vmul.f32 %v1121, %v1426
        %v1459 = vmul.f32 %v1123, %v1427
        %v1460 = vmul.f32 %v1125, %v1428
        %v1461 = vmul.f32 %v1127, %v1429
        %v1462 = vmul.f32 %v1129, %v1430
        %v1463 = vmul.f32 %v1131, %v1431
        %v1464 = vmul.f32 %v1133, %v1432
        %v1465 = vmul.f32 %v1135, %v1433
        %v1466 = vmul.f32 %v1137, %v1434
        %v1467 = vmul.f32 %v1139, %v1435
        %v1468 = vmul.f32 %v1141, %v1436
        %v1469 = vmul.f32 %v1143, %v1437
        %v1470 = vmul.f32 %v1145, %v1438
        %v1471 = vmul.f32 %v1147, %v1439
        %v1472 = vmul.f32 %v1149, %v1440
        %v1473 = vmul.f32 %v1151, %v1441
        %v1474 = vmul.f32 %v1153, %v1442
        %v1475 = vmul.f32 %v1155, %v1443
        %v1476 = vmul.f32 %v1157, %v1444
        %v1477 = vmul.f32 %v1159, %v1445
        %v1478 = vmul.f32 %v1161, %v1446
        %v1479 = vmul.f32 %v1163, %v1447
        %v1480 = vmul.f32 %v1165, %v1448
        %v1481 = vmul.f32 %v1167, %v1449
        %v1482 = vmul.f32 %v1169, %v1450
        %v1483 = vmul.f32 %v1171, %v1451
        %v1484 = vmul.f32 %v1173, %v1452
        %v1485 = vadd.f32 %v1453, %v1455
        %v1486 = vadd.f32 %v1485, %v1457
        %v1487 = vadd.f32 %v1486, %v1459
        %v1488 = vadd.f32 %v1487, %v1461
        %v1489 = vadd.f32 %v1488, %v1463
        %v1490 = vadd.f32 %v1489, %v1465
        %v1491 = vadd.f32 %v1490, %v1467
        %v1492 = vadd.f32 %v1491, %v1469
        %v1493 = vadd.f32 %v1492, %v1471
        %v1494 = vadd.f32 %v1493, %v1473
        %v1495 = vadd.f32 %v1494, %v1475
        %v1496 = vadd.f32 %v1495, %v1477
        %v1497 = vadd.f32 %v1496, %v1479
        %v1498 = vadd.f32 %v1497, %v1481
        %v1499 = vadd.f32 %v1498, %v1483
        %v1500 = vadd.f32 %v1454, %v1456
        %v1501 = vadd.f32 %v1500, %v1458
        %v1502 = vadd.f32 %v1501, %v1460
        %v1503 = vadd.f32 %v1502, %v1462
        %v1504 = vadd.f32 %v1503, %v1464
        %v1505 = vadd.f32 %v1504, %v1466
        %v1506 = vadd.f32 %v1505, %v1468
        %v1507 = vadd.f32 %v1506, %v1470
        %v1508 = vadd.f32 %v1507, %v1472
        %v1509 = vadd.f32 %v1508, %v1474
        %v1510 = vadd.f32 %v1509, %v1476
        %v1511 = vadd.f32 %v1510, %v1478
        %v1512 = vadd.f32 %v1511, %v1480
        %v1513 = vadd.f32 %v1512, %v1482
        %v1514 = vadd.f32 %v1513, %v1484
        %v1515 = vmul.f32 %v1499, %v1204
        %v1516 = vmul.f32 %v1514, %v1205
        %1517 = vst [vmem:[%s258] sm:$0xff] %v1515
        %1518 = vst [vmem:[%s258 + $0x8] sm:$0xff] %v1516
        %s1519 = scalar_lea.vmem %s222, 80 [#allocation2]
        %v1520 = vld [vmem:[%s1519] sm:$0xff]
        %v1521 = vld [vmem:[%s1519 + $0x8] sm:$0xff]
        %v1524 = vcombine.high %v1520, %v1520
        %v1526 = vunpack.c.l.s4 1966171168
        %v1527 = vunpack.c.0.s8 %v1526
        %v1528 = vlaneseq
        %v1529 = vshrl.u32 %v1528, 7
        %v1530 = vsub.s32 %v1527, %v1529
        %v1531 = vrot.slane %v1520, %v1530
        %v1533 = vunpack.c.l.s4 1966171168
        %v1534 = vunpack.c.0.s8 %v1533
        %v1535 = vlaneseq
        %v1536 = vshrl.u32 %v1535, 7
        %v1537 = vsub.s32 %v1534, %v1536
        %v1538 = vrot.slane %v1524, %v1537
        %v1539 = vcombine.high %v1531, %v1531
        %v1540 = vcombine.high %v1538, %v1538
        %v1542 = vunpack.c.l.s4 1966171168
        %v1543 = vunpack.c.0.s8 %v1542
        %v1544 = vlaneseq
        %v1545 = vshrl.u32 %v1544, 7
        %v1546 = vsub.s32 %v1543, %v1545
        %v1547 = vrot.slane %v1531, %v1546
        %v1549 = vunpack.c.l.s4 1966171168
        %v1550 = vunpack.c.0.s8 %v1549
        %v1551 = vlaneseq
        %v1552 = vshrl.u32 %v1551, 7
        %v1553 = vsub.s32 %v1550, %v1552
        %v1554 = vrot.slane %v1538, %v1553
        %v1556 = vunpack.c.l.s4 1966171168
        %v1557 = vunpack.c.0.s8 %v1556
        %v1558 = vlaneseq
        %v1559 = vshrl.u32 %v1558, 7
        %v1560 = vsub.s32 %v1557, %v1559
        %v1561 = vrot.slane %v1539, %v1560
        %v1563 = vunpack.c.l.s4 1966171168
        %v1564 = vunpack.c.0.s8 %v1563
        %v1565 = vlaneseq
        %v1566 = vshrl.u32 %v1565, 7
        %v1567 = vsub.s32 %v1564, %v1566
        %v1568 = vrot.slane %v1540, %v1567
        %v1569 = vcombine.high %v1547, %v1547
        %v1570 = vcombine.high %v1554, %v1554
        %v1571 = vcombine.high %v1561, %v1561
        %v1572 = vcombine.high %v1568, %v1568
        %v1573 = vcombine.high %v1521, %v1521
        %v1575 = vunpack.c.l.s4 1966171168
        %v1576 = vunpack.c.0.s8 %v1575
        %v1577 = vlaneseq
        %v1578 = vshrl.u32 %v1577, 7
        %v1579 = vsub.s32 %v1576, %v1578
        %v1580 = vrot.slane %v1521, %v1579
        %v1582 = vunpack.c.l.s4 1966171168
        %v1583 = vunpack.c.0.s8 %v1582
        %v1584 = vlaneseq
        %v1585 = vshrl.u32 %v1584, 7
        %v1586 = vsub.s32 %v1583, %v1585
        %v1587 = vrot.slane %v1573, %v1586
        %v1588 = vcombine.high %v1580, %v1580
        %v1589 = vcombine.high %v1587, %v1587
        %v1591 = vunpack.c.l.s4 1966171168
        %v1592 = vunpack.c.0.s8 %v1591
        %v1593 = vlaneseq
        %v1594 = vshrl.u32 %v1593, 7
        %v1595 = vsub.s32 %v1592, %v1594
        %v1596 = vrot.slane %v1580, %v1595
        %v1598 = vunpack.c.l.s4 1966171168
        %v1599 = vunpack.c.0.s8 %v1598
        %v1600 = vlaneseq
        %v1601 = vshrl.u32 %v1600, 7
        %v1602 = vsub.s32 %v1599, %v1601
        %v1603 = vrot.slane %v1587, %v1602
        %v1605 = vunpack.c.l.s4 1966171168
        %v1606 = vunpack.c.0.s8 %v1605
        %v1607 = vlaneseq
        %v1608 = vshrl.u32 %v1607, 7
        %v1609 = vsub.s32 %v1606, %v1608
        %v1610 = vrot.slane %v1588, %v1609
        %v1612 = vunpack.c.l.s4 1966171168
        %v1613 = vunpack.c.0.s8 %v1612
        %v1614 = vlaneseq
        %v1615 = vshrl.u32 %v1614, 7
        %v1616 = vsub.s32 %v1613, %v1615
        %v1617 = vrot.slane %v1589, %v1616
        %v1618 = vcombine.high %v1596, %v1596
        %v1619 = vcombine.high %v1603, %v1603
        %v1620 = vcombine.high %v1610, %v1610
        %v1621 = vcombine.high %v1617, %v1617
        %s1622 = scalar_lea.vmem [#allocation8], 256
        %v1623 = vld [vmem:[%s1622] sm:$0xff]
        %v1624 = vld [vmem:[%s1622 + $0x8] sm:$0xff]
        %v1625 = vld [vmem:[%s1622 + $0x10] sm:$0xff]
        %v1626 = vld [vmem:[%s1622 + $0x18] sm:$0xff]
        %v1627 = vld [vmem:[%s1622 + $0x20] sm:$0xff]
        %v1628 = vld [vmem:[%s1622 + $0x28] sm:$0xff]
        %v1629 = vld [vmem:[%s1622 + $0x30] sm:$0xff]
        %v1630 = vld [vmem:[%s1622 + $0x38] sm:$0xff]
        %v1631 = vld [vmem:[%s1622 + $0x40] sm:$0xff]
        %v1632 = vld [vmem:[%s1622 + $0x48] sm:$0xff]
        %v1633 = vld [vmem:[%s1622 + $0x50] sm:$0xff]
        %v1634 = vld [vmem:[%s1622 + $0x58] sm:$0xff]
        %v1635 = vld [vmem:[%s1622 + $0x60] sm:$0xff]
        %v1636 = vld [vmem:[%s1622 + $0x68] sm:$0xff]
        %v1637 = vld [vmem:[%s1622 + $0x70] sm:$0xff]
        %v1638 = vld [vmem:[%s1622 + $0x78] sm:$0xff]
        %v1639 = vld [vmem:[%s1622 + $0x80] sm:$0xff]
        %v1640 = vld [vmem:[%s1622 + $0x88] sm:$0xff]
        %v1641 = vld [vmem:[%s1622 + $0x90] sm:$0xff]
        %v1642 = vld [vmem:[%s1622 + $0x98] sm:$0xff]
        %v1643 = vld [vmem:[%s1622 + $0xa0] sm:$0xff]
        %v1644 = vld [vmem:[%s1622 + $0xa8] sm:$0xff]
        %v1645 = vld [vmem:[%s1622 + $0xb0] sm:$0xff]
        %v1646 = vld [vmem:[%s1622 + $0xb8] sm:$0xff]
        %v1647 = vld [vmem:[%s1622 + $0xc0] sm:$0xff]
        %v1648 = vld [vmem:[%s1622 + $0xc8] sm:$0xff]
        %v1649 = vld [vmem:[%s1622 + $0xd0] sm:$0xff]
        %v1650 = vld [vmem:[%s1622 + $0xd8] sm:$0xff]
        %v1651 = vld [vmem:[%s1622 + $0xe0] sm:$0xff]
        %v1652 = vld [vmem:[%s1622 + $0xe8] sm:$0xff]
        %v1653 = vld [vmem:[%s1622 + $0xf0] sm:$0xff]
        %v1654 = vld [vmem:[%s1622 + $0xf8] sm:$0xff]
        %v1655 = vlaneseq
        %v1656 = vshrl.u32 %v1655, 7
        %v1657 = vsub.s32 0, %v1656
        %v1658 = vrot.slane %v1547, %v1657
        %v1659 = vlaneseq
        %v1660 = vshrl.u32 %v1659, 7
        %v1661 = vsub.s32 0, %v1660
        %v1662 = vrot.slane %v1561, %v1661
        %v1663 = vlaneseq
        %v1664 = vshrl.u32 %v1663, 7
        %v1665 = vsub.s32 0, %v1664
        %v1666 = vrot.slane %v1569, %v1665
        %v1667 = vlaneseq
        %v1668 = vshrl.u32 %v1667, 7
        %v1669 = vsub.s32 0, %v1668
        %v1670 = vrot.slane %v1571, %v1669
        %v1671 = vlaneseq
        %v1672 = vshrl.u32 %v1671, 7
        %v1673 = vsub.s32 0, %v1672
        %v1674 = vrot.slane %v1554, %v1673
        %v1675 = vlaneseq
        %v1676 = vshrl.u32 %v1675, 7
        %v1677 = vsub.s32 0, %v1676
        %v1678 = vrot.slane %v1568, %v1677
        %v1679 = vlaneseq
        %v1680 = vshrl.u32 %v1679, 7
        %v1681 = vsub.s32 0, %v1680
        %v1682 = vrot.slane %v1570, %v1681
        %v1683 = vlaneseq
        %v1684 = vshrl.u32 %v1683, 7
        %v1685 = vsub.s32 0, %v1684
        %v1686 = vrot.slane %v1572, %v1685
        %v1687 = vlaneseq
        %v1688 = vshrl.u32 %v1687, 7
        %v1689 = vsub.s32 0, %v1688
        %v1690 = vrot.slane %v1596, %v1689
        %v1691 = vlaneseq
        %v1692 = vshrl.u32 %v1691, 7
        %v1693 = vsub.s32 0, %v1692
        %v1694 = vrot.slane %v1610, %v1693
        %v1695 = vlaneseq
        %v1696 = vshrl.u32 %v1695, 7
        %v1697 = vsub.s32 0, %v1696
        %v1698 = vrot.slane %v1618, %v1697
        %v1699 = vlaneseq
        %v1700 = vshrl.u32 %v1699, 7
        %v1701 = vsub.s32 0, %v1700
        %v1702 = vrot.slane %v1620, %v1701
        %v1703 = vlaneseq
        %v1704 = vshrl.u32 %v1703, 7
        %v1705 = vsub.s32 0, %v1704
        %v1706 = vrot.slane %v1603, %v1705
        %v1707 = vlaneseq
        %v1708 = vshrl.u32 %v1707, 7
        %v1709 = vsub.s32 0, %v1708
        %v1710 = vrot.slane %v1617, %v1709
        %v1711 = vlaneseq
        %v1712 = vshrl.u32 %v1711, 7
        %v1713 = vsub.s32 0, %v1712
        %v1714 = vrot.slane %v1619, %v1713
        %v1715 = vlaneseq
        %v1716 = vshrl.u32 %v1715, 7
        %v1717 = vsub.s32 0, %v1716
        %v1718 = vrot.slane %v1621, %v1717
        %v1735 = vadd.f32 %v1658, %v1623
        %v1736 = vadd.f32 %v1658, %v1624
        %v1737 = vadd.f32 %v1662, %v1625
        %v1738 = vadd.f32 %v1662, %v1626
        %v1739 = vadd.f32 %v1666, %v1627
        %v1740 = vadd.f32 %v1666, %v1628
        %v1741 = vadd.f32 %v1670, %v1629
        %v1742 = vadd.f32 %v1670, %v1630
        %v1743 = vadd.f32 %v1674, %v1631
        %v1744 = vadd.f32 %v1674, %v1632
        %v1745 = vadd.f32 %v1678, %v1633
        %v1746 = vadd.f32 %v1678, %v1634
        %v1747 = vadd.f32 %v1682, %v1635
        %v1748 = vadd.f32 %v1682, %v1636
        %v1749 = vadd.f32 %v1686, %v1637
        %v1750 = vadd.f32 %v1686, %v1638
        %v1751 = vadd.f32 %v1690, %v1639
        %v1752 = vadd.f32 %v1690, %v1640
        %v1753 = vadd.f32 %v1694, %v1641
        %v1754 = vadd.f32 %v1694, %v1642
        %v1755 = vadd.f32 %v1698, %v1643
        %v1756 = vadd.f32 %v1698, %v1644
        %v1757 = vadd.f32 %v1702, %v1645
        %v1758 = vadd.f32 %v1702, %v1646
        %v1759 = vadd.f32 %v1706, %v1647
        %v1760 = vadd.f32 %v1706, %v1648
        %v1761 = vadd.f32 %v1710, %v1649
        %v1762 = vadd.f32 %v1710, %v1650
        %v1763 = vadd.f32 %v1714, %v1651
        %v1764 = vadd.f32 %v1714, %v1652
        %v1765 = vadd.f32 %v1718, %v1653
        %v1766 = vadd.f32 %v1718, %v1654
        %v1767 = vmul.f32 %v1111, %v1735
        %v1768 = vmul.f32 %v1113, %v1736
        %v1769 = vmul.f32 %v1115, %v1737
        %v1770 = vmul.f32 %v1117, %v1738
        %v1771 = vmul.f32 %v1119, %v1739
        %v1772 = vmul.f32 %v1121, %v1740
        %v1773 = vmul.f32 %v1123, %v1741
        %v1774 = vmul.f32 %v1125, %v1742
        %v1775 = vmul.f32 %v1127, %v1743
        %v1776 = vmul.f32 %v1129, %v1744
        %v1777 = vmul.f32 %v1131, %v1745
        %v1778 = vmul.f32 %v1133, %v1746
        %v1779 = vmul.f32 %v1135, %v1747
        %v1780 = vmul.f32 %v1137, %v1748
        %v1781 = vmul.f32 %v1139, %v1749
        %v1782 = vmul.f32 %v1141, %v1750
        %v1783 = vmul.f32 %v1143, %v1751
        %v1784 = vmul.f32 %v1145, %v1752
        %v1785 = vmul.f32 %v1147, %v1753
        %v1786 = vmul.f32 %v1149, %v1754
        %v1787 = vmul.f32 %v1151, %v1755
        %v1788 = vmul.f32 %v1153, %v1756
        %v1789 = vmul.f32 %v1155, %v1757
        %v1790 = vmul.f32 %v1157, %v1758
        %v1791 = vmul.f32 %v1159, %v1759
        %v1792 = vmul.f32 %v1161, %v1760
        %v1793 = vmul.f32 %v1163, %v1761
        %v1794 = vmul.f32 %v1165, %v1762
        %v1795 = vmul.f32 %v1167, %v1763
        %v1796 = vmul.f32 %v1169, %v1764
        %v1797 = vmul.f32 %v1171, %v1765
        %v1798 = vmul.f32 %v1173, %v1766
        %v1799 = vadd.f32 %v1767, %v1769
        %v1800 = vadd.f32 %v1799, %v1771
        %v1801 = vadd.f32 %v1800, %v1773
        %v1802 = vadd.f32 %v1801, %v1775
        %v1803 = vadd.f32 %v1802, %v1777
        %v1804 = vadd.f32 %v1803, %v1779
        %v1805 = vadd.f32 %v1804, %v1781
        %v1806 = vadd.f32 %v1805, %v1783
        %v1807 = vadd.f32 %v1806, %v1785
        %v1808 = vadd.f32 %v1807, %v1787
        %v1809 = vadd.f32 %v1808, %v1789
        %v1810 = vadd.f32 %v1809, %v1791
        %v1811 = vadd.f32 %v1810, %v1793
        %v1812 = vadd.f32 %v1811, %v1795
        %v1813 = vadd.f32 %v1812, %v1797
        %v1814 = vadd.f32 %v1768, %v1770
        %v1815 = vadd.f32 %v1814, %v1772
        %v1816 = vadd.f32 %v1815, %v1774
        %v1817 = vadd.f32 %v1816, %v1776
        %v1818 = vadd.f32 %v1817, %v1778
        %v1819 = vadd.f32 %v1818, %v1780
        %v1820 = vadd.f32 %v1819, %v1782
        %v1821 = vadd.f32 %v1820, %v1784
        %v1822 = vadd.f32 %v1821, %v1786
        %v1823 = vadd.f32 %v1822, %v1788
        %v1824 = vadd.f32 %v1823, %v1790
        %v1825 = vadd.f32 %v1824, %v1792
        %v1826 = vadd.f32 %v1825, %v1794
        %v1827 = vadd.f32 %v1826, %v1796
        %v1828 = vadd.f32 %v1827, %v1798
        %v1829 = vmul.f32 %v1813, %v1204
        %v1830 = vmul.f32 %v1828, %v1205
        %s1831 = scalar_lea.vmem %s258, 16 [#allocation10]
        %1832 = vst [vmem:[%s1831] sm:$0xff] %v1829
        %1833 = vst [vmem:[%s1831 + $0x8] sm:$0xff] %v1830
        %s1834 = scalar_lea.vmem %s222, 96 [#allocation2]
        %v1835 = vld [vmem:[%s1834] sm:$0xff]
        %v1836 = vld [vmem:[%s1834 + $0x8] sm:$0xff]
        %v1839 = vcombine.high %v1835, %v1835
        %v1841 = vunpack.c.l.s4 1966171168
        %v1842 = vunpack.c.0.s8 %v1841
        %v1843 = vlaneseq
        %v1844 = vshrl.u32 %v1843, 7
        %v1845 = vsub.s32 %v1842, %v1844
        %v1846 = vrot.slane %v1835, %v1845
        %v1848 = vunpack.c.l.s4 1966171168
        %v1849 = vunpack.c.0.s8 %v1848
        %v1850 = vlaneseq
        %v1851 = vshrl.u32 %v1850, 7
        %v1852 = vsub.s32 %v1849, %v1851
        %v1853 = vrot.slane %v1839, %v1852
        %v1854 = vcombine.high %v1846, %v1846
        %v1855 = vcombine.high %v1853, %v1853
        %v1857 = vunpack.c.l.s4 1966171168
        %v1858 = vunpack.c.0.s8 %v1857
        %v1859 = vlaneseq
        %v1860 = vshrl.u32 %v1859, 7
        %v1861 = vsub.s32 %v1858, %v1860
        %v1862 = vrot.slane %v1846, %v1861
        %v1864 = vunpack.c.l.s4 1966171168
        %v1865 = vunpack.c.0.s8 %v1864
        %v1866 = vlaneseq
        %v1867 = vshrl.u32 %v1866, 7
        %v1868 = vsub.s32 %v1865, %v1867
        %v1869 = vrot.slane %v1853, %v1868
        %v1871 = vunpack.c.l.s4 1966171168
        %v1872 = vunpack.c.0.s8 %v1871
        %v1873 = vlaneseq
        %v1874 = vshrl.u32 %v1873, 7
        %v1875 = vsub.s32 %v1872, %v1874
        %v1876 = vrot.slane %v1854, %v1875
        %v1878 = vunpack.c.l.s4 1966171168
        %v1879 = vunpack.c.0.s8 %v1878
        %v1880 = vlaneseq
        %v1881 = vshrl.u32 %v1880, 7
        %v1882 = vsub.s32 %v1879, %v1881
        %v1883 = vrot.slane %v1855, %v1882
        %v1884 = vcombine.high %v1862, %v1862
        %v1885 = vcombine.high %v1869, %v1869
        %v1886 = vcombine.high %v1876, %v1876
        %v1887 = vcombine.high %v1883, %v1883
        %v1888 = vcombine.high %v1836, %v1836
        %v1890 = vunpack.c.l.s4 1966171168
        %v1891 = vunpack.c.0.s8 %v1890
        %v1892 = vlaneseq
        %v1893 = vshrl.u32 %v1892, 7
        %v1894 = vsub.s32 %v1891, %v1893
        %v1895 = vrot.slane %v1836, %v1894
        %v1897 = vunpack.c.l.s4 1966171168
        %v1898 = vunpack.c.0.s8 %v1897
        %v1899 = vlaneseq
        %v1900 = vshrl.u32 %v1899, 7
        %v1901 = vsub.s32 %v1898, %v1900
        %v1902 = vrot.slane %v1888, %v1901
        %v1903 = vcombine.high %v1895, %v1895
        %v1904 = vcombine.high %v1902, %v1902
        %v1906 = vunpack.c.l.s4 1966171168
        %v1907 = vunpack.c.0.s8 %v1906
        %v1908 = vlaneseq
        %v1909 = vshrl.u32 %v1908, 7
        %v1910 = vsub.s32 %v1907, %v1909
        %v1911 = vrot.slane %v1895, %v1910
        %v1913 = vunpack.c.l.s4 1966171168
        %v1914 = vunpack.c.0.s8 %v1913
        %v1915 = vlaneseq
        %v1916 = vshrl.u32 %v1915, 7
        %v1917 = vsub.s32 %v1914, %v1916
        %v1918 = vrot.slane %v1902, %v1917
        %v1920 = vunpack.c.l.s4 1966171168
        %v1921 = vunpack.c.0.s8 %v1920
        %v1922 = vlaneseq
        %v1923 = vshrl.u32 %v1922, 7
        %v1924 = vsub.s32 %v1921, %v1923
        %v1925 = vrot.slane %v1903, %v1924
        %v1927 = vunpack.c.l.s4 1966171168
        %v1928 = vunpack.c.0.s8 %v1927
        %v1929 = vlaneseq
        %v1930 = vshrl.u32 %v1929, 7
        %v1931 = vsub.s32 %v1928, %v1930
        %v1932 = vrot.slane %v1904, %v1931
        %v1933 = vcombine.high %v1911, %v1911
        %v1934 = vcombine.high %v1918, %v1918
        %v1935 = vcombine.high %v1925, %v1925
        %v1936 = vcombine.high %v1932, %v1932
        %s1937 = scalar_lea.vmem [#allocation8], 512
        %v1938 = vld [vmem:[%s1937] sm:$0xff]
        %v1939 = vld [vmem:[%s1937 + $0x8] sm:$0xff]
        %v1940 = vld [vmem:[%s1937 + $0x10] sm:$0xff]
        %v1941 = vld [vmem:[%s1937 + $0x18] sm:$0xff]
        %v1942 = vld [vmem:[%s1937 + $0x20] sm:$0xff]
        %v1943 = vld [vmem:[%s1937 + $0x28] sm:$0xff]
        %v1944 = vld [vmem:[%s1937 + $0x30] sm:$0xff]
        %v1945 = vld [vmem:[%s1937 + $0x38] sm:$0xff]
        %v1946 = vld [vmem:[%s1937 + $0x40] sm:$0xff]
        %v1947 = vld [vmem:[%s1937 + $0x48] sm:$0xff]
        %v1948 = vld [vmem:[%s1937 + $0x50] sm:$0xff]
        %v1949 = vld [vmem:[%s1937 + $0x58] sm:$0xff]
        %v1950 = vld [vmem:[%s1937 + $0x60] sm:$0xff]
        %v1951 = vld [vmem:[%s1937 + $0x68] sm:$0xff]
        %v1952 = vld [vmem:[%s1937 + $0x70] sm:$0xff]
        %v1953 = vld [vmem:[%s1937 + $0x78] sm:$0xff]
        %v1954 = vld [vmem:[%s1937 + $0x80] sm:$0xff]
        %v1955 = vld [vmem:[%s1937 + $0x88] sm:$0xff]
        %v1956 = vld [vmem:[%s1937 + $0x90] sm:$0xff]
        %v1957 = vld [vmem:[%s1937 + $0x98] sm:$0xff]
        %v1958 = vld [vmem:[%s1937 + $0xa0] sm:$0xff]
        %v1959 = vld [vmem:[%s1937 + $0xa8] sm:$0xff]
        %v1960 = vld [vmem:[%s1937 + $0xb0] sm:$0xff]
        %v1961 = vld [vmem:[%s1937 + $0xb8] sm:$0xff]
        %v1962 = vld [vmem:[%s1937 + $0xc0] sm:$0xff]
        %v1963 = vld [vmem:[%s1937 + $0xc8] sm:$0xff]
        %v1964 = vld [vmem:[%s1937 + $0xd0] sm:$0xff]
        %v1965 = vld [vmem:[%s1937 + $0xd8] sm:$0xff]
        %v1966 = vld [vmem:[%s1937 + $0xe0] sm:$0xff]
        %v1967 = vld [vmem:[%s1937 + $0xe8] sm:$0xff]
        %v1968 = vld [vmem:[%s1937 + $0xf0] sm:$0xff]
        %v1969 = vld [vmem:[%s1937 + $0xf8] sm:$0xff]
        %v1970 = vlaneseq
        %v1971 = vshrl.u32 %v1970, 7
        %v1972 = vsub.s32 0, %v1971
        %v1973 = vrot.slane %v1862, %v1972
        %v1974 = vlaneseq
        %v1975 = vshrl.u32 %v1974, 7
        %v1976 = vsub.s32 0, %v1975
        %v1977 = vrot.slane %v1876, %v1976
        %v1978 = vlaneseq
        %v1979 = vshrl.u32 %v1978, 7
        %v1980 = vsub.s32 0, %v1979
        %v1981 = vrot.slane %v1884, %v1980
        %v1982 = vlaneseq
        %v1983 = vshrl.u32 %v1982, 7
        %v1984 = vsub.s32 0, %v1983
        %v1985 = vrot.slane %v1886, %v1984
        %v1986 = vlaneseq
        %v1987 = vshrl.u32 %v1986, 7
        %v1988 = vsub.s32 0, %v1987
        %v1989 = vrot.slane %v1869, %v1988
        %v1990 = vlaneseq
        %v1991 = vshrl.u32 %v1990, 7
        %v1992 = vsub.s32 0, %v1991
        %v1993 = vrot.slane %v1883, %v1992
        %v1994 = vlaneseq
        %v1995 = vshrl.u32 %v1994, 7
        %v1996 = vsub.s32 0, %v1995
        %v1997 = vrot.slane %v1885, %v1996
        %v1998 = vlaneseq
        %v1999 = vshrl.u32 %v1998, 7
        %v2000 = vsub.s32 0, %v1999
        %v2001 = vrot.slane %v1887, %v2000
        %v2002 = vlaneseq
        %v2003 = vshrl.u32 %v2002, 7
        %v2004 = vsub.s32 0, %v2003
        %v2005 = vrot.slane %v1911, %v2004
        %v2006 = vlaneseq
        %v2007 = vshrl.u32 %v2006, 7
        %v2008 = vsub.s32 0, %v2007
        %v2009 = vrot.slane %v1925, %v2008
        %v2010 = vlaneseq
        %v2011 = vshrl.u32 %v2010, 7
        %v2012 = vsub.s32 0, %v2011
        %v2013 = vrot.slane %v1933, %v2012
        %v2014 = vlaneseq
        %v2015 = vshrl.u32 %v2014, 7
        %v2016 = vsub.s32 0, %v2015
        %v2017 = vrot.slane %v1935, %v2016
        %v2018 = vlaneseq
        %v2019 = vshrl.u32 %v2018, 7
        %v2020 = vsub.s32 0, %v2019
        %v2021 = vrot.slane %v1918, %v2020
        %v2022 = vlaneseq
        %v2023 = vshrl.u32 %v2022, 7
        %v2024 = vsub.s32 0, %v2023
        %v2025 = vrot.slane %v1932, %v2024
        %v2026 = vlaneseq
        %v2027 = vshrl.u32 %v2026, 7
        %v2028 = vsub.s32 0, %v2027
        %v2029 = vrot.slane %v1934, %v2028
        %v2030 = vlaneseq
        %v2031 = vshrl.u32 %v2030, 7
        %v2032 = vsub.s32 0, %v2031
        %v2033 = vrot.slane %v1936, %v2032
        %v2050 = vadd.f32 %v1973, %v1938
        %v2051 = vadd.f32 %v1973, %v1939
        %v2052 = vadd.f32 %v1977, %v1940
        %v2053 = vadd.f32 %v1977, %v1941
        %v2054 = vadd.f32 %v1981, %v1942
        %v2055 = vadd.f32 %v1981, %v1943
        %v2056 = vadd.f32 %v1985, %v1944
        %v2057 = vadd.f32 %v1985, %v1945
        %v2058 = vadd.f32 %v1989, %v1946
        %v2059 = vadd.f32 %v1989, %v1947
        %v2060 = vadd.f32 %v1993, %v1948
        %v2061 = vadd.f32 %v1993, %v1949
        %v2062 = vadd.f32 %v1997, %v1950
        %v2063 = vadd.f32 %v1997, %v1951
        %v2064 = vadd.f32 %v2001, %v1952
        %v2065 = vadd.f32 %v2001, %v1953
        %v2066 = vadd.f32 %v2005, %v1954
        %v2067 = vadd.f32 %v2005, %v1955
        %v2068 = vadd.f32 %v2009, %v1956
        %v2069 = vadd.f32 %v2009, %v1957
        %v2070 = vadd.f32 %v2013, %v1958
        %v2071 = vadd.f32 %v2013, %v1959
        %v2072 = vadd.f32 %v2017, %v1960
        %v2073 = vadd.f32 %v2017, %v1961
        %v2074 = vadd.f32 %v2021, %v1962
        %v2075 = vadd.f32 %v2021, %v1963
        %v2076 = vadd.f32 %v2025, %v1964
        %v2077 = vadd.f32 %v2025, %v1965
        %v2078 = vadd.f32 %v2029, %v1966
        %v2079 = vadd.f32 %v2029, %v1967
        %v2080 = vadd.f32 %v2033, %v1968
        %v2081 = vadd.f32 %v2033, %v1969
        %v2082 = vmul.f32 %v1111, %v2050
        %v2083 = vmul.f32 %v1113, %v2051
        %v2084 = vmul.f32 %v1115, %v2052
        %v2085 = vmul.f32 %v1117, %v2053
        %v2086 = vmul.f32 %v1119, %v2054
        %v2087 = vmul.f32 %v1121, %v2055
        %v2088 = vmul.f32 %v1123, %v2056
        %v2089 = vmul.f32 %v1125, %v2057
        %v2090 = vmul.f32 %v1127, %v2058
        %v2091 = vmul.f32 %v1129, %v2059
        %v2092 = vmul.f32 %v1131, %v2060
        %v2093 = vmul.f32 %v1133, %v2061
        %v2094 = vmul.f32 %v1135, %v2062
        %v2095 = vmul.f32 %v1137, %v2063
        %v2096 = vmul.f32 %v1139, %v2064
        %v2097 = vmul.f32 %v1141, %v2065
        %v2098 = vmul.f32 %v1143, %v2066
        %v2099 = vmul.f32 %v1145, %v2067
        %v2100 = vmul.f32 %v1147, %v2068
        %v2101 = vmul.f32 %v1149, %v2069
        %v2102 = vmul.f32 %v1151, %v2070
        %v2103 = vmul.f32 %v1153, %v2071
        %v2104 = vmul.f32 %v1155, %v2072
        %v2105 = vmul.f32 %v1157, %v2073
        %v2106 = vmul.f32 %v1159, %v2074
        %v2107 = vmul.f32 %v1161, %v2075
        %v2108 = vmul.f32 %v1163, %v2076
        %v2109 = vmul.f32 %v1165, %v2077
        %v2110 = vmul.f32 %v1167, %v2078
        %v2111 = vmul.f32 %v1169, %v2079
        %v2112 = vmul.f32 %v1171, %v2080
        %v2113 = vmul.f32 %v1173, %v2081
        %v2114 = vadd.f32 %v2082, %v2084
        %v2115 = vadd.f32 %v2114, %v2086
        %v2116 = vadd.f32 %v2115, %v2088
        %v2117 = vadd.f32 %v2116, %v2090
        %v2118 = vadd.f32 %v2117, %v2092
        %v2119 = vadd.f32 %v2118, %v2094
        %v2120 = vadd.f32 %v2119, %v2096
        %v2121 = vadd.f32 %v2120, %v2098
        %v2122 = vadd.f32 %v2121, %v2100
        %v2123 = vadd.f32 %v2122, %v2102
        %v2124 = vadd.f32 %v2123, %v2104
        %v2125 = vadd.f32 %v2124, %v2106
        %v2126 = vadd.f32 %v2125, %v2108
        %v2127 = vadd.f32 %v2126, %v2110
        %v2128 = vadd.f32 %v2127, %v2112
        %v2129 = vadd.f32 %v2083, %v2085
        %v2130 = vadd.f32 %v2129, %v2087
        %v2131 = vadd.f32 %v2130, %v2089
        %v2132 = vadd.f32 %v2131, %v2091
        %v2133 = vadd.f32 %v2132, %v2093
        %v2134 = vadd.f32 %v2133, %v2095
        %v2135 = vadd.f32 %v2134, %v2097
        %v2136 = vadd.f32 %v2135, %v2099
        %v2137 = vadd.f32 %v2136, %v2101
        %v2138 = vadd.f32 %v2137, %v2103
        %v2139 = vadd.f32 %v2138, %v2105
        %v2140 = vadd.f32 %v2139, %v2107
        %v2141 = vadd.f32 %v2140, %v2109
        %v2142 = vadd.f32 %v2141, %v2111
        %v2143 = vadd.f32 %v2142, %v2113
        %v2144 = vmul.f32 %v2128, %v1204
        %v2145 = vmul.f32 %v2143, %v1205
        %s2146 = scalar_lea.vmem %s258, 32 [#allocation10]
        %2147 = vst [vmem:[%s2146] sm:$0xff] %v2144
        %2148 = vst [vmem:[%s2146 + $0x8] sm:$0xff] %v2145
        %s2149 = scalar_lea.vmem %s222, 112 [#allocation2]
        %v2150 = vld [vmem:[%s2149] sm:$0xff]
        %v2151 = vld [vmem:[%s2149 + $0x8] sm:$0xff]
        %v2154 = vcombine.high %v2150, %v2150
        %v2156 = vunpack.c.l.s4 1966171168
        %v2157 = vunpack.c.0.s8 %v2156
        %v2158 = vlaneseq
        %v2159 = vshrl.u32 %v2158, 7
        %v2160 = vsub.s32 %v2157, %v2159
        %v2161 = vrot.slane %v2150, %v2160
        %v2163 = vunpack.c.l.s4 1966171168
        %v2164 = vunpack.c.0.s8 %v2163
        %v2165 = vlaneseq
        %v2166 = vshrl.u32 %v2165, 7
        %v2167 = vsub.s32 %v2164, %v2166
        %v2168 = vrot.slane %v2154, %v2167
        %v2169 = vcombine.high %v2161, %v2161
        %v2170 = vcombine.high %v2168, %v2168
        %v2172 = vunpack.c.l.s4 1966171168
        %v2173 = vunpack.c.0.s8 %v2172
        %v2174 = vlaneseq
        %v2175 = vshrl.u32 %v2174, 7
        %v2176 = vsub.s32 %v2173, %v2175
        %v2177 = vrot.slane %v2161, %v2176
        %v2179 = vunpack.c.l.s4 1966171168
        %v2180 = vunpack.c.0.s8 %v2179
        %v2181 = vlaneseq
        %v2182 = vshrl.u32 %v2181, 7
        %v2183 = vsub.s32 %v2180, %v2182
        %v2184 = vrot.slane %v2168, %v2183
        %v2186 = vunpack.c.l.s4 1966171168
        %v2187 = vunpack.c.0.s8 %v2186
        %v2188 = vlaneseq
        %v2189 = vshrl.u32 %v2188, 7
        %v2190 = vsub.s32 %v2187, %v2189
        %v2191 = vrot.slane %v2169, %v2190
        %v2193 = vunpack.c.l.s4 1966171168
        %v2194 = vunpack.c.0.s8 %v2193
        %v2195 = vlaneseq
        %v2196 = vshrl.u32 %v2195, 7
        %v2197 = vsub.s32 %v2194, %v2196
        %v2198 = vrot.slane %v2170, %v2197
        %v2199 = vcombine.high %v2177, %v2177
        %v2200 = vcombine.high %v2184, %v2184
        %v2201 = vcombine.high %v2191, %v2191
        %v2202 = vcombine.high %v2198, %v2198
        %v2203 = vcombine.high %v2151, %v2151
        %v2205 = vunpack.c.l.s4 1966171168
        %v2206 = vunpack.c.0.s8 %v2205
        %v2207 = vlaneseq
        %v2208 = vshrl.u32 %v2207, 7
        %v2209 = vsub.s32 %v2206, %v2208
        %v2210 = vrot.slane %v2151, %v2209
        %v2212 = vunpack.c.l.s4 1966171168
        %v2213 = vunpack.c.0.s8 %v2212
        %v2214 = vlaneseq
        %v2215 = vshrl.u32 %v2214, 7
        %v2216 = vsub.s32 %v2213, %v2215
        %v2217 = vrot.slane %v2203, %v2216
        %v2218 = vcombine.high %v2210, %v2210
        %v2219 = vcombine.high %v2217, %v2217
        %v2221 = vunpack.c.l.s4 1966171168
        %v2222 = vunpack.c.0.s8 %v2221
        %v2223 = vlaneseq
        %v2224 = vshrl.u32 %v2223, 7
        %v2225 = vsub.s32 %v2222, %v2224
        %v2226 = vrot.slane %v2210, %v2225
        %v2228 = vunpack.c.l.s4 1966171168
        %v2229 = vunpack.c.0.s8 %v2228
        %v2230 = vlaneseq
        %v2231 = vshrl.u32 %v2230, 7
        %v2232 = vsub.s32 %v2229, %v2231
        %v2233 = vrot.slane %v2217, %v2232
        %v2235 = vunpack.c.l.s4 1966171168
        %v2236 = vunpack.c.0.s8 %v2235
        %v2237 = vlaneseq
        %v2238 = vshrl.u32 %v2237, 7
        %v2239 = vsub.s32 %v2236, %v2238
        %v2240 = vrot.slane %v2218, %v2239
        %v2242 = vunpack.c.l.s4 1966171168
        %v2243 = vunpack.c.0.s8 %v2242
        %v2244 = vlaneseq
        %v2245 = vshrl.u32 %v2244, 7
        %v2246 = vsub.s32 %v2243, %v2245
        %v2247 = vrot.slane %v2219, %v2246
        %v2248 = vcombine.high %v2226, %v2226
        %v2249 = vcombine.high %v2233, %v2233
        %v2250 = vcombine.high %v2240, %v2240
        %v2251 = vcombine.high %v2247, %v2247
        %s2252 = scalar_lea.vmem [#allocation8], 768
        %v2253 = vld [vmem:[%s2252] sm:$0xff]
        %v2254 = vld [vmem:[%s2252 + $0x8] sm:$0xff]
        %v2255 = vld [vmem:[%s2252 + $0x10] sm:$0xff]
        %v2256 = vld [vmem:[%s2252 + $0x18] sm:$0xff]
        %v2257 = vld [vmem:[%s2252 + $0x20] sm:$0xff]
        %v2258 = vld [vmem:[%s2252 + $0x28] sm:$0xff]
        %v2259 = vld [vmem:[%s2252 + $0x30] sm:$0xff]
        %v2260 = vld [vmem:[%s2252 + $0x38] sm:$0xff]
        %v2261 = vld [vmem:[%s2252 + $0x40] sm:$0xff]
        %v2262 = vld [vmem:[%s2252 + $0x48] sm:$0xff]
        %v2263 = vld [vmem:[%s2252 + $0x50] sm:$0xff]
        %v2264 = vld [vmem:[%s2252 + $0x58] sm:$0xff]
        %v2265 = vld [vmem:[%s2252 + $0x60] sm:$0xff]
        %v2266 = vld [vmem:[%s2252 + $0x68] sm:$0xff]
        %v2267 = vld [vmem:[%s2252 + $0x70] sm:$0xff]
        %v2268 = vld [vmem:[%s2252 + $0x78] sm:$0xff]
        %v2269 = vld [vmem:[%s2252 + $0x80] sm:$0xff]
        %v2270 = vld [vmem:[%s2252 + $0x88] sm:$0xff]
        %v2271 = vld [vmem:[%s2252 + $0x90] sm:$0xff]
        %v2272 = vld [vmem:[%s2252 + $0x98] sm:$0xff]
        %v2273 = vld [vmem:[%s2252 + $0xa0] sm:$0xff]
        %v2274 = vld [vmem:[%s2252 + $0xa8] sm:$0xff]
        %v2275 = vld [vmem:[%s2252 + $0xb0] sm:$0xff]
        %v2276 = vld [vmem:[%s2252 + $0xb8] sm:$0xff]
        %v2277 = vld [vmem:[%s2252 + $0xc0] sm:$0xff]
        %v2278 = vld [vmem:[%s2252 + $0xc8] sm:$0xff]
        %v2279 = vld [vmem:[%s2252 + $0xd0] sm:$0xff]
        %v2280 = vld [vmem:[%s2252 + $0xd8] sm:$0xff]
        %v2281 = vld [vmem:[%s2252 + $0xe0] sm:$0xff]
        %v2282 = vld [vmem:[%s2252 + $0xe8] sm:$0xff]
        %v2283 = vld [vmem:[%s2252 + $0xf0] sm:$0xff]
        %v2284 = vld [vmem:[%s2252 + $0xf8] sm:$0xff]
        %v2285 = vlaneseq
        %v2286 = vshrl.u32 %v2285, 7
        %v2287 = vsub.s32 0, %v2286
        %v2288 = vrot.slane %v2177, %v2287
        %v2289 = vlaneseq
        %v2290 = vshrl.u32 %v2289, 7
        %v2291 = vsub.s32 0, %v2290
        %v2292 = vrot.slane %v2191, %v2291
        %v2293 = vlaneseq
        %v2294 = vshrl.u32 %v2293, 7
        %v2295 = vsub.s32 0, %v2294
        %v2296 = vrot.slane %v2199, %v2295
        %v2297 = vlaneseq
        %v2298 = vshrl.u32 %v2297, 7
        %v2299 = vsub.s32 0, %v2298
        %v2300 = vrot.slane %v2201, %v2299
        %v2301 = vlaneseq
        %v2302 = vshrl.u32 %v2301, 7
        %v2303 = vsub.s32 0, %v2302
        %v2304 = vrot.slane %v2184, %v2303
        %v2305 = vlaneseq
        %v2306 = vshrl.u32 %v2305, 7
        %v2307 = vsub.s32 0, %v2306
        %v2308 = vrot.slane %v2198, %v2307
        %v2309 = vlaneseq
        %v2310 = vshrl.u32 %v2309, 7
        %v2311 = vsub.s32 0, %v2310
        %v2312 = vrot.slane %v2200, %v2311
        %v2313 = vlaneseq
        %v2314 = vshrl.u32 %v2313, 7
        %v2315 = vsub.s32 0, %v2314
        %v2316 = vrot.slane %v2202, %v2315
        %v2317 = vlaneseq
        %v2318 = vshrl.u32 %v2317, 7
        %v2319 = vsub.s32 0, %v2318
        %v2320 = vrot.slane %v2226, %v2319
        %v2321 = vlaneseq
        %v2322 = vshrl.u32 %v2321, 7
        %v2323 = vsub.s32 0, %v2322
        %v2324 = vrot.slane %v2240, %v2323
        %v2325 = vlaneseq
        %v2326 = vshrl.u32 %v2325, 7
        %v2327 = vsub.s32 0, %v2326
        %v2328 = vrot.slane %v2248, %v2327
        %v2329 = vlaneseq
        %v2330 = vshrl.u32 %v2329, 7
        %v2331 = vsub.s32 0, %v2330
        %v2332 = vrot.slane %v2250, %v2331
        %v2333 = vlaneseq
        %v2334 = vshrl.u32 %v2333, 7
        %v2335 = vsub.s32 0, %v2334
        %v2336 = vrot.slane %v2233, %v2335
        %v2337 = vlaneseq
        %v2338 = vshrl.u32 %v2337, 7
        %v2339 = vsub.s32 0, %v2338
        %v2340 = vrot.slane %v2247, %v2339
        %v2341 = vlaneseq
        %v2342 = vshrl.u32 %v2341, 7
        %v2343 = vsub.s32 0, %v2342
        %v2344 = vrot.slane %v2249, %v2343
        %v2345 = vlaneseq
        %v2346 = vshrl.u32 %v2345, 7
        %v2347 = vsub.s32 0, %v2346
        %v2348 = vrot.slane %v2251, %v2347
        %v2365 = vadd.f32 %v2288, %v2253
        %v2366 = vadd.f32 %v2288, %v2254
        %v2367 = vadd.f32 %v2292, %v2255
        %v2368 = vadd.f32 %v2292, %v2256
        %v2369 = vadd.f32 %v2296, %v2257
        %v2370 = vadd.f32 %v2296, %v2258
        %v2371 = vadd.f32 %v2300, %v2259
        %v2372 = vadd.f32 %v2300, %v2260
        %v2373 = vadd.f32 %v2304, %v2261
        %v2374 = vadd.f32 %v2304, %v2262
        %v2375 = vadd.f32 %v2308, %v2263
        %v2376 = vadd.f32 %v2308, %v2264
        %v2377 = vadd.f32 %v2312, %v2265
        %v2378 = vadd.f32 %v2312, %v2266
        %v2379 = vadd.f32 %v2316, %v2267
        %v2380 = vadd.f32 %v2316, %v2268
        %v2381 = vadd.f32 %v2320, %v2269
        %v2382 = vadd.f32 %v2320, %v2270
        %v2383 = vadd.f32 %v2324, %v2271
        %v2384 = vadd.f32 %v2324, %v2272
        %v2385 = vadd.f32 %v2328, %v2273
        %v2386 = vadd.f32 %v2328, %v2274
        %v2387 = vadd.f32 %v2332, %v2275
        %v2388 = vadd.f32 %v2332, %v2276
        %v2389 = vadd.f32 %v2336, %v2277
        %v2390 = vadd.f32 %v2336, %v2278
        %v2391 = vadd.f32 %v2340, %v2279
        %v2392 = vadd.f32 %v2340, %v2280
        %v2393 = vadd.f32 %v2344, %v2281
        %v2394 = vadd.f32 %v2344, %v2282
        %v2395 = vadd.f32 %v2348, %v2283
        %v2396 = vadd.f32 %v2348, %v2284
        %v2397 = vmul.f32 %v1111, %v2365
        %v2398 = vmul.f32 %v1113, %v2366
        %v2399 = vmul.f32 %v1115, %v2367
        %v2400 = vmul.f32 %v1117, %v2368
        %v2401 = vmul.f32 %v1119, %v2369
        %v2402 = vmul.f32 %v1121, %v2370
        %v2403 = vmul.f32 %v1123, %v2371
        %v2404 = vmul.f32 %v1125, %v2372
        %v2405 = vmul.f32 %v1127, %v2373
        %v2406 = vmul.f32 %v1129, %v2374
        %v2407 = vmul.f32 %v1131, %v2375
        %v2408 = vmul.f32 %v1133, %v2376
        %v2409 = vmul.f32 %v1135, %v2377
        %v2410 = vmul.f32 %v1137, %v2378
        %v2411 = vmul.f32 %v1139, %v2379
        %v2412 = vmul.f32 %v1141, %v2380
        %v2413 = vmul.f32 %v1143, %v2381
        %v2414 = vmul.f32 %v1145, %v2382
        %v2415 = vmul.f32 %v1147, %v2383
        %v2416 = vmul.f32 %v1149, %v2384
        %v2417 = vmul.f32 %v1151, %v2385
        %v2418 = vmul.f32 %v1153, %v2386
        %v2419 = vmul.f32 %v1155, %v2387
        %v2420 = vmul.f32 %v1157, %v2388
        %v2421 = vmul.f32 %v1159, %v2389
        %v2422 = vmul.f32 %v1161, %v2390
        %v2423 = vmul.f32 %v1163, %v2391
        %v2424 = vmul.f32 %v1165, %v2392
        %v2425 = vmul.f32 %v1167, %v2393
        %v2426 = vmul.f32 %v1169, %v2394
        %v2427 = vmul.f32 %v1171, %v2395
        %v2428 = vmul.f32 %v1173, %v2396
        %v2429 = vadd.f32 %v2397, %v2399
        %v2430 = vadd.f32 %v2429, %v2401
        %v2431 = vadd.f32 %v2430, %v2403
        %v2432 = vadd.f32 %v2431, %v2405
        %v2433 = vadd.f32 %v2432, %v2407
        %v2434 = vadd.f32 %v2433, %v2409
        %v2435 = vadd.f32 %v2434, %v2411
        %v2436 = vadd.f32 %v2435, %v2413
        %v2437 = vadd.f32 %v2436, %v2415
        %v2438 = vadd.f32 %v2437, %v2417
        %v2439 = vadd.f32 %v2438, %v2419
        %v2440 = vadd.f32 %v2439, %v2421
        %v2441 = vadd.f32 %v2440, %v2423
        %v2442 = vadd.f32 %v2441, %v2425
        %v2443 = vadd.f32 %v2442, %v2427
        %v2444 = vadd.f32 %v2398, %v2400
        %v2445 = vadd.f32 %v2444, %v2402
        %v2446 = vadd.f32 %v2445, %v2404
        %v2447 = vadd.f32 %v2446, %v2406
        %v2448 = vadd.f32 %v2447, %v2408
        %v2449 = vadd.f32 %v2448, %v2410
        %v2450 = vadd.f32 %v2449, %v2412
        %v2451 = vadd.f32 %v2450, %v2414
        %v2452 = vadd.f32 %v2451, %v2416
        %v2453 = vadd.f32 %v2452, %v2418
        %v2454 = vadd.f32 %v2453, %v2420
        %v2455 = vadd.f32 %v2454, %v2422
        %v2456 = vadd.f32 %v2455, %v2424
        %v2457 = vadd.f32 %v2456, %v2426
        %v2458 = vadd.f32 %v2457, %v2428
        %v2459 = vmul.f32 %v2443, %v1204
        %v2460 = vmul.f32 %v2458, %v1205
        %s2461 = scalar_lea.vmem %s258, 48 [#allocation10]
        %2462 = vst [vmem:[%s2461] sm:$0xff] %v2459
        %2463 = vst [vmem:[%s2461 + $0x8] sm:$0xff] %v2460
        %s2464 = scalar_lea.vmem %s222, 128 [#allocation2]
        %v2465 = vld [vmem:[%s2464] sm:$0xff]
        %v2466 = vld [vmem:[%s2464 + $0x8] sm:$0xff]
        %s2467 = scalar_lea.vmem %s222, 160 [#allocation2]
        %v2468 = vld [vmem:[%s2467] sm:$0xff]
        %v2469 = vld [vmem:[%s2467 + $0x8] sm:$0xff]
        %v2472 = vcombine.high %v2468, %v2468
        %v2474 = vunpack.c.l.s4 1966171168
        %v2475 = vunpack.c.0.s8 %v2474
        %v2476 = vlaneseq
        %v2477 = vshrl.u32 %v2476, 7
        %v2478 = vsub.s32 %v2475, %v2477
        %v2479 = vrot.slane %v2468, %v2478
        %v2481 = vunpack.c.l.s4 1966171168
        %v2482 = vunpack.c.0.s8 %v2481
        %v2483 = vlaneseq
        %v2484 = vshrl.u32 %v2483, 7
        %v2485 = vsub.s32 %v2482, %v2484
        %v2486 = vrot.slane %v2472, %v2485
        %v2487 = vcombine.high %v2479, %v2479
        %v2488 = vcombine.high %v2486, %v2486
        %v2490 = vunpack.c.l.s4 1966171168
        %v2491 = vunpack.c.0.s8 %v2490
        %v2492 = vlaneseq
        %v2493 = vshrl.u32 %v2492, 7
        %v2494 = vsub.s32 %v2491, %v2493
        %v2495 = vrot.slane %v2479, %v2494
        %v2497 = vunpack.c.l.s4 1966171168
        %v2498 = vunpack.c.0.s8 %v2497
        %v2499 = vlaneseq
        %v2500 = vshrl.u32 %v2499, 7
        %v2501 = vsub.s32 %v2498, %v2500
        %v2502 = vrot.slane %v2486, %v2501
        %v2504 = vunpack.c.l.s4 1966171168
        %v2505 = vunpack.c.0.s8 %v2504
        %v2506 = vlaneseq
        %v2507 = vshrl.u32 %v2506, 7
        %v2508 = vsub.s32 %v2505, %v2507
        %v2509 = vrot.slane %v2487, %v2508
        %v2511 = vunpack.c.l.s4 1966171168
        %v2512 = vunpack.c.0.s8 %v2511
        %v2513 = vlaneseq
        %v2514 = vshrl.u32 %v2513, 7
        %v2515 = vsub.s32 %v2512, %v2514
        %v2516 = vrot.slane %v2488, %v2515
        %v2517 = vcombine.high %v2495, %v2495
        %v2518 = vcombine.high %v2502, %v2502
        %v2519 = vcombine.high %v2509, %v2509
        %v2520 = vcombine.high %v2516, %v2516
        %v2521 = vcombine.high %v2469, %v2469
        %v2523 = vunpack.c.l.s4 1966171168
        %v2524 = vunpack.c.0.s8 %v2523
        %v2525 = vlaneseq
        %v2526 = vshrl.u32 %v2525, 7
        %v2527 = vsub.s32 %v2524, %v2526
        %v2528 = vrot.slane %v2469, %v2527
        %v2530 = vunpack.c.l.s4 1966171168
        %v2531 = vunpack.c.0.s8 %v2530
        %v2532 = vlaneseq
        %v2533 = vshrl.u32 %v2532, 7
        %v2534 = vsub.s32 %v2531, %v2533
        %v2535 = vrot.slane %v2521, %v2534
        %v2536 = vcombine.high %v2528, %v2528
        %v2537 = vcombine.high %v2535, %v2535
        %v2539 = vunpack.c.l.s4 1966171168
        %v2540 = vunpack.c.0.s8 %v2539
        %v2541 = vlaneseq
        %v2542 = vshrl.u32 %v2541, 7
        %v2543 = vsub.s32 %v2540, %v2542
        %v2544 = vrot.slane %v2528, %v2543
        %v2546 = vunpack.c.l.s4 1966171168
        %v2547 = vunpack.c.0.s8 %v2546
        %v2548 = vlaneseq
        %v2549 = vshrl.u32 %v2548, 7
        %v2550 = vsub.s32 %v2547, %v2549
        %v2551 = vrot.slane %v2535, %v2550
        %v2553 = vunpack.c.l.s4 1966171168
        %v2554 = vunpack.c.0.s8 %v2553
        %v2555 = vlaneseq
        %v2556 = vshrl.u32 %v2555, 7
        %v2557 = vsub.s32 %v2554, %v2556
        %v2558 = vrot.slane %v2536, %v2557
        %v2560 = vunpack.c.l.s4 1966171168
        %v2561 = vunpack.c.0.s8 %v2560
        %v2562 = vlaneseq
        %v2563 = vshrl.u32 %v2562, 7
        %v2564 = vsub.s32 %v2561, %v2563
        %v2565 = vrot.slane %v2537, %v2564
        %v2566 = vcombine.high %v2544, %v2544
        %v2567 = vcombine.high %v2551, %v2551
        %v2568 = vcombine.high %v2558, %v2558
        %v2569 = vcombine.high %v2565, %v2565
        %v2570 = vld [vmem:[#allocation5] sm:$0xff]
        %v2571 = vld [vmem:[#allocation5 + $0x8] sm:$0xff]
        %v2572 = vld [vmem:[#allocation5 + $0x10] sm:$0xff]
        %v2573 = vld [vmem:[#allocation5 + $0x18] sm:$0xff]
        %v2574 = vld [vmem:[#allocation5 + $0x20] sm:$0xff]
        %v2575 = vld [vmem:[#allocation5 + $0x28] sm:$0xff]
        %v2576 = vld [vmem:[#allocation5 + $0x30] sm:$0xff]
        %v2577 = vld [vmem:[#allocation5 + $0x38] sm:$0xff]
        %v2578 = vld [vmem:[#allocation5 + $0x40] sm:$0xff]
        %v2579 = vld [vmem:[#allocation5 + $0x48] sm:$0xff]
        %v2580 = vld [vmem:[#allocation5 + $0x50] sm:$0xff]
        %v2581 = vld [vmem:[#allocation5 + $0x58] sm:$0xff]
        %v2582 = vld [vmem:[#allocation5 + $0x60] sm:$0xff]
        %v2583 = vld [vmem:[#allocation5 + $0x68] sm:$0xff]
        %v2584 = vld [vmem:[#allocation5 + $0x70] sm:$0xff]
        %v2585 = vld [vmem:[#allocation5 + $0x78] sm:$0xff]
        %v2586 = vld [vmem:[#allocation5 + $0x80] sm:$0xff]
        %v2587 = vld [vmem:[#allocation5 + $0x88] sm:$0xff]
        %v2588 = vld [vmem:[#allocation5 + $0x90] sm:$0xff]
        %v2589 = vld [vmem:[#allocation5 + $0x98] sm:$0xff]
        %v2590 = vld [vmem:[#allocation5 + $0xa0] sm:$0xff]
        %v2591 = vld [vmem:[#allocation5 + $0xa8] sm:$0xff]
        %v2592 = vld [vmem:[#allocation5 + $0xb0] sm:$0xff]
        %v2593 = vld [vmem:[#allocation5 + $0xb8] sm:$0xff]
        %v2594 = vld [vmem:[#allocation5 + $0xc0] sm:$0xff]
        %v2595 = vld [vmem:[#allocation5 + $0xc8] sm:$0xff]
        %v2596 = vld [vmem:[#allocation5 + $0xd0] sm:$0xff]
        %v2597 = vld [vmem:[#allocation5 + $0xd8] sm:$0xff]
        %v2598 = vld [vmem:[#allocation5 + $0xe0] sm:$0xff]
        %v2599 = vld [vmem:[#allocation5 + $0xe8] sm:$0xff]
        %v2600 = vld [vmem:[#allocation5 + $0xf0] sm:$0xff]
        %v2601 = vld [vmem:[#allocation5 + $0xf8] sm:$0xff]
        %v2602 = vlaneseq
        %v2603 = vshrl.u32 %v2602, 7
        %v2604 = vsub.s32 0, %v2603
        %v2605 = vrot.slane %v2495, %v2604
        %v2606 = vlaneseq
        %v2607 = vshrl.u32 %v2606, 7
        %v2608 = vsub.s32 0, %v2607
        %v2609 = vrot.slane %v2509, %v2608
        %v2610 = vlaneseq
        %v2611 = vshrl.u32 %v2610, 7
        %v2612 = vsub.s32 0, %v2611
        %v2613 = vrot.slane %v2517, %v2612
        %v2614 = vlaneseq
        %v2615 = vshrl.u32 %v2614, 7
        %v2616 = vsub.s32 0, %v2615
        %v2617 = vrot.slane %v2519, %v2616
        %v2618 = vlaneseq
        %v2619 = vshrl.u32 %v2618, 7
        %v2620 = vsub.s32 0, %v2619
        %v2621 = vrot.slane %v2502, %v2620
        %v2622 = vlaneseq
        %v2623 = vshrl.u32 %v2622, 7
        %v2624 = vsub.s32 0, %v2623
        %v2625 = vrot.slane %v2516, %v2624
        %v2626 = vlaneseq
        %v2627 = vshrl.u32 %v2626, 7
        %v2628 = vsub.s32 0, %v2627
        %v2629 = vrot.slane %v2518, %v2628
        %v2630 = vlaneseq
        %v2631 = vshrl.u32 %v2630, 7
        %v2632 = vsub.s32 0, %v2631
        %v2633 = vrot.slane %v2520, %v2632
        %v2634 = vlaneseq
        %v2635 = vshrl.u32 %v2634, 7
        %v2636 = vsub.s32 0, %v2635
        %v2637 = vrot.slane %v2544, %v2636
        %v2638 = vlaneseq
        %v2639 = vshrl.u32 %v2638, 7
        %v2640 = vsub.s32 0, %v2639
        %v2641 = vrot.slane %v2558, %v2640
        %v2642 = vlaneseq
        %v2643 = vshrl.u32 %v2642, 7
        %v2644 = vsub.s32 0, %v2643
        %v2645 = vrot.slane %v2566, %v2644
        %v2646 = vlaneseq
        %v2647 = vshrl.u32 %v2646, 7
        %v2648 = vsub.s32 0, %v2647
        %v2649 = vrot.slane %v2568, %v2648
        %v2650 = vlaneseq
        %v2651 = vshrl.u32 %v2650, 7
        %v2652 = vsub.s32 0, %v2651
        %v2653 = vrot.slane %v2551, %v2652
        %v2654 = vlaneseq
        %v2655 = vshrl.u32 %v2654, 7
        %v2656 = vsub.s32 0, %v2655
        %v2657 = vrot.slane %v2565, %v2656
        %v2658 = vlaneseq
        %v2659 = vshrl.u32 %v2658, 7
        %v2660 = vsub.s32 0, %v2659
        %v2661 = vrot.slane %v2567, %v2660
        %v2662 = vlaneseq
        %v2663 = vshrl.u32 %v2662, 7
        %v2664 = vsub.s32 0, %v2663
        %v2665 = vrot.slane %v2569, %v2664
        %v2682 = vadd.f32 %v2605, %v2570
        %v2683 = vadd.f32 %v2605, %v2571
        %v2684 = vadd.f32 %v2609, %v2572
        %v2685 = vadd.f32 %v2609, %v2573
        %v2686 = vadd.f32 %v2613, %v2574
        %v2687 = vadd.f32 %v2613, %v2575
        %v2688 = vadd.f32 %v2617, %v2576
        %v2689 = vadd.f32 %v2617, %v2577
        %v2690 = vadd.f32 %v2621, %v2578
        %v2691 = vadd.f32 %v2621, %v2579
        %v2692 = vadd.f32 %v2625, %v2580
        %v2693 = vadd.f32 %v2625, %v2581
        %v2694 = vadd.f32 %v2629, %v2582
        %v2695 = vadd.f32 %v2629, %v2583
        %v2696 = vadd.f32 %v2633, %v2584
        %v2697 = vadd.f32 %v2633, %v2585
        %v2698 = vadd.f32 %v2637, %v2586
        %v2699 = vadd.f32 %v2637, %v2587
        %v2700 = vadd.f32 %v2641, %v2588
        %v2701 = vadd.f32 %v2641, %v2589
        %v2702 = vadd.f32 %v2645, %v2590
        %v2703 = vadd.f32 %v2645, %v2591
        %v2704 = vadd.f32 %v2649, %v2592
        %v2705 = vadd.f32 %v2649, %v2593
        %v2706 = vadd.f32 %v2653, %v2594
        %v2707 = vadd.f32 %v2653, %v2595
        %v2708 = vadd.f32 %v2657, %v2596
        %v2709 = vadd.f32 %v2657, %v2597
        %v2710 = vadd.f32 %v2661, %v2598
        %v2711 = vadd.f32 %v2661, %v2599
        %v2712 = vadd.f32 %v2665, %v2600
        %v2713 = vadd.f32 %v2665, %v2601
        %v2714 = vmul.f32 %v2465, %v2682
        %v2715 = vmul.f32 %v2466, %v2683
        %v2716 = vmul.f32 %v2465, %v2684
        %v2717 = vmul.f32 %v2466, %v2685
        %v2718 = vmul.f32 %v2465, %v2686
        %v2719 = vmul.f32 %v2466, %v2687
        %v2720 = vmul.f32 %v2465, %v2688
        %v2721 = vmul.f32 %v2466, %v2689
        %v2722 = vmul.f32 %v2465, %v2690
        %v2723 = vmul.f32 %v2466, %v2691
        %v2724 = vmul.f32 %v2465, %v2692
        %v2725 = vmul.f32 %v2466, %v2693
        %v2726 = vmul.f32 %v2465, %v2694
        %v2727 = vmul.f32 %v2466, %v2695
        %v2728 = vmul.f32 %v2465, %v2696
        %v2729 = vmul.f32 %v2466, %v2697
        %v2730 = vmul.f32 %v2465, %v2698
        %v2731 = vmul.f32 %v2466, %v2699
        %v2732 = vmul.f32 %v2465, %v2700
        %v2733 = vmul.f32 %v2466, %v2701
        %v2734 = vmul.f32 %v2465, %v2702
        %v2735 = vmul.f32 %v2466, %v2703
        %v2736 = vmul.f32 %v2465, %v2704
        %v2737 = vmul.f32 %v2466, %v2705
        %v2738 = vmul.f32 %v2465, %v2706
        %v2739 = vmul.f32 %v2466, %v2707
        %v2740 = vmul.f32 %v2465, %v2708
        %v2741 = vmul.f32 %v2466, %v2709
        %v2742 = vmul.f32 %v2465, %v2710
        %v2743 = vmul.f32 %v2466, %v2711
        %v2744 = vmul.f32 %v2465, %v2712
        %v2745 = vmul.f32 %v2466, %v2713
        %v2746 = vld [vmem:[#allocation7] sm:$0xff]
        %v2747 = vld [vmem:[#allocation7 + $0x8] sm:$0xff]
        %v2748 = vld [vmem:[#allocation7 + $0x10] sm:$0xff]
        %v2749 = vld [vmem:[#allocation7 + $0x18] sm:$0xff]
        %v2750 = vld [vmem:[#allocation7 + $0x20] sm:$0xff]
        %v2751 = vld [vmem:[#allocation7 + $0x28] sm:$0xff]
        %v2752 = vld [vmem:[#allocation7 + $0x30] sm:$0xff]
        %v2753 = vld [vmem:[#allocation7 + $0x38] sm:$0xff]
        %v2754 = vld [vmem:[#allocation7 + $0x40] sm:$0xff]
        %v2755 = vld [vmem:[#allocation7 + $0x48] sm:$0xff]
        %v2756 = vld [vmem:[#allocation7 + $0x50] sm:$0xff]
        %v2757 = vld [vmem:[#allocation7 + $0x58] sm:$0xff]
        %v2758 = vld [vmem:[#allocation7 + $0x60] sm:$0xff]
        %v2759 = vld [vmem:[#allocation7 + $0x68] sm:$0xff]
        %v2760 = vld [vmem:[#allocation7 + $0x70] sm:$0xff]
        %v2761 = vld [vmem:[#allocation7 + $0x78] sm:$0xff]
        %v2762 = vld [vmem:[#allocation7 + $0x80] sm:$0xff]
        %v2763 = vld [vmem:[#allocation7 + $0x88] sm:$0xff]
        %v2764 = vld [vmem:[#allocation7 + $0x90] sm:$0xff]
        %v2765 = vld [vmem:[#allocation7 + $0x98] sm:$0xff]
        %v2766 = vld [vmem:[#allocation7 + $0xa0] sm:$0xff]
        %v2767 = vld [vmem:[#allocation7 + $0xa8] sm:$0xff]
        %v2768 = vld [vmem:[#allocation7 + $0xb0] sm:$0xff]
        %v2769 = vld [vmem:[#allocation7 + $0xb8] sm:$0xff]
        %v2770 = vld [vmem:[#allocation7 + $0xc0] sm:$0xff]
        %v2771 = vld [vmem:[#allocation7 + $0xc8] sm:$0xff]
        %v2772 = vld [vmem:[#allocation7 + $0xd0] sm:$0xff]
        %v2773 = vld [vmem:[#allocation7 + $0xd8] sm:$0xff]
        %v2774 = vld [vmem:[#allocation7 + $0xe0] sm:$0xff]
        %v2775 = vld [vmem:[#allocation7 + $0xe8] sm:$0xff]
        %v2776 = vld [vmem:[#allocation7 + $0xf0] sm:$0xff]
        %v2777 = vld [vmem:[#allocation7 + $0xf8] sm:$0xff]
        %v2778 = vmul.f32 %v2605, %v2746
        %v2779 = vmul.f32 %v2605, %v2747
        %v2780 = vmul.f32 %v2609, %v2748
        %v2781 = vmul.f32 %v2609, %v2749
        %v2782 = vmul.f32 %v2613, %v2750
        %v2783 = vmul.f32 %v2613, %v2751
        %v2784 = vmul.f32 %v2617, %v2752
        %v2785 = vmul.f32 %v2617, %v2753
        %v2786 = vmul.f32 %v2621, %v2754
        %v2787 = vmul.f32 %v2621, %v2755
        %v2788 = vmul.f32 %v2625, %v2756
        %v2789 = vmul.f32 %v2625, %v2757
        %v2790 = vmul.f32 %v2629, %v2758
        %v2791 = vmul.f32 %v2629, %v2759
        %v2792 = vmul.f32 %v2633, %v2760
        %v2793 = vmul.f32 %v2633, %v2761
        %v2794 = vmul.f32 %v2637, %v2762
        %v2795 = vmul.f32 %v2637, %v2763
        %v2796 = vmul.f32 %v2641, %v2764
        %v2797 = vmul.f32 %v2641, %v2765
        %v2798 = vmul.f32 %v2645, %v2766
        %v2799 = vmul.f32 %v2645, %v2767
        %v2800 = vmul.f32 %v2649, %v2768
        %v2801 = vmul.f32 %v2649, %v2769
        %v2802 = vmul.f32 %v2653, %v2770
        %v2803 = vmul.f32 %v2653, %v2771
        %v2804 = vmul.f32 %v2657, %v2772
        %v2805 = vmul.f32 %v2657, %v2773
        %v2806 = vmul.f32 %v2661, %v2774
        %v2807 = vmul.f32 %v2661, %v2775
        %v2808 = vmul.f32 %v2665, %v2776
        %v2809 = vmul.f32 %v2665, %v2777
        %v2810 = vadd.f32 %v2714, %v2778
        %v2811 = vadd.f32 %v2715, %v2779
        %v2812 = vadd.f32 %v2716, %v2780
        %v2813 = vadd.f32 %v2717, %v2781
        %v2814 = vadd.f32 %v2718, %v2782
        %v2815 = vadd.f32 %v2719, %v2783
        %v2816 = vadd.f32 %v2720, %v2784
        %v2817 = vadd.f32 %v2721, %v2785
        %v2818 = vadd.f32 %v2722, %v2786
        %v2819 = vadd.f32 %v2723, %v2787
        %v2820 = vadd.f32 %v2724, %v2788
        %v2821 = vadd.f32 %v2725, %v2789
        %v2822 = vadd.f32 %v2726, %v2790
        %v2823 = vadd.f32 %v2727, %v2791
        %v2824 = vadd.f32 %v2728, %v2792
        %v2825 = vadd.f32 %v2729, %v2793
        %v2826 = vadd.f32 %v2730, %v2794
        %v2827 = vadd.f32 %v2731, %v2795
        %v2828 = vadd.f32 %v2732, %v2796
        %v2829 = vadd.f32 %v2733, %v2797
        %v2830 = vadd.f32 %v2734, %v2798
        %v2831 = vadd.f32 %v2735, %v2799
        %v2832 = vadd.f32 %v2736, %v2800
        %v2833 = vadd.f32 %v2737, %v2801
        %v2834 = vadd.f32 %v2738, %v2802
        %v2835 = vadd.f32 %v2739, %v2803
        %v2836 = vadd.f32 %v2740, %v2804
        %v2837 = vadd.f32 %v2741, %v2805
        %v2838 = vadd.f32 %v2742, %v2806
        %v2839 = vadd.f32 %v2743, %v2807
        %v2840 = vadd.f32 %v2744, %v2808
        %v2841 = vadd.f32 %v2745, %v2809
        %s2842 = scalar_lea.vmem %s222, 144 [#allocation2]
        %v2843 = vld [vmem:[%s2842] sm:$0xff]
        %v2844 = vld [vmem:[%s2842 + $0x8] sm:$0xff]
        %s2845 = scalar_lea.vmem %s222, 176 [#allocation2]
        %v2846 = vld [vmem:[%s2845] sm:$0xff]
        %v2847 = vld [vmem:[%s2845 + $0x8] sm:$0xff]
        %v2850 = vcombine.high %v2846, %v2846
        %v2852 = vunpack.c.l.s4 1966171168
        %v2853 = vunpack.c.0.s8 %v2852
        %v2854 = vlaneseq
        %v2855 = vshrl.u32 %v2854, 7
        %v2856 = vsub.s32 %v2853, %v2855
        %v2857 = vrot.slane %v2846, %v2856
        %v2859 = vunpack.c.l.s4 1966171168
        %v2860 = vunpack.c.0.s8 %v2859
        %v2861 = vlaneseq
        %v2862 = vshrl.u32 %v2861, 7
        %v2863 = vsub.s32 %v2860, %v2862
        %v2864 = vrot.slane %v2850, %v2863
        %v2865 = vcombine.high %v2857, %v2857
        %v2866 = vcombine.high %v2864, %v2864
        %v2868 = vunpack.c.l.s4 1966171168
        %v2869 = vunpack.c.0.s8 %v2868
        %v2870 = vlaneseq
        %v2871 = vshrl.u32 %v2870, 7
        %v2872 = vsub.s32 %v2869, %v2871
        %v2873 = vrot.slane %v2857, %v2872
        %v2875 = vunpack.c.l.s4 1966171168
        %v2876 = vunpack.c.0.s8 %v2875
        %v2877 = vlaneseq
        %v2878 = vshrl.u32 %v2877, 7
        %v2879 = vsub.s32 %v2876, %v2878
        %v2880 = vrot.slane %v2864, %v2879
        %v2882 = vunpack.c.l.s4 1966171168
        %v2883 = vunpack.c.0.s8 %v2882
        %v2884 = vlaneseq
        %v2885 = vshrl.u32 %v2884, 7
        %v2886 = vsub.s32 %v2883, %v2885
        %v2887 = vrot.slane %v2865, %v2886
        %v2889 = vunpack.c.l.s4 1966171168
        %v2890 = vunpack.c.0.s8 %v2889
        %v2891 = vlaneseq
        %v2892 = vshrl.u32 %v2891, 7
        %v2893 = vsub.s32 %v2890, %v2892
        %v2894 = vrot.slane %v2866, %v2893
        %v2895 = vcombine.high %v2873, %v2873
        %v2896 = vcombine.high %v2880, %v2880
        %v2897 = vcombine.high %v2887, %v2887
        %v2898 = vcombine.high %v2894, %v2894
        %v2899 = vcombine.high %v2847, %v2847
        %v2901 = vunpack.c.l.s4 1966171168
        %v2902 = vunpack.c.0.s8 %v2901
        %v2903 = vlaneseq
        %v2904 = vshrl.u32 %v2903, 7
        %v2905 = vsub.s32 %v2902, %v2904
        %v2906 = vrot.slane %v2847, %v2905
        %v2908 = vunpack.c.l.s4 1966171168
        %v2909 = vunpack.c.0.s8 %v2908
        %v2910 = vlaneseq
        %v2911 = vshrl.u32 %v2910, 7
        %v2912 = vsub.s32 %v2909, %v2911
        %v2913 = vrot.slane %v2899, %v2912
        %v2914 = vcombine.high %v2906, %v2906
        %v2915 = vcombine.high %v2913, %v2913
        %v2917 = vunpack.c.l.s4 1966171168
        %v2918 = vunpack.c.0.s8 %v2917
        %v2919 = vlaneseq
        %v2920 = vshrl.u32 %v2919, 7
        %v2921 = vsub.s32 %v2918, %v2920
        %v2922 = vrot.slane %v2906, %v2921
        %v2924 = vunpack.c.l.s4 1966171168
        %v2925 = vunpack.c.0.s8 %v2924
        %v2926 = vlaneseq
        %v2927 = vshrl.u32 %v2926, 7
        %v2928 = vsub.s32 %v2925, %v2927
        %v2929 = vrot.slane %v2913, %v2928
        %v2931 = vunpack.c.l.s4 1966171168
        %v2932 = vunpack.c.0.s8 %v2931
        %v2933 = vlaneseq
        %v2934 = vshrl.u32 %v2933, 7
        %v2935 = vsub.s32 %v2932, %v2934
        %v2936 = vrot.slane %v2914, %v2935
        %v2938 = vunpack.c.l.s4 1966171168
        %v2939 = vunpack.c.0.s8 %v2938
        %v2940 = vlaneseq
        %v2941 = vshrl.u32 %v2940, 7
        %v2942 = vsub.s32 %v2939, %v2941
        %v2943 = vrot.slane %v2915, %v2942
        %v2944 = vcombine.high %v2922, %v2922
        %v2945 = vcombine.high %v2929, %v2929
        %v2946 = vcombine.high %v2936, %v2936
        %v2947 = vcombine.high %v2943, %v2943
        %v2948 = vld [vmem:[%s742] sm:$0xff]
        %v2949 = vld [vmem:[%s742 + $0x8] sm:$0xff]
        %v2950 = vld [vmem:[%s742 + $0x10] sm:$0xff]
        %v2951 = vld [vmem:[%s742 + $0x18] sm:$0xff]
        %v2952 = vld [vmem:[%s742 + $0x20] sm:$0xff]
        %v2953 = vld [vmem:[%s742 + $0x28] sm:$0xff]
        %v2954 = vld [vmem:[%s742 + $0x30] sm:$0xff]
        %v2955 = vld [vmem:[%s742 + $0x38] sm:$0xff]
        %v2956 = vld [vmem:[%s742 + $0x40] sm:$0xff]
        %v2957 = vld [vmem:[%s742 + $0x48] sm:$0xff]
        %v2958 = vld [vmem:[%s742 + $0x50] sm:$0xff]
        %v2959 = vld [vmem:[%s742 + $0x58] sm:$0xff]
        %v2960 = vld [vmem:[%s742 + $0x60] sm:$0xff]
        %v2961 = vld [vmem:[%s742 + $0x68] sm:$0xff]
        %v2962 = vld [vmem:[%s742 + $0x70] sm:$0xff]
        %v2963 = vld [vmem:[%s742 + $0x78] sm:$0xff]
        %v2964 = vld [vmem:[%s742 + $0x80] sm:$0xff]
        %v2965 = vld [vmem:[%s742 + $0x88] sm:$0xff]
        %v2966 = vld [vmem:[%s742 + $0x90] sm:$0xff]
        %v2967 = vld [vmem:[%s742 + $0x98] sm:$0xff]
        %v2968 = vld [vmem:[%s742 + $0xa0] sm:$0xff]
        %v2969 = vld [vmem:[%s742 + $0xa8] sm:$0xff]
        %v2970 = vld [vmem:[%s742 + $0xb0] sm:$0xff]
        %v2971 = vld [vmem:[%s742 + $0xb8] sm:$0xff]
        %v2972 = vld [vmem:[%s742 + $0xc0] sm:$0xff]
        %v2973 = vld [vmem:[%s742 + $0xc8] sm:$0xff]
        %v2974 = vld [vmem:[%s742 + $0xd0] sm:$0xff]
        %v2975 = vld [vmem:[%s742 + $0xd8] sm:$0xff]
        %v2976 = vld [vmem:[%s742 + $0xe0] sm:$0xff]
        %v2977 = vld [vmem:[%s742 + $0xe8] sm:$0xff]
        %v2978 = vld [vmem:[%s742 + $0xf0] sm:$0xff]
        %v2979 = vld [vmem:[%s742 + $0xf8] sm:$0xff]
        %v2980 = vlaneseq
        %v2981 = vshrl.u32 %v2980, 7
        %v2982 = vsub.s32 0, %v2981
        %v2983 = vrot.slane %v2873, %v2982
        %v2984 = vlaneseq
        %v2985 = vshrl.u32 %v2984, 7
        %v2986 = vsub.s32 0, %v2985
        %v2987 = vrot.slane %v2887, %v2986
        %v2988 = vlaneseq
        %v2989 = vshrl.u32 %v2988, 7
        %v2990 = vsub.s32 0, %v2989
        %v2991 = vrot.slane %v2895, %v2990
        %v2992 = vlaneseq
        %v2993 = vshrl.u32 %v2992, 7
        %v2994 = vsub.s32 0, %v2993
        %v2995 = vrot.slane %v2897, %v2994
        %v2996 = vlaneseq
        %v2997 = vshrl.u32 %v2996, 7
        %v2998 = vsub.s32 0, %v2997
        %v2999 = vrot.slane %v2880, %v2998
        %v3000 = vlaneseq
        %v3001 = vshrl.u32 %v3000, 7
        %v3002 = vsub.s32 0, %v3001
        %v3003 = vrot.slane %v2894, %v3002
        %v3004 = vlaneseq
        %v3005 = vshrl.u32 %v3004, 7
        %v3006 = vsub.s32 0, %v3005
        %v3007 = vrot.slane %v2896, %v3006
        %v3008 = vlaneseq
        %v3009 = vshrl.u32 %v3008, 7
        %v3010 = vsub.s32 0, %v3009
        %v3011 = vrot.slane %v2898, %v3010
        %v3012 = vlaneseq
        %v3013 = vshrl.u32 %v3012, 7
        %v3014 = vsub.s32 0, %v3013
        %v3015 = vrot.slane %v2922, %v3014
        %v3016 = vlaneseq
        %v3017 = vshrl.u32 %v3016, 7
        %v3018 = vsub.s32 0, %v3017
        %v3019 = vrot.slane %v2936, %v3018
        %v3020 = vlaneseq
        %v3021 = vshrl.u32 %v3020, 7
        %v3022 = vsub.s32 0, %v3021
        %v3023 = vrot.slane %v2944, %v3022
        %v3024 = vlaneseq
        %v3025 = vshrl.u32 %v3024, 7
        %v3026 = vsub.s32 0, %v3025
        %v3027 = vrot.slane %v2946, %v3026
        %v3028 = vlaneseq
        %v3029 = vshrl.u32 %v3028, 7
        %v3030 = vsub.s32 0, %v3029
        %v3031 = vrot.slane %v2929, %v3030
        %v3032 = vlaneseq
        %v3033 = vshrl.u32 %v3032, 7
        %v3034 = vsub.s32 0, %v3033
        %v3035 = vrot.slane %v2943, %v3034
        %v3036 = vlaneseq
        %v3037 = vshrl.u32 %v3036, 7
        %v3038 = vsub.s32 0, %v3037
        %v3039 = vrot.slane %v2945, %v3038
        %v3040 = vlaneseq
        %v3041 = vshrl.u32 %v3040, 7
        %v3042 = vsub.s32 0, %v3041
        %v3043 = vrot.slane %v2947, %v3042
        %v3060 = vadd.f32 %v2983, %v2948
        %v3061 = vadd.f32 %v2983, %v2949
        %v3062 = vadd.f32 %v2987, %v2950
        %v3063 = vadd.f32 %v2987, %v2951
        %v3064 = vadd.f32 %v2991, %v2952
        %v3065 = vadd.f32 %v2991, %v2953
        %v3066 = vadd.f32 %v2995, %v2954
        %v3067 = vadd.f32 %v2995, %v2955
        %v3068 = vadd.f32 %v2999, %v2956
        %v3069 = vadd.f32 %v2999, %v2957
        %v3070 = vadd.f32 %v3003, %v2958
        %v3071 = vadd.f32 %v3003, %v2959
        %v3072 = vadd.f32 %v3007, %v2960
        %v3073 = vadd.f32 %v3007, %v2961
        %v3074 = vadd.f32 %v3011, %v2962
        %v3075 = vadd.f32 %v3011, %v2963
        %v3076 = vadd.f32 %v3015, %v2964
        %v3077 = vadd.f32 %v3015, %v2965
        %v3078 = vadd.f32 %v3019, %v2966
        %v3079 = vadd.f32 %v3019, %v2967
        %v3080 = vadd.f32 %v3023, %v2968
        %v3081 = vadd.f32 %v3023, %v2969
        %v3082 = vadd.f32 %v3027, %v2970
        %v3083 = vadd.f32 %v3027, %v2971
        %v3084 = vadd.f32 %v3031, %v2972
        %v3085 = vadd.f32 %v3031, %v2973
        %v3086 = vadd.f32 %v3035, %v2974
        %v3087 = vadd.f32 %v3035, %v2975
        %v3088 = vadd.f32 %v3039, %v2976
        %v3089 = vadd.f32 %v3039, %v2977
        %v3090 = vadd.f32 %v3043, %v2978
        %v3091 = vadd.f32 %v3043, %v2979
        %v3092 = vmul.f32 %v2843, %v3060
        %v3093 = vmul.f32 %v2844, %v3061
        %v3094 = vmul.f32 %v2843, %v3062
        %v3095 = vmul.f32 %v2844, %v3063
        %v3096 = vmul.f32 %v2843, %v3064
        %v3097 = vmul.f32 %v2844, %v3065
        %v3098 = vmul.f32 %v2843, %v3066
        %v3099 = vmul.f32 %v2844, %v3067
        %v3100 = vmul.f32 %v2843, %v3068
        %v3101 = vmul.f32 %v2844, %v3069
        %v3102 = vmul.f32 %v2843, %v3070
        %v3103 = vmul.f32 %v2844, %v3071
        %v3104 = vmul.f32 %v2843, %v3072
        %v3105 = vmul.f32 %v2844, %v3073
        %v3106 = vmul.f32 %v2843, %v3074
        %v3107 = vmul.f32 %v2844, %v3075
        %v3108 = vmul.f32 %v2843, %v3076
        %v3109 = vmul.f32 %v2844, %v3077
        %v3110 = vmul.f32 %v2843, %v3078
        %v3111 = vmul.f32 %v2844, %v3079
        %v3112 = vmul.f32 %v2843, %v3080
        %v3113 = vmul.f32 %v2844, %v3081
        %v3114 = vmul.f32 %v2843, %v3082
        %v3115 = vmul.f32 %v2844, %v3083
        %v3116 = vmul.f32 %v2843, %v3084
        %v3117 = vmul.f32 %v2844, %v3085
        %v3118 = vmul.f32 %v2843, %v3086
        %v3119 = vmul.f32 %v2844, %v3087
        %v3120 = vmul.f32 %v2843, %v3088
        %v3121 = vmul.f32 %v2844, %v3089
        %v3122 = vmul.f32 %v2843, %v3090
        %v3123 = vmul.f32 %v2844, %v3091
        %v3124 = vld [vmem:[%s919] sm:$0xff]
        %v3125 = vld [vmem:[%s919 + $0x8] sm:$0xff]
        %v3126 = vld [vmem:[%s919 + $0x10] sm:$0xff]
        %v3127 = vld [vmem:[%s919 + $0x18] sm:$0xff]
        %v3128 = vld [vmem:[%s919 + $0x20] sm:$0xff]
        %v3129 = vld [vmem:[%s919 + $0x28] sm:$0xff]
        %v3130 = vld [vmem:[%s919 + $0x30] sm:$0xff]
        %v3131 = vld [vmem:[%s919 + $0x38] sm:$0xff]
        %v3132 = vld [vmem:[%s919 + $0x40] sm:$0xff]
        %v3133 = vld [vmem:[%s919 + $0x48] sm:$0xff]
        %v3134 = vld [vmem:[%s919 + $0x50] sm:$0xff]
        %v3135 = vld [vmem:[%s919 + $0x58] sm:$0xff]
        %v3136 = vld [vmem:[%s919 + $0x60] sm:$0xff]
        %v3137 = vld [vmem:[%s919 + $0x68] sm:$0xff]
        %v3138 = vld [vmem:[%s919 + $0x70] sm:$0xff]
        %v3139 = vld [vmem:[%s919 + $0x78] sm:$0xff]
        %v3140 = vld [vmem:[%s919 + $0x80] sm:$0xff]
        %v3141 = vld [vmem:[%s919 + $0x88] sm:$0xff]
        %v3142 = vld [vmem:[%s919 + $0x90] sm:$0xff]
        %v3143 = vld [vmem:[%s919 + $0x98] sm:$0xff]
        %v3144 = vld [vmem:[%s919 + $0xa0] sm:$0xff]
        %v3145 = vld [vmem:[%s919 + $0xa8] sm:$0xff]
        %v3146 = vld [vmem:[%s919 + $0xb0] sm:$0xff]
        %v3147 = vld [vmem:[%s919 + $0xb8] sm:$0xff]
        %v3148 = vld [vmem:[%s919 + $0xc0] sm:$0xff]
        %v3149 = vld [vmem:[%s919 + $0xc8] sm:$0xff]
        %v3150 = vld [vmem:[%s919 + $0xd0] sm:$0xff]
        %v3151 = vld [vmem:[%s919 + $0xd8] sm:$0xff]
        %v3152 = vld [vmem:[%s919 + $0xe0] sm:$0xff]
        %v3153 = vld [vmem:[%s919 + $0xe8] sm:$0xff]
        %v3154 = vld [vmem:[%s919 + $0xf0] sm:$0xff]
        %v3155 = vld [vmem:[%s919 + $0xf8] sm:$0xff]
        %v3156 = vmul.f32 %v2983, %v3124
        %v3157 = vmul.f32 %v2983, %v3125
        %v3158 = vmul.f32 %v2987, %v3126
        %v3159 = vmul.f32 %v2987, %v3127
        %v3160 = vmul.f32 %v2991, %v3128
        %v3161 = vmul.f32 %v2991, %v3129
        %v3162 = vmul.f32 %v2995, %v3130
        %v3163 = vmul.f32 %v2995, %v3131
        %v3164 = vmul.f32 %v2999, %v3132
        %v3165 = vmul.f32 %v2999, %v3133
        %v3166 = vmul.f32 %v3003, %v3134
        %v3167 = vmul.f32 %v3003, %v3135
        %v3168 = vmul.f32 %v3007, %v3136
        %v3169 = vmul.f32 %v3007, %v3137
        %v3170 = vmul.f32 %v3011, %v3138
        %v3171 = vmul.f32 %v3011, %v3139
        %v3172 = vmul.f32 %v3015, %v3140
        %v3173 = vmul.f32 %v3015, %v3141
        %v3174 = vmul.f32 %v3019, %v3142
        %v3175 = vmul.f32 %v3019, %v3143
        %v3176 = vmul.f32 %v3023, %v3144
        %v3177 = vmul.f32 %v3023, %v3145
        %v3178 = vmul.f32 %v3027, %v3146
        %v3179 = vmul.f32 %v3027, %v3147
        %v3180 = vmul.f32 %v3031, %v3148
        %v3181 = vmul.f32 %v3031, %v3149
        %v3182 = vmul.f32 %v3035, %v3150
        %v3183 = vmul.f32 %v3035, %v3151
        %v3184 = vmul.f32 %v3039, %v3152
        %v3185 = vmul.f32 %v3039, %v3153
        %v3186 = vmul.f32 %v3043, %v3154
        %v3187 = vmul.f32 %v3043, %v3155
        %v3188 = vadd.f32 %v3092, %v3156
        %v3189 = vadd.f32 %v3093, %v3157
        %v3190 = vadd.f32 %v3094, %v3158
        %v3191 = vadd.f32 %v3095, %v3159
        %v3192 = vadd.f32 %v3096, %v3160
        %v3193 = vadd.f32 %v3097, %v3161
        %v3194 = vadd.f32 %v3098, %v3162
        %v3195 = vadd.f32 %v3099, %v3163
        %v3196 = vadd.f32 %v3100, %v3164
        %v3197 = vadd.f32 %v3101, %v3165
        %v3198 = vadd.f32 %v3102, %v3166
        %v3199 = vadd.f32 %v3103, %v3167
        %v3200 = vadd.f32 %v3104, %v3168
        %v3201 = vadd.f32 %v3105, %v3169
        %v3202 = vadd.f32 %v3106, %v3170
        %v3203 = vadd.f32 %v3107, %v3171
        %v3204 = vadd.f32 %v3108, %v3172
        %v3205 = vadd.f32 %v3109, %v3173
        %v3206 = vadd.f32 %v3110, %v3174
        %v3207 = vadd.f32 %v3111, %v3175
        %v3208 = vadd.f32 %v3112, %v3176
        %v3209 = vadd.f32 %v3113, %v3177
        %v3210 = vadd.f32 %v3114, %v3178
        %v3211 = vadd.f32 %v3115, %v3179
        %v3212 = vadd.f32 %v3116, %v3180
        %v3213 = vadd.f32 %v3117, %v3181
        %v3214 = vadd.f32 %v3118, %v3182
        %v3215 = vadd.f32 %v3119, %v3183
        %v3216 = vadd.f32 %v3120, %v3184
        %v3217 = vadd.f32 %v3121, %v3185
        %v3218 = vadd.f32 %v3122, %v3186
        %v3219 = vadd.f32 %v3123, %v3187
        %v3220 = vadd.f32 %v2810, %v3188
        %v3221 = vadd.f32 %v2811, %v3189
        %v3222 = vadd.f32 %v2812, %v3190
        %v3223 = vadd.f32 %v2813, %v3191
        %v3224 = vadd.f32 %v2814, %v3192
        %v3225 = vadd.f32 %v2815, %v3193
        %v3226 = vadd.f32 %v2816, %v3194
        %v3227 = vadd.f32 %v2817, %v3195
        %v3228 = vadd.f32 %v2818, %v3196
        %v3229 = vadd.f32 %v2819, %v3197
        %v3230 = vadd.f32 %v2820, %v3198
        %v3231 = vadd.f32 %v2821, %v3199
        %v3232 = vadd.f32 %v2822, %v3200
        %v3233 = vadd.f32 %v2823, %v3201
        %v3234 = vadd.f32 %v2824, %v3202
        %v3235 = vadd.f32 %v2825, %v3203
        %v3236 = vadd.f32 %v2826, %v3204
        %v3237 = vadd.f32 %v2827, %v3205
        %v3238 = vadd.f32 %v2828, %v3206
        %v3239 = vadd.f32 %v2829, %v3207
        %v3240 = vadd.f32 %v2830, %v3208
        %v3241 = vadd.f32 %v2831, %v3209
        %v3242 = vadd.f32 %v2832, %v3210
        %v3243 = vadd.f32 %v2833, %v3211
        %v3244 = vadd.f32 %v2834, %v3212
        %v3245 = vadd.f32 %v2835, %v3213
        %v3246 = vadd.f32 %v2836, %v3214
        %v3247 = vadd.f32 %v2837, %v3215
        %v3248 = vadd.f32 %v2838, %v3216
        %v3249 = vadd.f32 %v2839, %v3217
        %v3250 = vadd.f32 %v2840, %v3218
        %v3251 = vadd.f32 %v2841, %v3219
        %v3252 = vmax.f32 %v3220, %v3224
        %v3253 = vmax.f32 %v3222, %v3226
        %v3254 = vmax.f32 %v3252, %v3228
        %v3255 = vmax.f32 %v3253, %v3230
        %v3256 = vmax.f32 %v3254, %v3232
        %v3257 = vmax.f32 %v3255, %v3234
        %v3258 = vmax.f32 %v3256, %v3236
        %v3259 = vmax.f32 %v3257, %v3238
        %v3260 = vmax.f32 %v3258, %v3240
        %v3261 = vmax.f32 %v3259, %v3242
        %v3262 = vmax.f32 %v3260, %v3244
        %v3263 = vmax.f32 %v3261, %v3246
        %v3264 = vmax.f32 %v3262, %v3248
        %v3265 = vmax.f32 %v3263, %v3250
        %v3266 = vmax.f32 %v3264, %v3265
        %v3267 = vmax.f32 %v3221, %v3225
        %v3268 = vmax.f32 %v3223, %v3227
        %v3269 = vmax.f32 %v3267, %v3229
        %v3270 = vmax.f32 %v3268, %v3231
        %v3271 = vmax.f32 %v3269, %v3233
        %v3272 = vmax.f32 %v3270, %v3235
        %v3273 = vmax.f32 %v3271, %v3237
        %v3274 = vmax.f32 %v3272, %v3239
        %v3275 = vmax.f32 %v3273, %v3241
        %v3276 = vmax.f32 %v3274, %v3243
        %v3277 = vmax.f32 %v3275, %v3245
        %v3278 = vmax.f32 %v3276, %v3247
        %v3279 = vmax.f32 %v3277, %v3249
        %v3280 = vmax.f32 %v3278, %v3251
        %v3281 = vmax.f32 %v3279, %v3280
        %v3282 = vsub.f32 %v3220, %v3266
        %v3283 = vsub.f32 %v3221, %v3281
        %v3284 = vsub.f32 %v3222, %v3266
        %v3285 = vsub.f32 %v3223, %v3281
        %v3286 = vsub.f32 %v3224, %v3266
        %v3287 = vsub.f32 %v3225, %v3281
        %v3288 = vsub.f32 %v3226, %v3266
        %v3289 = vsub.f32 %v3227, %v3281
        %v3290 = vsub.f32 %v3228, %v3266
        %v3291 = vsub.f32 %v3229, %v3281
        %v3292 = vsub.f32 %v3230, %v3266
        %v3293 = vsub.f32 %v3231, %v3281
        %v3294 = vsub.f32 %v3232, %v3266
        %v3295 = vsub.f32 %v3233, %v3281
        %v3296 = vsub.f32 %v3234, %v3266
        %v3297 = vsub.f32 %v3235, %v3281
        %v3298 = vsub.f32 %v3236, %v3266
        %v3299 = vsub.f32 %v3237, %v3281
        %v3300 = vsub.f32 %v3238, %v3266
        %v3301 = vsub.f32 %v3239, %v3281
        %v3302 = vsub.f32 %v3240, %v3266
        %v3303 = vsub.f32 %v3241, %v3281
        %v3304 = vsub.f32 %v3242, %v3266
        %v3305 = vsub.f32 %v3243, %v3281
        %v3306 = vsub.f32 %v3244, %v3266
        %v3307 = vsub.f32 %v3245, %v3281
        %v3308 = vsub.f32 %v3246, %v3266
        %v3309 = vsub.f32 %v3247, %v3281
        %v3310 = vsub.f32 %v3248, %v3266
        %v3311 = vsub.f32 %v3249, %v3281
        %v3312 = vsub.f32 %v3250, %v3266
        %v3313 = vsub.f32 %v3251, %v3281
        %v3314 = vmul.f32 %v3282, 1.442695
        %v3315 = vpow.pop %v3314
        %v3316 = vmul.f32 %v3283, 1.442695
        %v3317 = vpow.pop %v3316
        %v3318 = vmul.f32 %v3284, 1.442695
        %v3319 = vpow.pop %v3318
        %v3320 = vmul.f32 %v3285, 1.442695
        %v3321 = vpow.pop %v3320
        %v3322 = vmul.f32 %v3286, 1.442695
        %v3323 = vpow.pop %v3322
        %v3324 = vmul.f32 %v3287, 1.442695
        %v3325 = vpow.pop %v3324
        %v3326 = vmul.f32 %v3288, 1.442695
        %v3327 = vpow.pop %v3326
        %v3328 = vmul.f32 %v3289, 1.442695
        %v3329 = vpow.pop %v3328
        %v3330 = vmul.f32 %v3290, 1.442695
        %v3331 = vpow.pop %v3330
        %v3332 = vmul.f32 %v3291, 1.442695
        %v3333 = vpow.pop %v3332
        %v3334 = vmul.f32 %v3292, 1.442695
        %v3335 = vpow.pop %v3334
        %v3336 = vmul.f32 %v3293, 1.442695
        %v3337 = vpow.pop %v3336
        %v3338 = vmul.f32 %v3294, 1.442695
        %v3339 = vpow.pop %v3338
        %v3340 = vmul.f32 %v3295, 1.442695
        %v3341 = vpow.pop %v3340
        %v3342 = vmul.f32 %v3296, 1.442695
        %v3343 = vpow.pop %v3342
        %v3344 = vmul.f32 %v3297, 1.442695
        %v3345 = vpow.pop %v3344
        %v3346 = vmul.f32 %v3298, 1.442695
        %v3347 = vpow.pop %v3346
        %v3348 = vmul.f32 %v3299, 1.442695
        %v3349 = vpow.pop %v3348
        %v3350 = vmul.f32 %v3300, 1.442695
        %v3351 = vpow.pop %v3350
        %v3352 = vmul.f32 %v3301, 1.442695
        %v3353 = vpow.pop %v3352
        %v3354 = vmul.f32 %v3302, 1.442695
        %v3355 = vpow.pop %v3354
        %v3356 = vmul.f32 %v3303, 1.442695
        %v3357 = vpow.pop %v3356
        %v3358 = vmul.f32 %v3304, 1.442695
        %v3359 = vpow.pop %v3358
        %v3360 = vmul.f32 %v3305, 1.442695
        %v3361 = vpow.pop %v3360
        %v3362 = vmul.f32 %v3306, 1.442695
        %v3363 = vpow.pop %v3362
        %v3364 = vmul.f32 %v3307, 1.442695
        %v3365 = vpow.pop %v3364
        %v3366 = vmul.f32 %v3308, 1.442695
        %v3367 = vpow.pop %v3366
        %v3368 = vmul.f32 %v3309, 1.442695
        %v3369 = vpow.pop %v3368
        %v3370 = vmul.f32 %v3310, 1.442695
        %v3371 = vpow.pop %v3370
        %v3372 = vmul.f32 %v3311, 1.442695
        %v3373 = vpow.pop %v3372
        %v3374 = vmul.f32 %v3312, 1.442695
        %v3375 = vpow.pop %v3374
        %v3376 = vmul.f32 %v3313, 1.442695
        %v3377 = vpow.pop %v3376
        %v3378 = vadd.f32 %v3315, %v3319
        %v3379 = vadd.f32 %v3378, %v3323
        %v3380 = vadd.f32 %v3379, %v3327
        %v3381 = vadd.f32 %v3380, %v3331
        %v3382 = vadd.f32 %v3381, %v3335
        %v3383 = vadd.f32 %v3382, %v3339
        %v3384 = vadd.f32 %v3383, %v3343
        %v3385 = vadd.f32 %v3384, %v3347
        %v3386 = vadd.f32 %v3385, %v3351
        %v3387 = vadd.f32 %v3386, %v3355
        %v3388 = vadd.f32 %v3387, %v3359
        %v3389 = vadd.f32 %v3388, %v3363
        %v3390 = vadd.f32 %v3389, %v3367
        %v3391 = vadd.f32 %v3390, %v3371
        %v3392 = vadd.f32 %v3391, %v3375
        %v3393 = vadd.f32 %v3317, %v3321
        %v3394 = vadd.f32 %v3393, %v3325
        %v3395 = vadd.f32 %v3394, %v3329
        %v3396 = vadd.f32 %v3395, %v3333
        %v3397 = vadd.f32 %v3396, %v3337
        %v3398 = vadd.f32 %v3397, %v3341
        %v3399 = vadd.f32 %v3398, %v3345
        %v3400 = vadd.f32 %v3399, %v3349
        %v3401 = vadd.f32 %v3400, %v3353
        %v3402 = vadd.f32 %v3401, %v3357
        %v3403 = vadd.f32 %v3402, %v3361
        %v3404 = vadd.f32 %v3403, %v3365
        %v3405 = vadd.f32 %v3404, %v3369
        %v3406 = vadd.f32 %v3405, %v3373
        %v3407 = vadd.f32 %v3406, %v3377
        %v3408 = vrcp.pop %v3392
        %v3409 = vrcp.pop %v3407
        %s3410 = scalar_lea.vmem %s222, 192 [#allocation2]
        %v3411 = vld [vmem:[%s3410] sm:$0xff]
        %v3412 = vld [vmem:[%s3410 + $0x8] sm:$0xff]
        %v3415 = vcombine.high %v3411, %v3411
        %v3417 = vunpack.c.l.s4 1966171168
        %v3418 = vunpack.c.0.s8 %v3417
        %v3419 = vlaneseq
        %v3420 = vshrl.u32 %v3419, 7
        %v3421 = vsub.s32 %v3418, %v3420
        %v3422 = vrot.slane %v3411, %v3421
        %v3424 = vunpack.c.l.s4 1966171168
        %v3425 = vunpack.c.0.s8 %v3424
        %v3426 = vlaneseq
        %v3427 = vshrl.u32 %v3426, 7
        %v3428 = vsub.s32 %v3425, %v3427
        %v3429 = vrot.slane %v3415, %v3428
        %v3430 = vcombine.high %v3422, %v3422
        %v3431 = vcombine.high %v3429, %v3429
        %v3433 = vunpack.c.l.s4 1966171168
        %v3434 = vunpack.c.0.s8 %v3433
        %v3435 = vlaneseq
        %v3436 = vshrl.u32 %v3435, 7
        %v3437 = vsub.s32 %v3434, %v3436
        %v3438 = vrot.slane %v3422, %v3437
        %v3440 = vunpack.c.l.s4 1966171168
        %v3441 = vunpack.c.0.s8 %v3440
        %v3442 = vlaneseq
        %v3443 = vshrl.u32 %v3442, 7
        %v3444 = vsub.s32 %v3441, %v3443
        %v3445 = vrot.slane %v3429, %v3444
        %v3447 = vunpack.c.l.s4 1966171168
        %v3448 = vunpack.c.0.s8 %v3447
        %v3449 = vlaneseq
        %v3450 = vshrl.u32 %v3449, 7
        %v3451 = vsub.s32 %v3448, %v3450
        %v3452 = vrot.slane %v3430, %v3451
        %v3454 = vunpack.c.l.s4 1966171168
        %v3455 = vunpack.c.0.s8 %v3454
        %v3456 = vlaneseq
        %v3457 = vshrl.u32 %v3456, 7
        %v3458 = vsub.s32 %v3455, %v3457
        %v3459 = vrot.slane %v3431, %v3458
        %v3460 = vcombine.high %v3438, %v3438
        %v3461 = vcombine.high %v3445, %v3445
        %v3462 = vcombine.high %v3452, %v3452
        %v3463 = vcombine.high %v3459, %v3459
        %v3464 = vcombine.high %v3412, %v3412
        %v3466 = vunpack.c.l.s4 1966171168
        %v3467 = vunpack.c.0.s8 %v3466
        %v3468 = vlaneseq
        %v3469 = vshrl.u32 %v3468, 7
        %v3470 = vsub.s32 %v3467, %v3469
        %v3471 = vrot.slane %v3412, %v3470
        %v3473 = vunpack.c.l.s4 1966171168
        %v3474 = vunpack.c.0.s8 %v3473
        %v3475 = vlaneseq
        %v3476 = vshrl.u32 %v3475, 7
        %v3477 = vsub.s32 %v3474, %v3476
        %v3478 = vrot.slane %v3464, %v3477
        %v3479 = vcombine.high %v3471, %v3471
        %v3480 = vcombine.high %v3478, %v3478
        %v3482 = vunpack.c.l.s4 1966171168
        %v3483 = vunpack.c.0.s8 %v3482
        %v3484 = vlaneseq
        %v3485 = vshrl.u32 %v3484, 7
        %v3486 = vsub.s32 %v3483, %v3485
        %v3487 = vrot.slane %v3471, %v3486
        %v3489 = vunpack.c.l.s4 1966171168
        %v3490 = vunpack.c.0.s8 %v3489
        %v3491 = vlaneseq
        %v3492 = vshrl.u32 %v3491, 7
        %v3493 = vsub.s32 %v3490, %v3492
        %v3494 = vrot.slane %v3478, %v3493
        %v3496 = vunpack.c.l.s4 1966171168
        %v3497 = vunpack.c.0.s8 %v3496
        %v3498 = vlaneseq
        %v3499 = vshrl.u32 %v3498, 7
        %v3500 = vsub.s32 %v3497, %v3499
        %v3501 = vrot.slane %v3479, %v3500
        %v3503 = vunpack.c.l.s4 1966171168
        %v3504 = vunpack.c.0.s8 %v3503
        %v3505 = vlaneseq
        %v3506 = vshrl.u32 %v3505, 7
        %v3507 = vsub.s32 %v3504, %v3506
        %v3508 = vrot.slane %v3480, %v3507
        %v3509 = vcombine.high %v3487, %v3487
        %v3510 = vcombine.high %v3494, %v3494
        %v3511 = vcombine.high %v3501, %v3501
        %v3512 = vcombine.high %v3508, %v3508
        %v3513 = vld [vmem:[#allocation8] sm:$0xff]
        %v3514 = vld [vmem:[#allocation8 + $0x8] sm:$0xff]
        %v3515 = vld [vmem:[#allocation8 + $0x10] sm:$0xff]
        %v3516 = vld [vmem:[#allocation8 + $0x18] sm:$0xff]
        %v3517 = vld [vmem:[#allocation8 + $0x20] sm:$0xff]
        %v3518 = vld [vmem:[#allocation8 + $0x28] sm:$0xff]
        %v3519 = vld [vmem:[#allocation8 + $0x30] sm:$0xff]
        %v3520 = vld [vmem:[#allocation8 + $0x38] sm:$0xff]
        %v3521 = vld [vmem:[#allocation8 + $0x40] sm:$0xff]
        %v3522 = vld [vmem:[#allocation8 + $0x48] sm:$0xff]
        %v3523 = vld [vmem:[#allocation8 + $0x50] sm:$0xff]
        %v3524 = vld [vmem:[#allocation8 + $0x58] sm:$0xff]
        %v3525 = vld [vmem:[#allocation8 + $0x60] sm:$0xff]
        %v3526 = vld [vmem:[#allocation8 + $0x68] sm:$0xff]
        %v3527 = vld [vmem:[#allocation8 + $0x70] sm:$0xff]
        %v3528 = vld [vmem:[#allocation8 + $0x78] sm:$0xff]
        %v3529 = vld [vmem:[#allocation8 + $0x80] sm:$0xff]
        %v3530 = vld [vmem:[#allocation8 + $0x88] sm:$0xff]
        %v3531 = vld [vmem:[#allocation8 + $0x90] sm:$0xff]
        %v3532 = vld [vmem:[#allocation8 + $0x98] sm:$0xff]
        %v3533 = vld [vmem:[#allocation8 + $0xa0] sm:$0xff]
        %v3534 = vld [vmem:[#allocation8 + $0xa8] sm:$0xff]
        %v3535 = vld [vmem:[#allocation8 + $0xb0] sm:$0xff]
        %v3536 = vld [vmem:[#allocation8 + $0xb8] sm:$0xff]
        %v3537 = vld [vmem:[#allocation8 + $0xc0] sm:$0xff]
        %v3538 = vld [vmem:[#allocation8 + $0xc8] sm:$0xff]
        %v3539 = vld [vmem:[#allocation8 + $0xd0] sm:$0xff]
        %v3540 = vld [vmem:[#allocation8 + $0xd8] sm:$0xff]
        %v3541 = vld [vmem:[#allocation8 + $0xe0] sm:$0xff]
        %v3542 = vld [vmem:[#allocation8 + $0xe8] sm:$0xff]
        %v3543 = vld [vmem:[#allocation8 + $0xf0] sm:$0xff]
        %v3544 = vld [vmem:[#allocation8 + $0xf8] sm:$0xff]
        %v3545 = vlaneseq
        %v3546 = vshrl.u32 %v3545, 7
        %v3547 = vsub.s32 0, %v3546
        %v3548 = vrot.slane %v3438, %v3547
        %v3549 = vlaneseq
        %v3550 = vshrl.u32 %v3549, 7
        %v3551 = vsub.s32 0, %v3550
        %v3552 = vrot.slane %v3452, %v3551
        %v3553 = vlaneseq
        %v3554 = vshrl.u32 %v3553, 7
        %v3555 = vsub.s32 0, %v3554
        %v3556 = vrot.slane %v3460, %v3555
        %v3557 = vlaneseq
        %v3558 = vshrl.u32 %v3557, 7
        %v3559 = vsub.s32 0, %v3558
        %v3560 = vrot.slane %v3462, %v3559
        %v3561 = vlaneseq
        %v3562 = vshrl.u32 %v3561, 7
        %v3563 = vsub.s32 0, %v3562
        %v3564 = vrot.slane %v3445, %v3563
        %v3565 = vlaneseq
        %v3566 = vshrl.u32 %v3565, 7
        %v3567 = vsub.s32 0, %v3566
        %v3568 = vrot.slane %v3459, %v3567
        %v3569 = vlaneseq
        %v3570 = vshrl.u32 %v3569, 7
        %v3571 = vsub.s32 0, %v3570
        %v3572 = vrot.slane %v3461, %v3571
        %v3573 = vlaneseq
        %v3574 = vshrl.u32 %v3573, 7
        %v3575 = vsub.s32 0, %v3574
        %v3576 = vrot.slane %v3463, %v3575
        %v3577 = vlaneseq
        %v3578 = vshrl.u32 %v3577, 7
        %v3579 = vsub.s32 0, %v3578
        %v3580 = vrot.slane %v3487, %v3579
        %v3581 = vlaneseq
        %v3582 = vshrl.u32 %v3581, 7
        %v3583 = vsub.s32 0, %v3582
        %v3584 = vrot.slane %v3501, %v3583
        %v3585 = vlaneseq
        %v3586 = vshrl.u32 %v3585, 7
        %v3587 = vsub.s32 0, %v3586
        %v3588 = vrot.slane %v3509, %v3587
        %v3589 = vlaneseq
        %v3590 = vshrl.u32 %v3589, 7
        %v3591 = vsub.s32 0, %v3590
        %v3592 = vrot.slane %v3511, %v3591
        %v3593 = vlaneseq
        %v3594 = vshrl.u32 %v3593, 7
        %v3595 = vsub.s32 0, %v3594
        %v3596 = vrot.slane %v3494, %v3595
        %v3597 = vlaneseq
        %v3598 = vshrl.u32 %v3597, 7
        %v3599 = vsub.s32 0, %v3598
        %v3600 = vrot.slane %v3508, %v3599
        %v3601 = vlaneseq
        %v3602 = vshrl.u32 %v3601, 7
        %v3603 = vsub.s32 0, %v3602
        %v3604 = vrot.slane %v3510, %v3603
        %v3605 = vlaneseq
        %v3606 = vshrl.u32 %v3605, 7
        %v3607 = vsub.s32 0, %v3606
        %v3608 = vrot.slane %v3512, %v3607
        %v3625 = vadd.f32 %v3548, %v3513
        %v3626 = vadd.f32 %v3548, %v3514
        %v3627 = vadd.f32 %v3552, %v3515
        %v3628 = vadd.f32 %v3552, %v3516
        %v3629 = vadd.f32 %v3556, %v3517
        %v3630 = vadd.f32 %v3556, %v3518
        %v3631 = vadd.f32 %v3560, %v3519
        %v3632 = vadd.f32 %v3560, %v3520
        %v3633 = vadd.f32 %v3564, %v3521
        %v3634 = vadd.f32 %v3564, %v3522
        %v3635 = vadd.f32 %v3568, %v3523
        %v3636 = vadd.f32 %v3568, %v3524
        %v3637 = vadd.f32 %v3572, %v3525
        %v3638 = vadd.f32 %v3572, %v3526
        %v3639 = vadd.f32 %v3576, %v3527
        %v3640 = vadd.f32 %v3576, %v3528
        %v3641 = vadd.f32 %v3580, %v3529
        %v3642 = vadd.f32 %v3580, %v3530
        %v3643 = vadd.f32 %v3584, %v3531
        %v3644 = vadd.f32 %v3584, %v3532
        %v3645 = vadd.f32 %v3588, %v3533
        %v3646 = vadd.f32 %v3588, %v3534
        %v3647 = vadd.f32 %v3592, %v3535
        %v3648 = vadd.f32 %v3592, %v3536
        %v3649 = vadd.f32 %v3596, %v3537
        %v3650 = vadd.f32 %v3596, %v3538
        %v3651 = vadd.f32 %v3600, %v3539
        %v3652 = vadd.f32 %v3600, %v3540
        %v3653 = vadd.f32 %v3604, %v3541
        %v3654 = vadd.f32 %v3604, %v3542
        %v3655 = vadd.f32 %v3608, %v3543
        %v3656 = vadd.f32 %v3608, %v3544
        %v3657 = vmul.f32 %v3315, %v3625
        %v3658 = vmul.f32 %v3317, %v3626
        %v3659 = vmul.f32 %v3319, %v3627
        %v3660 = vmul.f32 %v3321, %v3628
        %v3661 = vmul.f32 %v3323, %v3629
        %v3662 = vmul.f32 %v3325, %v3630
        %v3663 = vmul.f32 %v3327, %v3631
        %v3664 = vmul.f32 %v3329, %v3632
        %v3665 = vmul.f32 %v3331, %v3633
        %v3666 = vmul.f32 %v3333, %v3634
        %v3667 = vmul.f32 %v3335, %v3635
        %v3668 = vmul.f32 %v3337, %v3636
        %v3669 = vmul.f32 %v3339, %v3637
        %v3670 = vmul.f32 %v3341, %v3638
        %v3671 = vmul.f32 %v3343, %v3639
        %v3672 = vmul.f32 %v3345, %v3640
        %v3673 = vmul.f32 %v3347, %v3641
        %v3674 = vmul.f32 %v3349, %v3642
        %v3675 = vmul.f32 %v3351, %v3643
        %v3676 = vmul.f32 %v3353, %v3644
        %v3677 = vmul.f32 %v3355, %v3645
        %v3678 = vmul.f32 %v3357, %v3646
        %v3679 = vmul.f32 %v3359, %v3647
        %v3680 = vmul.f32 %v3361, %v3648
        %v3681 = vmul.f32 %v3363, %v3649
        %v3682 = vmul.f32 %v3365, %v3650
        %v3683 = vmul.f32 %v3367, %v3651
        %v3684 = vmul.f32 %v3369, %v3652
        %v3685 = vmul.f32 %v3371, %v3653
        %v3686 = vmul.f32 %v3373, %v3654
        %v3687 = vmul.f32 %v3375, %v3655
        %v3688 = vmul.f32 %v3377, %v3656
        %v3689 = vadd.f32 %v3657, %v3659
        %v3690 = vadd.f32 %v3689, %v3661
        %v3691 = vadd.f32 %v3690, %v3663
        %v3692 = vadd.f32 %v3691, %v3665
        %v3693 = vadd.f32 %v3692, %v3667
        %v3694 = vadd.f32 %v3693, %v3669
        %v3695 = vadd.f32 %v3694, %v3671
        %v3696 = vadd.f32 %v3695, %v3673
        %v3697 = vadd.f32 %v3696, %v3675
        %v3698 = vadd.f32 %v3697, %v3677
        %v3699 = vadd.f32 %v3698, %v3679
        %v3700 = vadd.f32 %v3699, %v3681
        %v3701 = vadd.f32 %v3700, %v3683
        %v3702 = vadd.f32 %v3701, %v3685
        %v3703 = vadd.f32 %v3702, %v3687
        %v3704 = vadd.f32 %v3658, %v3660
        %v3705 = vadd.f32 %v3704, %v3662
        %v3706 = vadd.f32 %v3705, %v3664
        %v3707 = vadd.f32 %v3706, %v3666
        %v3708 = vadd.f32 %v3707, %v3668
        %v3709 = vadd.f32 %v3708, %v3670
        %v3710 = vadd.f32 %v3709, %v3672
        %v3711 = vadd.f32 %v3710, %v3674
        %v3712 = vadd.f32 %v3711, %v3676
        %v3713 = vadd.f32 %v3712, %v3678
        %v3714 = vadd.f32 %v3713, %v3680
        %v3715 = vadd.f32 %v3714, %v3682
        %v3716 = vadd.f32 %v3715, %v3684
        %v3717 = vadd.f32 %v3716, %v3686
        %v3718 = vadd.f32 %v3717, %v3688
        %v3719 = vmul.f32 %v3703, %v3408
        %v3720 = vmul.f32 %v3718, %v3409
        %s3721 = scalar_lea.vmem %s258, 64 [#allocation10]
        %3722 = vst [vmem:[%s3721] sm:$0xff] %v3719
        %3723 = vst [vmem:[%s3721 + $0x8] sm:$0xff] %v3720
        %s3724 = scalar_lea.vmem %s222, 208 [#allocation2]
        %v3725 = vld [vmem:[%s3724] sm:$0xff]
        %v3726 = vld [vmem:[%s3724 + $0x8] sm:$0xff]
        %v3729 = vcombine.high %v3725, %v3725
        %v3731 = vunpack.c.l.s4 1966171168
        %v3732 = vunpack.c.0.s8 %v3731
        %v3733 = vlaneseq
        %v3734 = vshrl.u32 %v3733, 7
        %v3735 = vsub.s32 %v3732, %v3734
        %v3736 = vrot.slane %v3725, %v3735
        %v3738 = vunpack.c.l.s4 1966171168
        %v3739 = vunpack.c.0.s8 %v3738
        %v3740 = vlaneseq
        %v3741 = vshrl.u32 %v3740, 7
        %v3742 = vsub.s32 %v3739, %v3741
        %v3743 = vrot.slane %v3729, %v3742
        %v3744 = vcombine.high %v3736, %v3736
        %v3745 = vcombine.high %v3743, %v3743
        %v3747 = vunpack.c.l.s4 1966171168
        %v3748 = vunpack.c.0.s8 %v3747
        %v3749 = vlaneseq
        %v3750 = vshrl.u32 %v3749, 7
        %v3751 = vsub.s32 %v3748, %v3750
        %v3752 = vrot.slane %v3736, %v3751
        %v3754 = vunpack.c.l.s4 1966171168
        %v3755 = vunpack.c.0.s8 %v3754
        %v3756 = vlaneseq
        %v3757 = vshrl.u32 %v3756, 7
        %v3758 = vsub.s32 %v3755, %v3757
        %v3759 = vrot.slane %v3743, %v3758
        %v3761 = vunpack.c.l.s4 1966171168
        %v3762 = vunpack.c.0.s8 %v3761
        %v3763 = vlaneseq
        %v3764 = vshrl.u32 %v3763, 7
        %v3765 = vsub.s32 %v3762, %v3764
        %v3766 = vrot.slane %v3744, %v3765
        %v3768 = vunpack.c.l.s4 1966171168
        %v3769 = vunpack.c.0.s8 %v3768
        %v3770 = vlaneseq
        %v3771 = vshrl.u32 %v3770, 7
        %v3772 = vsub.s32 %v3769, %v3771
        %v3773 = vrot.slane %v3745, %v3772
        %v3774 = vcombine.high %v3752, %v3752
        %v3775 = vcombine.high %v3759, %v3759
        %v3776 = vcombine.high %v3766, %v3766
        %v3777 = vcombine.high %v3773, %v3773
        %v3778 = vcombine.high %v3726, %v3726
        %v3780 = vunpack.c.l.s4 1966171168
        %v3781 = vunpack.c.0.s8 %v3780
        %v3782 = vlaneseq
        %v3783 = vshrl.u32 %v3782, 7
        %v3784 = vsub.s32 %v3781, %v3783
        %v3785 = vrot.slane %v3726, %v3784
        %v3787 = vunpack.c.l.s4 1966171168
        %v3788 = vunpack.c.0.s8 %v3787
        %v3789 = vlaneseq
        %v3790 = vshrl.u32 %v3789, 7
        %v3791 = vsub.s32 %v3788, %v3790
        %v3792 = vrot.slane %v3778, %v3791
        %v3793 = vcombine.high %v3785, %v3785
        %v3794 = vcombine.high %v3792, %v3792
        %v3796 = vunpack.c.l.s4 1966171168
        %v3797 = vunpack.c.0.s8 %v3796
        %v3798 = vlaneseq
        %v3799 = vshrl.u32 %v3798, 7
        %v3800 = vsub.s32 %v3797, %v3799
        %v3801 = vrot.slane %v3785, %v3800
        %v3803 = vunpack.c.l.s4 1966171168
        %v3804 = vunpack.c.0.s8 %v3803
        %v3805 = vlaneseq
        %v3806 = vshrl.u32 %v3805, 7
        %v3807 = vsub.s32 %v3804, %v3806
        %v3808 = vrot.slane %v3792, %v3807
        %v3810 = vunpack.c.l.s4 1966171168
        %v3811 = vunpack.c.0.s8 %v3810
        %v3812 = vlaneseq
        %v3813 = vshrl.u32 %v3812, 7
        %v3814 = vsub.s32 %v3811, %v3813
        %v3815 = vrot.slane %v3793, %v3814
        %v3817 = vunpack.c.l.s4 1966171168
        %v3818 = vunpack.c.0.s8 %v3817
        %v3819 = vlaneseq
        %v3820 = vshrl.u32 %v3819, 7
        %v3821 = vsub.s32 %v3818, %v3820
        %v3822 = vrot.slane %v3794, %v3821
        %v3823 = vcombine.high %v3801, %v3801
        %v3824 = vcombine.high %v3808, %v3808
        %v3825 = vcombine.high %v3815, %v3815
        %v3826 = vcombine.high %v3822, %v3822
        %v3827 = vld [vmem:[%s1622] sm:$0xff]
        %v3828 = vld [vmem:[%s1622 + $0x8] sm:$0xff]
        %v3829 = vld [vmem:[%s1622 + $0x10] sm:$0xff]
        %v3830 = vld [vmem:[%s1622 + $0x18] sm:$0xff]
        %v3831 = vld [vmem:[%s1622 + $0x20] sm:$0xff]
        %v3832 = vld [vmem:[%s1622 + $0x28] sm:$0xff]
        %v3833 = vld [vmem:[%s1622 + $0x30] sm:$0xff]
        %v3834 = vld [vmem:[%s1622 + $0x38] sm:$0xff]
        %v3835 = vld [vmem:[%s1622 + $0x40] sm:$0xff]
        %v3836 = vld [vmem:[%s1622 + $0x48] sm:$0xff]
        %v3837 = vld [vmem:[%s1622 + $0x50] sm:$0xff]
        %v3838 = vld [vmem:[%s1622 + $0x58] sm:$0xff]
        %v3839 = vld [vmem:[%s1622 + $0x60] sm:$0xff]
        %v3840 = vld [vmem:[%s1622 + $0x68] sm:$0xff]
        %v3841 = vld [vmem:[%s1622 + $0x70] sm:$0xff]
        %v3842 = vld [vmem:[%s1622 + $0x78] sm:$0xff]
        %v3843 = vld [vmem:[%s1622 + $0x80] sm:$0xff]
        %v3844 = vld [vmem:[%s1622 + $0x88] sm:$0xff]
        %v3845 = vld [vmem:[%s1622 + $0x90] sm:$0xff]
        %v3846 = vld [vmem:[%s1622 + $0x98] sm:$0xff]
        %v3847 = vld [vmem:[%s1622 + $0xa0] sm:$0xff]
        %v3848 = vld [vmem:[%s1622 + $0xa8] sm:$0xff]
        %v3849 = vld [vmem:[%s1622 + $0xb0] sm:$0xff]
        %v3850 = vld [vmem:[%s1622 + $0xb8] sm:$0xff]
        %v3851 = vld [vmem:[%s1622 + $0xc0] sm:$0xff]
        %v3852 = vld [vmem:[%s1622 + $0xc8] sm:$0xff]
        %v3853 = vld [vmem:[%s1622 + $0xd0] sm:$0xff]
        %v3854 = vld [vmem:[%s1622 + $0xd8] sm:$0xff]
        %v3855 = vld [vmem:[%s1622 + $0xe0] sm:$0xff]
        %v3856 = vld [vmem:[%s1622 + $0xe8] sm:$0xff]
        %v3857 = vld [vmem:[%s1622 + $0xf0] sm:$0xff]
        %v3858 = vld [vmem:[%s1622 + $0xf8] sm:$0xff]
        %v3859 = vlaneseq
        %v3860 = vshrl.u32 %v3859, 7
        %v3861 = vsub.s32 0, %v3860
        %v3862 = vrot.slane %v3752, %v3861
        %v3863 = vlaneseq
        %v3864 = vshrl.u32 %v3863, 7
        %v3865 = vsub.s32 0, %v3864
        %v3866 = vrot.slane %v3766, %v3865
        %v3867 = vlaneseq
        %v3868 = vshrl.u32 %v3867, 7
        %v3869 = vsub.s32 0, %v3868
        %v3870 = vrot.slane %v3774, %v3869
        %v3871 = vlaneseq
        %v3872 = vshrl.u32 %v3871, 7
        %v3873 = vsub.s32 0, %v3872
        %v3874 = vrot.slane %v3776, %v3873
        %v3875 = vlaneseq
        %v3876 = vshrl.u32 %v3875, 7
        %v3877 = vsub.s32 0, %v3876
        %v3878 = vrot.slane %v3759, %v3877
        %v3879 = vlaneseq
        %v3880 = vshrl.u32 %v3879, 7
        %v3881 = vsub.s32 0, %v3880
        %v3882 = vrot.slane %v3773, %v3881
        %v3883 = vlaneseq
        %v3884 = vshrl.u32 %v3883, 7
        %v3885 = vsub.s32 0, %v3884
        %v3886 = vrot.slane %v3775, %v3885
        %v3887 = vlaneseq
        %v3888 = vshrl.u32 %v3887, 7
        %v3889 = vsub.s32 0, %v3888
        %v3890 = vrot.slane %v3777, %v3889
        %v3891 = vlaneseq
        %v3892 = vshrl.u32 %v3891, 7
        %v3893 = vsub.s32 0, %v3892
        %v3894 = vrot.slane %v3801, %v3893
        %v3895 = vlaneseq
        %v3896 = vshrl.u32 %v3895, 7
        %v3897 = vsub.s32 0, %v3896
        %v3898 = vrot.slane %v3815, %v3897
        %v3899 = vlaneseq
        %v3900 = vshrl.u32 %v3899, 7
        %v3901 = vsub.s32 0, %v3900
        %v3902 = vrot.slane %v3823, %v3901
        %v3903 = vlaneseq
        %v3904 = vshrl.u32 %v3903, 7
        %v3905 = vsub.s32 0, %v3904
        %v3906 = vrot.slane %v3825, %v3905
        %v3907 = vlaneseq
        %v3908 = vshrl.u32 %v3907, 7
        %v3909 = vsub.s32 0, %v3908
        %v3910 = vrot.slane %v3808, %v3909
        %v3911 = vlaneseq
        %v3912 = vshrl.u32 %v3911, 7
        %v3913 = vsub.s32 0, %v3912
        %v3914 = vrot.slane %v3822, %v3913
        %v3915 = vlaneseq
        %v3916 = vshrl.u32 %v3915, 7
        %v3917 = vsub.s32 0, %v3916
        %v3918 = vrot.slane %v3824, %v3917
        %v3919 = vlaneseq
        %v3920 = vshrl.u32 %v3919, 7
        %v3921 = vsub.s32 0, %v3920
        %v3922 = vrot.slane %v3826, %v3921
        %v3939 = vadd.f32 %v3862, %v3827
        %v3940 = vadd.f32 %v3862, %v3828
        %v3941 = vadd.f32 %v3866, %v3829
        %v3942 = vadd.f32 %v3866, %v3830
        %v3943 = vadd.f32 %v3870, %v3831
        %v3944 = vadd.f32 %v3870, %v3832
        %v3945 = vadd.f32 %v3874, %v3833
        %v3946 = vadd.f32 %v3874, %v3834
        %v3947 = vadd.f32 %v3878, %v3835
        %v3948 = vadd.f32 %v3878, %v3836
        %v3949 = vadd.f32 %v3882, %v3837
        %v3950 = vadd.f32 %v3882, %v3838
        %v3951 = vadd.f32 %v3886, %v3839
        %v3952 = vadd.f32 %v3886, %v3840
        %v3953 = vadd.f32 %v3890, %v3841
        %v3954 = vadd.f32 %v3890, %v3842
        %v3955 = vadd.f32 %v3894, %v3843
        %v3956 = vadd.f32 %v3894, %v3844
        %v3957 = vadd.f32 %v3898, %v3845
        %v3958 = vadd.f32 %v3898, %v3846
        %v3959 = vadd.f32 %v3902, %v3847
        %v3960 = vadd.f32 %v3902, %v3848
        %v3961 = vadd.f32 %v3906, %v3849
        %v3962 = vadd.f32 %v3906, %v3850
        %v3963 = vadd.f32 %v3910, %v3851
        %v3964 = vadd.f32 %v3910, %v3852
        %v3965 = vadd.f32 %v3914, %v3853
        %v3966 = vadd.f32 %v3914, %v3854
        %v3967 = vadd.f32 %v3918, %v3855
        %v3968 = vadd.f32 %v3918, %v3856
        %v3969 = vadd.f32 %v3922, %v3857
        %v3970 = vadd.f32 %v3922, %v3858
        %v3971 = vmul.f32 %v3315, %v3939
        %v3972 = vmul.f32 %v3317, %v3940
        %v3973 = vmul.f32 %v3319, %v3941
        %v3974 = vmul.f32 %v3321, %v3942
        %v3975 = vmul.f32 %v3323, %v3943
        %v3976 = vmul.f32 %v3325, %v3944
        %v3977 = vmul.f32 %v3327, %v3945
        %v3978 = vmul.f32 %v3329, %v3946
        %v3979 = vmul.f32 %v3331, %v3947
        %v3980 = vmul.f32 %v3333, %v3948
        %v3981 = vmul.f32 %v3335, %v3949
        %v3982 = vmul.f32 %v3337, %v3950
        %v3983 = vmul.f32 %v3339, %v3951
        %v3984 = vmul.f32 %v3341, %v3952
        %v3985 = vmul.f32 %v3343, %v3953
        %v3986 = vmul.f32 %v3345, %v3954
        %v3987 = vmul.f32 %v3347, %v3955
        %v3988 = vmul.f32 %v3349, %v3956
        %v3989 = vmul.f32 %v3351, %v3957
        %v3990 = vmul.f32 %v3353, %v3958
        %v3991 = vmul.f32 %v3355, %v3959
        %v3992 = vmul.f32 %v3357, %v3960
        %v3993 = vmul.f32 %v3359, %v3961
        %v3994 = vmul.f32 %v3361, %v3962
        %v3995 = vmul.f32 %v3363, %v3963
        %v3996 = vmul.f32 %v3365, %v3964
        %v3997 = vmul.f32 %v3367, %v3965
        %v3998 = vmul.f32 %v3369, %v3966
        %v3999 = vmul.f32 %v3371, %v3967
        %v4000 = vmul.f32 %v3373, %v3968
        %v4001 = vmul.f32 %v3375, %v3969
        %v4002 = vmul.f32 %v3377, %v3970
        %v4003 = vadd.f32 %v3971, %v3973
        %v4004 = vadd.f32 %v4003, %v3975
        %v4005 = vadd.f32 %v4004, %v3977
        %v4006 = vadd.f32 %v4005, %v3979
        %v4007 = vadd.f32 %v4006, %v3981
        %v4008 = vadd.f32 %v4007, %v3983
        %v4009 = vadd.f32 %v4008, %v3985
        %v4010 = vadd.f32 %v4009, %v3987
        %v4011 = vadd.f32 %v4010, %v3989
        %v4012 = vadd.f32 %v4011, %v3991
        %v4013 = vadd.f32 %v4012, %v3993
        %v4014 = vadd.f32 %v4013, %v3995
        %v4015 = vadd.f32 %v4014, %v3997
        %v4016 = vadd.f32 %v4015, %v3999
        %v4017 = vadd.f32 %v4016, %v4001
        %v4018 = vadd.f32 %v3972, %v3974
        %v4019 = vadd.f32 %v4018, %v3976
        %v4020 = vadd.f32 %v4019, %v3978
        %v4021 = vadd.f32 %v4020, %v3980
        %v4022 = vadd.f32 %v4021, %v3982
        %v4023 = vadd.f32 %v4022, %v3984
        %v4024 = vadd.f32 %v4023, %v3986
        %v4025 = vadd.f32 %v4024, %v3988
        %v4026 = vadd.f32 %v4025, %v3990
        %v4027 = vadd.f32 %v4026, %v3992
        %v4028 = vadd.f32 %v4027, %v3994
        %v4029 = vadd.f32 %v4028, %v3996
        %v4030 = vadd.f32 %v4029, %v3998
        %v4031 = vadd.f32 %v4030, %v4000
        %v4032 = vadd.f32 %v4031, %v4002
        %v4033 = vmul.f32 %v4017, %v3408
        %v4034 = vmul.f32 %v4032, %v3409
        %s4035 = scalar_lea.vmem %s258, 80 [#allocation10]
        %4036 = vst [vmem:[%s4035] sm:$0xff] %v4033
        %4037 = vst [vmem:[%s4035 + $0x8] sm:$0xff] %v4034
        %s4038 = scalar_lea.vmem %s222, 224 [#allocation2]
        %v4039 = vld [vmem:[%s4038] sm:$0xff]
        %v4040 = vld [vmem:[%s4038 + $0x8] sm:$0xff]
        %v4043 = vcombine.high %v4039, %v4039
        %v4045 = vunpack.c.l.s4 1966171168
        %v4046 = vunpack.c.0.s8 %v4045
        %v4047 = vlaneseq
        %v4048 = vshrl.u32 %v4047, 7
        %v4049 = vsub.s32 %v4046, %v4048
        %v4050 = vrot.slane %v4039, %v4049
        %v4052 = vunpack.c.l.s4 1966171168
        %v4053 = vunpack.c.0.s8 %v4052
        %v4054 = vlaneseq
        %v4055 = vshrl.u32 %v4054, 7
        %v4056 = vsub.s32 %v4053, %v4055
        %v4057 = vrot.slane %v4043, %v4056
        %v4058 = vcombine.high %v4050, %v4050
        %v4059 = vcombine.high %v4057, %v4057
        %v4061 = vunpack.c.l.s4 1966171168
        %v4062 = vunpack.c.0.s8 %v4061
        %v4063 = vlaneseq
        %v4064 = vshrl.u32 %v4063, 7
        %v4065 = vsub.s32 %v4062, %v4064
        %v4066 = vrot.slane %v4050, %v4065
        %v4068 = vunpack.c.l.s4 1966171168
        %v4069 = vunpack.c.0.s8 %v4068
        %v4070 = vlaneseq
        %v4071 = vshrl.u32 %v4070, 7
        %v4072 = vsub.s32 %v4069, %v4071
        %v4073 = vrot.slane %v4057, %v4072
        %v4075 = vunpack.c.l.s4 1966171168
        %v4076 = vunpack.c.0.s8 %v4075
        %v4077 = vlaneseq
        %v4078 = vshrl.u32 %v4077, 7
        %v4079 = vsub.s32 %v4076, %v4078
        %v4080 = vrot.slane %v4058, %v4079
        %v4082 = vunpack.c.l.s4 1966171168
        %v4083 = vunpack.c.0.s8 %v4082
        %v4084 = vlaneseq
        %v4085 = vshrl.u32 %v4084, 7
        %v4086 = vsub.s32 %v4083, %v4085
        %v4087 = vrot.slane %v4059, %v4086
        %v4088 = vcombine.high %v4066, %v4066
        %v4089 = vcombine.high %v4073, %v4073
        %v4090 = vcombine.high %v4080, %v4080
        %v4091 = vcombine.high %v4087, %v4087
        %v4092 = vcombine.high %v4040, %v4040
        %v4094 = vunpack.c.l.s4 1966171168
        %v4095 = vunpack.c.0.s8 %v4094
        %v4096 = vlaneseq
        %v4097 = vshrl.u32 %v4096, 7
        %v4098 = vsub.s32 %v4095, %v4097
        %v4099 = vrot.slane %v4040, %v4098
        %v4101 = vunpack.c.l.s4 1966171168
        %v4102 = vunpack.c.0.s8 %v4101
        %v4103 = vlaneseq
        %v4104 = vshrl.u32 %v4103, 7
        %v4105 = vsub.s32 %v4102, %v4104
        %v4106 = vrot.slane %v4092, %v4105
        %v4107 = vcombine.high %v4099, %v4099
        %v4108 = vcombine.high %v4106, %v4106
        %v4110 = vunpack.c.l.s4 1966171168
        %v4111 = vunpack.c.0.s8 %v4110
        %v4112 = vlaneseq
        %v4113 = vshrl.u32 %v4112, 7
        %v4114 = vsub.s32 %v4111, %v4113
        %v4115 = vrot.slane %v4099, %v4114
        %v4117 = vunpack.c.l.s4 1966171168
        %v4118 = vunpack.c.0.s8 %v4117
        %v4119 = vlaneseq
        %v4120 = vshrl.u32 %v4119, 7
        %v4121 = vsub.s32 %v4118, %v4120
        %v4122 = vrot.slane %v4106, %v4121
        %v4124 = vunpack.c.l.s4 1966171168
        %v4125 = vunpack.c.0.s8 %v4124
        %v4126 = vlaneseq
        %v4127 = vshrl.u32 %v4126, 7
        %v4128 = vsub.s32 %v4125, %v4127
        %v4129 = vrot.slane %v4107, %v4128
        %v4131 = vunpack.c.l.s4 1966171168
        %v4132 = vunpack.c.0.s8 %v4131
        %v4133 = vlaneseq
        %v4134 = vshrl.u32 %v4133, 7
        %v4135 = vsub.s32 %v4132, %v4134
        %v4136 = vrot.slane %v4108, %v4135
        %v4137 = vcombine.high %v4115, %v4115
        %v4138 = vcombine.high %v4122, %v4122
        %v4139 = vcombine.high %v4129, %v4129
        %v4140 = vcombine.high %v4136, %v4136
        %v4141 = vld [vmem:[%s1937] sm:$0xff]
        %v4142 = vld [vmem:[%s1937 + $0x8] sm:$0xff]
        %v4143 = vld [vmem:[%s1937 + $0x10] sm:$0xff]
        %v4144 = vld [vmem:[%s1937 + $0x18] sm:$0xff]
        %v4145 = vld [vmem:[%s1937 + $0x20] sm:$0xff]
        %v4146 = vld [vmem:[%s1937 + $0x28] sm:$0xff]
        %v4147 = vld [vmem:[%s1937 + $0x30] sm:$0xff]
        %v4148 = vld [vmem:[%s1937 + $0x38] sm:$0xff]
        %v4149 = vld [vmem:[%s1937 + $0x40] sm:$0xff]
        %v4150 = vld [vmem:[%s1937 + $0x48] sm:$0xff]
        %v4151 = vld [vmem:[%s1937 + $0x50] sm:$0xff]
        %v4152 = vld [vmem:[%s1937 + $0x58] sm:$0xff]
        %v4153 = vld [vmem:[%s1937 + $0x60] sm:$0xff]
        %v4154 = vld [vmem:[%s1937 + $0x68] sm:$0xff]
        %v4155 = vld [vmem:[%s1937 + $0x70] sm:$0xff]
        %v4156 = vld [vmem:[%s1937 + $0x78] sm:$0xff]
        %v4157 = vld [vmem:[%s1937 + $0x80] sm:$0xff]
        %v4158 = vld [vmem:[%s1937 + $0x88] sm:$0xff]
        %v4159 = vld [vmem:[%s1937 + $0x90] sm:$0xff]
        %v4160 = vld [vmem:[%s1937 + $0x98] sm:$0xff]
        %v4161 = vld [vmem:[%s1937 + $0xa0] sm:$0xff]
        %v4162 = vld [vmem:[%s1937 + $0xa8] sm:$0xff]
        %v4163 = vld [vmem:[%s1937 + $0xb0] sm:$0xff]
        %v4164 = vld [vmem:[%s1937 + $0xb8] sm:$0xff]
        %v4165 = vld [vmem:[%s1937 + $0xc0] sm:$0xff]
        %v4166 = vld [vmem:[%s1937 + $0xc8] sm:$0xff]
        %v4167 = vld [vmem:[%s1937 + $0xd0] sm:$0xff]
        %v4168 = vld [vmem:[%s1937 + $0xd8] sm:$0xff]
        %v4169 = vld [vmem:[%s1937 + $0xe0] sm:$0xff]
        %v4170 = vld [vmem:[%s1937 + $0xe8] sm:$0xff]
        %v4171 = vld [vmem:[%s1937 + $0xf0] sm:$0xff]
        %v4172 = vld [vmem:[%s1937 + $0xf8] sm:$0xff]
        %v4173 = vlaneseq
        %v4174 = vshrl.u32 %v4173, 7
        %v4175 = vsub.s32 0, %v4174
        %v4176 = vrot.slane %v4066, %v4175
        %v4177 = vlaneseq
        %v4178 = vshrl.u32 %v4177, 7
        %v4179 = vsub.s32 0, %v4178
        %v4180 = vrot.slane %v4080, %v4179
        %v4181 = vlaneseq
        %v4182 = vshrl.u32 %v4181, 7
        %v4183 = vsub.s32 0, %v4182
        %v4184 = vrot.slane %v4088, %v4183
        %v4185 = vlaneseq
        %v4186 = vshrl.u32 %v4185, 7
        %v4187 = vsub.s32 0, %v4186
        %v4188 = vrot.slane %v4090, %v4187
        %v4189 = vlaneseq
        %v4190 = vshrl.u32 %v4189, 7
        %v4191 = vsub.s32 0, %v4190
        %v4192 = vrot.slane %v4073, %v4191
        %v4193 = vlaneseq
        %v4194 = vshrl.u32 %v4193, 7
        %v4195 = vsub.s32 0, %v4194
        %v4196 = vrot.slane %v4087, %v4195
        %v4197 = vlaneseq
        %v4198 = vshrl.u32 %v4197, 7
        %v4199 = vsub.s32 0, %v4198
        %v4200 = vrot.slane %v4089, %v4199
        %v4201 = vlaneseq
        %v4202 = vshrl.u32 %v4201, 7
        %v4203 = vsub.s32 0, %v4202
        %v4204 = vrot.slane %v4091, %v4203
        %v4205 = vlaneseq
        %v4206 = vshrl.u32 %v4205, 7
        %v4207 = vsub.s32 0, %v4206
        %v4208 = vrot.slane %v4115, %v4207
        %v4209 = vlaneseq
        %v4210 = vshrl.u32 %v4209, 7
        %v4211 = vsub.s32 0, %v4210
        %v4212 = vrot.slane %v4129, %v4211
        %v4213 = vlaneseq
        %v4214 = vshrl.u32 %v4213, 7
        %v4215 = vsub.s32 0, %v4214
        %v4216 = vrot.slane %v4137, %v4215
        %v4217 = vlaneseq
        %v4218 = vshrl.u32 %v4217, 7
        %v4219 = vsub.s32 0, %v4218
        %v4220 = vrot.slane %v4139, %v4219
        %v4221 = vlaneseq
        %v4222 = vshrl.u32 %v4221, 7
        %v4223 = vsub.s32 0, %v4222
        %v4224 = vrot.slane %v4122, %v4223
        %v4225 = vlaneseq
        %v4226 = vshrl.u32 %v4225, 7
        %v4227 = vsub.s32 0, %v4226
        %v4228 = vrot.slane %v4136, %v4227
        %v4229 = vlaneseq
        %v4230 = vshrl.u32 %v4229, 7
        %v4231 = vsub.s32 0, %v4230
        %v4232 = vrot.slane %v4138, %v4231
        %v4233 = vlaneseq
        %v4234 = vshrl.u32 %v4233, 7
        %v4235 = vsub.s32 0, %v4234
        %v4236 = vrot.slane %v4140, %v4235
        %v4253 = vadd.f32 %v4176, %v4141
        %v4254 = vadd.f32 %v4176, %v4142
        %v4255 = vadd.f32 %v4180, %v4143
        %v4256 = vadd.f32 %v4180, %v4144
        %v4257 = vadd.f32 %v4184, %v4145
        %v4258 = vadd.f32 %v4184, %v4146
        %v4259 = vadd.f32 %v4188, %v4147
        %v4260 = vadd.f32 %v4188, %v4148
        %v4261 = vadd.f32 %v4192, %v4149
        %v4262 = vadd.f32 %v4192, %v4150
        %v4263 = vadd.f32 %v4196, %v4151
        %v4264 = vadd.f32 %v4196, %v4152
        %v4265 = vadd.f32 %v4200, %v4153
        %v4266 = vadd.f32 %v4200, %v4154
        %v4267 = vadd.f32 %v4204, %v4155
        %v4268 = vadd.f32 %v4204, %v4156
        %v4269 = vadd.f32 %v4208, %v4157
        %v4270 = vadd.f32 %v4208, %v4158
        %v4271 = vadd.f32 %v4212, %v4159
        %v4272 = vadd.f32 %v4212, %v4160
        %v4273 = vadd.f32 %v4216, %v4161
        %v4274 = vadd.f32 %v4216, %v4162
        %v4275 = vadd.f32 %v4220, %v4163
        %v4276 = vadd.f32 %v4220, %v4164
        %v4277 = vadd.f32 %v4224, %v4165
        %v4278 = vadd.f32 %v4224, %v4166
        %v4279 = vadd.f32 %v4228, %v4167
        %v4280 = vadd.f32 %v4228, %v4168
        %v4281 = vadd.f32 %v4232, %v4169
        %v4282 = vadd.f32 %v4232, %v4170
        %v4283 = vadd.f32 %v4236, %v4171
        %v4284 = vadd.f32 %v4236, %v4172
        %v4285 = vmul.f32 %v3315, %v4253
        %v4286 = vmul.f32 %v3317, %v4254
        %v4287 = vmul.f32 %v3319, %v4255
        %v4288 = vmul.f32 %v3321, %v4256
        %v4289 = vmul.f32 %v3323, %v4257
        %v4290 = vmul.f32 %v3325, %v4258
        %v4291 = vmul.f32 %v3327, %v4259
        %v4292 = vmul.f32 %v3329, %v4260
        %v4293 = vmul.f32 %v3331, %v4261
        %v4294 = vmul.f32 %v3333, %v4262
        %v4295 = vmul.f32 %v3335, %v4263
        %v4296 = vmul.f32 %v3337, %v4264
        %v4297 = vmul.f32 %v3339, %v4265
        %v4298 = vmul.f32 %v3341, %v4266
        %v4299 = vmul.f32 %v3343, %v4267
        %v4300 = vmul.f32 %v3345, %v4268
        %v4301 = vmul.f32 %v3347, %v4269
        %v4302 = vmul.f32 %v3349, %v4270
        %v4303 = vmul.f32 %v3351, %v4271
        %v4304 = vmul.f32 %v3353, %v4272
        %v4305 = vmul.f32 %v3355, %v4273
        %v4306 = vmul.f32 %v3357, %v4274
        %v4307 = vmul.f32 %v3359, %v4275
        %v4308 = vmul.f32 %v3361, %v4276
        %v4309 = vmul.f32 %v3363, %v4277
        %v4310 = vmul.f32 %v3365, %v4278
        %v4311 = vmul.f32 %v3367, %v4279
        %v4312 = vmul.f32 %v3369, %v4280
        %v4313 = vmul.f32 %v3371, %v4281
        %v4314 = vmul.f32 %v3373, %v4282
        %v4315 = vmul.f32 %v3375, %v4283
        %v4316 = vmul.f32 %v3377, %v4284
        %v4317 = vadd.f32 %v4285, %v4287
        %v4318 = vadd.f32 %v4317, %v4289
        %v4319 = vadd.f32 %v4318, %v4291
        %v4320 = vadd.f32 %v4319, %v4293
        %v4321 = vadd.f32 %v4320, %v4295
        %v4322 = vadd.f32 %v4321, %v4297
        %v4323 = vadd.f32 %v4322, %v4299
        %v4324 = vadd.f32 %v4323, %v4301
        %v4325 = vadd.f32 %v4324, %v4303
        %v4326 = vadd.f32 %v4325, %v4305
        %v4327 = vadd.f32 %v4326, %v4307
        %v4328 = vadd.f32 %v4327, %v4309
        %v4329 = vadd.f32 %v4328, %v4311
        %v4330 = vadd.f32 %v4329, %v4313
        %v4331 = vadd.f32 %v4330, %v4315
        %v4332 = vadd.f32 %v4286, %v4288
        %v4333 = vadd.f32 %v4332, %v4290
        %v4334 = vadd.f32 %v4333, %v4292
        %v4335 = vadd.f32 %v4334, %v4294
        %v4336 = vadd.f32 %v4335, %v4296
        %v4337 = vadd.f32 %v4336, %v4298
        %v4338 = vadd.f32 %v4337, %v4300
        %v4339 = vadd.f32 %v4338, %v4302
        %v4340 = vadd.f32 %v4339, %v4304
        %v4341 = vadd.f32 %v4340, %v4306
        %v4342 = vadd.f32 %v4341, %v4308
        %v4343 = vadd.f32 %v4342, %v4310
        %v4344 = vadd.f32 %v4343, %v4312
        %v4345 = vadd.f32 %v4344, %v4314
        %v4346 = vadd.f32 %v4345, %v4316
        %v4347 = vmul.f32 %v4331, %v3408
        %v4348 = vmul.f32 %v4346, %v3409
        %s4349 = scalar_lea.vmem %s258, 96 [#allocation10]
        %4350 = vst [vmem:[%s4349] sm:$0xff] %v4347
        %4351 = vst [vmem:[%s4349 + $0x8] sm:$0xff] %v4348
        %s4352 = scalar_lea.vmem %s222, 240 [#allocation2]
        %v4353 = vld [vmem:[%s4352] sm:$0xff]
        %v4354 = vld [vmem:[%s4352 + $0x8] sm:$0xff]
        %v4357 = vcombine.high %v4353, %v4353
        %v4359 = vunpack.c.l.s4 1966171168
        %v4360 = vunpack.c.0.s8 %v4359
        %v4361 = vlaneseq
        %v4362 = vshrl.u32 %v4361, 7
        %v4363 = vsub.s32 %v4360, %v4362
        %v4364 = vrot.slane %v4353, %v4363
        %v4366 = vunpack.c.l.s4 1966171168
        %v4367 = vunpack.c.0.s8 %v4366
        %v4368 = vlaneseq
        %v4369 = vshrl.u32 %v4368, 7
        %v4370 = vsub.s32 %v4367, %v4369
        %v4371 = vrot.slane %v4357, %v4370
        %v4372 = vcombine.high %v4364, %v4364
        %v4373 = vcombine.high %v4371, %v4371
        %v4375 = vunpack.c.l.s4 1966171168
        %v4376 = vunpack.c.0.s8 %v4375
        %v4377 = vlaneseq
        %v4378 = vshrl.u32 %v4377, 7
        %v4379 = vsub.s32 %v4376, %v4378
        %v4380 = vrot.slane %v4364, %v4379
        %v4382 = vunpack.c.l.s4 1966171168
        %v4383 = vunpack.c.0.s8 %v4382
        %v4384 = vlaneseq
        %v4385 = vshrl.u32 %v4384, 7
        %v4386 = vsub.s32 %v4383, %v4385
        %v4387 = vrot.slane %v4371, %v4386
        %v4389 = vunpack.c.l.s4 1966171168
        %v4390 = vunpack.c.0.s8 %v4389
        %v4391 = vlaneseq
        %v4392 = vshrl.u32 %v4391, 7
        %v4393 = vsub.s32 %v4390, %v4392
        %v4394 = vrot.slane %v4372, %v4393
        %v4396 = vunpack.c.l.s4 1966171168
        %v4397 = vunpack.c.0.s8 %v4396
        %v4398 = vlaneseq
        %v4399 = vshrl.u32 %v4398, 7
        %v4400 = vsub.s32 %v4397, %v4399
        %v4401 = vrot.slane %v4373, %v4400
        %v4402 = vcombine.high %v4380, %v4380
        %v4403 = vcombine.high %v4387, %v4387
        %v4404 = vcombine.high %v4394, %v4394
        %v4405 = vcombine.high %v4401, %v4401
        %v4406 = vcombine.high %v4354, %v4354
        %v4408 = vunpack.c.l.s4 1966171168
        %v4409 = vunpack.c.0.s8 %v4408
        %v4410 = vlaneseq
        %v4411 = vshrl.u32 %v4410, 7
        %v4412 = vsub.s32 %v4409, %v4411
        %v4413 = vrot.slane %v4354, %v4412
        %v4415 = vunpack.c.l.s4 1966171168
        %v4416 = vunpack.c.0.s8 %v4415
        %v4417 = vlaneseq
        %v4418 = vshrl.u32 %v4417, 7
        %v4419 = vsub.s32 %v4416, %v4418
        %v4420 = vrot.slane %v4406, %v4419
        %v4421 = vcombine.high %v4413, %v4413
        %v4422 = vcombine.high %v4420, %v4420
        %v4424 = vunpack.c.l.s4 1966171168
        %v4425 = vunpack.c.0.s8 %v4424
        %v4426 = vlaneseq
        %v4427 = vshrl.u32 %v4426, 7
        %v4428 = vsub.s32 %v4425, %v4427
        %v4429 = vrot.slane %v4413, %v4428
        %v4431 = vunpack.c.l.s4 1966171168
        %v4432 = vunpack.c.0.s8 %v4431
        %v4433 = vlaneseq
        %v4434 = vshrl.u32 %v4433, 7
        %v4435 = vsub.s32 %v4432, %v4434
        %v4436 = vrot.slane %v4420, %v4435
        %v4438 = vunpack.c.l.s4 1966171168
        %v4439 = vunpack.c.0.s8 %v4438
        %v4440 = vlaneseq
        %v4441 = vshrl.u32 %v4440, 7
        %v4442 = vsub.s32 %v4439, %v4441
        %v4443 = vrot.slane %v4421, %v4442
        %v4445 = vunpack.c.l.s4 1966171168
        %v4446 = vunpack.c.0.s8 %v4445
        %v4447 = vlaneseq
        %v4448 = vshrl.u32 %v4447, 7
        %v4449 = vsub.s32 %v4446, %v4448
        %v4450 = vrot.slane %v4422, %v4449
        %v4451 = vcombine.high %v4429, %v4429
        %v4452 = vcombine.high %v4436, %v4436
        %v4453 = vcombine.high %v4443, %v4443
        %v4454 = vcombine.high %v4450, %v4450
        %v4455 = vld [vmem:[%s2252] sm:$0xff]
        %v4456 = vld [vmem:[%s2252 + $0x8] sm:$0xff]
        %v4457 = vld [vmem:[%s2252 + $0x10] sm:$0xff]
        %v4458 = vld [vmem:[%s2252 + $0x18] sm:$0xff]
        %v4459 = vld [vmem:[%s2252 + $0x20] sm:$0xff]
        %v4460 = vld [vmem:[%s2252 + $0x28] sm:$0xff]
        %v4461 = vld [vmem:[%s2252 + $0x30] sm:$0xff]
        %v4462 = vld [vmem:[%s2252 + $0x38] sm:$0xff]
        %v4463 = vld [vmem:[%s2252 + $0x40] sm:$0xff]
        %v4464 = vld [vmem:[%s2252 + $0x48] sm:$0xff]
        %v4465 = vld [vmem:[%s2252 + $0x50] sm:$0xff]
        %v4466 = vld [vmem:[%s2252 + $0x58] sm:$0xff]
        %v4467 = vld [vmem:[%s2252 + $0x60] sm:$0xff]
        %v4468 = vld [vmem:[%s2252 + $0x68] sm:$0xff]
        %v4469 = vld [vmem:[%s2252 + $0x70] sm:$0xff]
        %v4470 = vld [vmem:[%s2252 + $0x78] sm:$0xff]
        %v4471 = vld [vmem:[%s2252 + $0x80] sm:$0xff]
        %v4472 = vld [vmem:[%s2252 + $0x88] sm:$0xff]
        %v4473 = vld [vmem:[%s2252 + $0x90] sm:$0xff]
        %v4474 = vld [vmem:[%s2252 + $0x98] sm:$0xff]
        %v4475 = vld [vmem:[%s2252 + $0xa0] sm:$0xff]
        %v4476 = vld [vmem:[%s2252 + $0xa8] sm:$0xff]
        %v4477 = vld [vmem:[%s2252 + $0xb0] sm:$0xff]
        %v4478 = vld [vmem:[%s2252 + $0xb8] sm:$0xff]
        %v4479 = vld [vmem:[%s2252 + $0xc0] sm:$0xff]
        %v4480 = vld [vmem:[%s2252 + $0xc8] sm:$0xff]
        %v4481 = vld [vmem:[%s2252 + $0xd0] sm:$0xff]
        %v4482 = vld [vmem:[%s2252 + $0xd8] sm:$0xff]
        %v4483 = vld [vmem:[%s2252 + $0xe0] sm:$0xff]
        %v4484 = vld [vmem:[%s2252 + $0xe8] sm:$0xff]
        %v4485 = vld [vmem:[%s2252 + $0xf0] sm:$0xff]
        %v4486 = vld [vmem:[%s2252 + $0xf8] sm:$0xff]
        %v4487 = vlaneseq
        %v4488 = vshrl.u32 %v4487, 7
        %v4489 = vsub.s32 0, %v4488
        %v4490 = vrot.slane %v4380, %v4489
        %v4491 = vlaneseq
        %v4492 = vshrl.u32 %v4491, 7
        %v4493 = vsub.s32 0, %v4492
        %v4494 = vrot.slane %v4394, %v4493
        %v4495 = vlaneseq
        %v4496 = vshrl.u32 %v4495, 7
        %v4497 = vsub.s32 0, %v4496
        %v4498 = vrot.slane %v4402, %v4497
        %v4499 = vlaneseq
        %v4500 = vshrl.u32 %v4499, 7
        %v4501 = vsub.s32 0, %v4500
        %v4502 = vrot.slane %v4404, %v4501
        %v4503 = vlaneseq
        %v4504 = vshrl.u32 %v4503, 7
        %v4505 = vsub.s32 0, %v4504
        %v4506 = vrot.slane %v4387, %v4505
        %v4507 = vlaneseq
        %v4508 = vshrl.u32 %v4507, 7
        %v4509 = vsub.s32 0, %v4508
        %v4510 = vrot.slane %v4401, %v4509
        %v4511 = vlaneseq
        %v4512 = vshrl.u32 %v4511, 7
        %v4513 = vsub.s32 0, %v4512
        %v4514 = vrot.slane %v4403, %v4513
        %v4515 = vlaneseq
        %v4516 = vshrl.u32 %v4515, 7
        %v4517 = vsub.s32 0, %v4516
        %v4518 = vrot.slane %v4405, %v4517
        %v4519 = vlaneseq
        %v4520 = vshrl.u32 %v4519, 7
        %v4521 = vsub.s32 0, %v4520
        %v4522 = vrot.slane %v4429, %v4521
        %v4523 = vlaneseq
        %v4524 = vshrl.u32 %v4523, 7
        %v4525 = vsub.s32 0, %v4524
        %v4526 = vrot.slane %v4443, %v4525
        %v4527 = vlaneseq
        %v4528 = vshrl.u32 %v4527, 7
        %v4529 = vsub.s32 0, %v4528
        %v4530 = vrot.slane %v4451, %v4529
        %v4531 = vlaneseq
        %v4532 = vshrl.u32 %v4531, 7
        %v4533 = vsub.s32 0, %v4532
        %v4534 = vrot.slane %v4453, %v4533
        %v4535 = vlaneseq
        %v4536 = vshrl.u32 %v4535, 7
        %v4537 = vsub.s32 0, %v4536
        %v4538 = vrot.slane %v4436, %v4537
        %v4539 = vlaneseq
        %v4540 = vshrl.u32 %v4539, 7
        %v4541 = vsub.s32 0, %v4540
        %v4542 = vrot.slane %v4450, %v4541
        %v4543 = vlaneseq
        %v4544 = vshrl.u32 %v4543, 7
        %v4545 = vsub.s32 0, %v4544
        %v4546 = vrot.slane %v4452, %v4545
        %v4547 = vlaneseq
        %v4548 = vshrl.u32 %v4547, 7
        %v4549 = vsub.s32 0, %v4548
        %v4550 = vrot.slane %v4454, %v4549
        %v4567 = vadd.f32 %v4490, %v4455
        %v4568 = vadd.f32 %v4490, %v4456
        %v4569 = vadd.f32 %v4494, %v4457
        %v4570 = vadd.f32 %v4494, %v4458
        %v4571 = vadd.f32 %v4498, %v4459
        %v4572 = vadd.f32 %v4498, %v4460
        %v4573 = vadd.f32 %v4502, %v4461
        %v4574 = vadd.f32 %v4502, %v4462
        %v4575 = vadd.f32 %v4506, %v4463
        %v4576 = vadd.f32 %v4506, %v4464
        %v4577 = vadd.f32 %v4510, %v4465
        %v4578 = vadd.f32 %v4510, %v4466
        %v4579 = vadd.f32 %v4514, %v4467
        %v4580 = vadd.f32 %v4514, %v4468
        %v4581 = vadd.f32 %v4518, %v4469
        %v4582 = vadd.f32 %v4518, %v4470
        %v4583 = vadd.f32 %v4522, %v4471
        %v4584 = vadd.f32 %v4522, %v4472
        %v4585 = vadd.f32 %v4526, %v4473
        %v4586 = vadd.f32 %v4526, %v4474
        %v4587 = vadd.f32 %v4530, %v4475
        %v4588 = vadd.f32 %v4530, %v4476
        %v4589 = vadd.f32 %v4534, %v4477
        %v4590 = vadd.f32 %v4534, %v4478
        %v4591 = vadd.f32 %v4538, %v4479
        %v4592 = vadd.f32 %v4538, %v4480
        %v4593 = vadd.f32 %v4542, %v4481
        %v4594 = vadd.f32 %v4542, %v4482
        %v4595 = vadd.f32 %v4546, %v4483
        %v4596 = vadd.f32 %v4546, %v4484
        %v4597 = vadd.f32 %v4550, %v4485
        %v4598 = vadd.f32 %v4550, %v4486
        %v4599 = vmul.f32 %v3315, %v4567
        %v4600 = vmul.f32 %v3317, %v4568
        %v4601 = vmul.f32 %v3319, %v4569
        %v4602 = vmul.f32 %v3321, %v4570
        %v4603 = vmul.f32 %v3323, %v4571
        %v4604 = vmul.f32 %v3325, %v4572
        %v4605 = vmul.f32 %v3327, %v4573
        %v4606 = vmul.f32 %v3329, %v4574
        %v4607 = vmul.f32 %v3331, %v4575
        %v4608 = vmul.f32 %v3333, %v4576
        %v4609 = vmul.f32 %v3335, %v4577
        %v4610 = vmul.f32 %v3337, %v4578
        %v4611 = vmul.f32 %v3339, %v4579
        %v4612 = vmul.f32 %v3341, %v4580
        %v4613 = vmul.f32 %v3343, %v4581
        %v4614 = vmul.f32 %v3345, %v4582
        %v4615 = vmul.f32 %v3347, %v4583
        %v4616 = vmul.f32 %v3349, %v4584
        %v4617 = vmul.f32 %v3351, %v4585
        %v4618 = vmul.f32 %v3353, %v4586
        %v4619 = vmul.f32 %v3355, %v4587
        %v4620 = vmul.f32 %v3357, %v4588
        %v4621 = vmul.f32 %v3359, %v4589
        %v4622 = vmul.f32 %v3361, %v4590
        %v4623 = vmul.f32 %v3363, %v4591
        %v4624 = vmul.f32 %v3365, %v4592
        %v4625 = vmul.f32 %v3367, %v4593
        %v4626 = vmul.f32 %v3369, %v4594
        %v4627 = vmul.f32 %v3371, %v4595
        %v4628 = vmul.f32 %v3373, %v4596
        %v4629 = vmul.f32 %v3375, %v4597
        %v4630 = vmul.f32 %v3377, %v4598
        %v4631 = vadd.f32 %v4599, %v4601
        %v4632 = vadd.f32 %v4631, %v4603
        %v4633 = vadd.f32 %v4632, %v4605
        %v4634 = vadd.f32 %v4633, %v4607
        %v4635 = vadd.f32 %v4634, %v4609
        %v4636 = vadd.f32 %v4635, %v4611
        %v4637 = vadd.f32 %v4636, %v4613
        %v4638 = vadd.f32 %v4637, %v4615
        %v4639 = vadd.f32 %v4638, %v4617
        %v4640 = vadd.f32 %v4639, %v4619
        %v4641 = vadd.f32 %v4640, %v4621
        %v4642 = vadd.f32 %v4641, %v4623
        %v4643 = vadd.f32 %v4642, %v4625
        %v4644 = vadd.f32 %v4643, %v4627
        %v4645 = vadd.f32 %v4644, %v4629
        %v4646 = vadd.f32 %v4600, %v4602
        %v4647 = vadd.f32 %v4646, %v4604
        %v4648 = vadd.f32 %v4647, %v4606
        %v4649 = vadd.f32 %v4648, %v4608
        %v4650 = vadd.f32 %v4649, %v4610
        %v4651 = vadd.f32 %v4650, %v4612
        %v4652 = vadd.f32 %v4651, %v4614
        %v4653 = vadd.f32 %v4652, %v4616
        %v4654 = vadd.f32 %v4653, %v4618
        %v4655 = vadd.f32 %v4654, %v4620
        %v4656 = vadd.f32 %v4655, %v4622
        %v4657 = vadd.f32 %v4656, %v4624
        %v4658 = vadd.f32 %v4657, %v4626
        %v4659 = vadd.f32 %v4658, %v4628
        %v4660 = vadd.f32 %v4659, %v4630
        %v4661 = vmul.f32 %v4645, %v3408
        %v4662 = vmul.f32 %v4660, %v3409
        %s4663 = scalar_lea.vmem %s258, 112 [#allocation10]
        %4664 = vst [vmem:[%s4663] sm:$0xff] %v4661
        %4665 = vst [vmem:[%s4663 + $0x8] sm:$0xff] %v4662
        %s4666 = sand.u32 %s120, 1
        %s4667 = scalar_lea.sflag [#allocation4], %s4666
        %s4668 = sand.u32 %s120, 1
        %s4669 = smul.addr %s4668, 128
        %s4670 = scalar_lea.vmem [#allocation10], %s4669
        // Predicated region
        $region53: #{tpu_custom_call.1} parent=35 // pred_check
          %p4671 = pneg %p130
        $region54: #{tpu_custom_call.1} parent=35 // pred_check_branch
          %4673 = sbr.rel (%p4671) target = $region56
        $region55: #{tpu_custom_call.1} parent=35 // pred_region
          %s4675 = ssub.s32 2048, 2048
          %4676 = vsyncadd %s4667, %s4675
          %s4677 = smul.addr %s23, 128
          %s4678 = scalar_lea.hbm %s4, %s4677
          %s4679 = sshll.u32 %s4670, 4
          %s4680 = int_to_ptr.vmem [resolvable:$true] %s4679
          %4685 = dma.vmem_to_hbm [thread:$0]  %s4680, 2048, %s4678, %s4667, 128, 512, 8
        $region56: #{tpu_custom_call.1} parent=35 // pred_fallthru
          _
      $region36: #{tpu_custom_call.1} parent=5 // pred_fallthru
        _
      %p4686 = scmp.le.s32.totalorder 2, %s18
      // Predicated region
      $region57: #{tpu_custom_call.1} parent=5 // pred_check
        %p4687 = pneg %p4686
      $region58: #{tpu_custom_call.1} parent=5 // pred_check_branch
        %4689 = sbr.rel (%p4687) target = $region60
      $region59: #{tpu_custom_call.1} parent=5 // pred_region
        %s4690 = ssub.s32 %s18, 2
        // Predicated region
        $region61: #{tpu_custom_call.1} parent=59 // pred_check
          %p4691 = pneg %p136
        $region62: #{tpu_custom_call.1} parent=59 // pred_check_branch
          %4693 = sbr.rel (%p4691) target = $region64
        $region63: #{tpu_custom_call.1} parent=59 // pred_region
          %s4694 = sand.u32 %s121, 1
          %s4695 = scalar_lea.sflag [#allocation4], %s4694
          %s4696 = sand.u32 %s121, 1
          %s4697 = smul.addr %s4696, 128
          %s4698 = scalar_lea.vmem [#allocation10], %s4697
          %4699 = dma.done %s4695, 2048
        $region64: #{tpu_custom_call.1} parent=59 // pred_fallthru
          _
      $region60: #{tpu_custom_call.1} parent=5 // pred_fallthru
        _
    $region6: #{tpu_custom_call.1} parent=1 // loop_footer
      %s22 = sadd.s32 1, %s18
    $region7: #{tpu_custom_call.1} parent=1 // loop_footer_branch
      %17 = sbr.rel target = $region3
    $region8: #{tpu_custom_call.1} parent=1 // loop_exit
      _
    %4700 = vsyncpa [#allocation3], 1
    %s4701 = scalar_lea.sflag [#allocation3], 1
    %4702 = vsyncpa %s4701, 1
    %4703 = vsyncpa [#allocation6], 1
    %4704 = vsyncpa [#allocation9], 1
    %4705 = vsyncpa [#allocation4], 1
    %s4706 = scalar_lea.sflag [#allocation4], 1
    %4707 = vsyncpa %s4706, 1

</llo_original>
